<compile_context>
chip_gen: v5e
topology: v5e:2x2
jax: 0.10.0
libtpu: 0.0.40
codegen_flags: <defaults>
</compile_context>

<pallas_src>
import math
import functools

import jax
import jax.numpy as jnp
from jax.experimental import pallas as pl
from jax.experimental.pallas import tpu as pltpu


def _round_up(x, m):
    return ((x + m - 1) // m) * m


def gru_stack_kernel(*refs, num_layers, hidden_pad, batch_pad, seq_len, reverse):
    """Multi-layer GRU forward, time-major padded layout.

    Ref layout (row index = t * Bp + b, all dims (8,128)-aligned):
      inputs : x2d (S*Bp, Ep), h0 (L, Bp, Hp),
               per layer l: w_ih (in_lp, 3*Hp), w_hh (Hp, 3*Hp),
                            b_fold (1, 3*Hp)  = b_ih + [b_hh_r, b_hh_z, 0],
                            b_hhn  (1, Hp)    = b_hh_n  (stays inside the loop)
      outputs: y2d (S*Bp, Hp), h_final (L, Bp, Hp)
      scratch: gx (S*Bp, 3*Hp) f32  -- per-layer full-sequence input projection
    Gate order along the 3*Hp axis is (r, z, n), each gate lane-padded to Hp,
    matching torch.nn.GRU.
    """
    Hp = hidden_pad
    Bp = batch_pad
    S = seq_len
    L = num_layers

    x_ref = refs[0]
    h0_ref = refs[1]
    p = refs[2:2 + 4 * L]
    y_ref, hN_ref, gx_ref = refs[2 + 4 * L:]

    def sigmoid(v):
        # exp + reciprocal both land on the EUP slot (VPU stays free).
        return pl.reciprocal(1.0 + jnp.exp(-v), approx=True)

    for l in range(L):
        w_ih_ref = p[4 * l]          # (in_lp, 3*Hp)
        w_hh_ref = p[4 * l + 1]      # (Hp, 3*Hp)
        b_fold = p[4 * l + 2][...]   # (1, 3*Hp)
        b_hhn = p[4 * l + 3][...]    # (1, Hp)

        # Full-sequence input projection for this layer: ONE big MXU matmul
        # (time and batch folded into rows); r/z hidden biases already folded.
        inp2d = (x_ref[...] if l == 0 else y_ref[...]).astype(jnp.float32)
        gx_ref[...] = jnp.dot(inp2d, w_ih_ref[...],
                              preferred_element_type=jnp.float32) + b_fold

        def step(t, h):
            # Optional time reversal handled here instead of flipping HBM
            # tensors in the wrapper.
            idx = (S - 1 - t) if reverse else t
            row = pl.multiple_of(idx * Bp, 8)            # sublane-aligned rows
            gx_t = gx_ref[pl.ds(row, Bp), :]             # (Bp, 3*Hp), full tiles
            # Recurrent matmul; W_hh read from VMEM (not pinned in vregs).
            gh = jnp.dot(h, w_hh_ref[...], preferred_element_type=jnp.float32)
            r = sigmoid(gx_t[:, 0:Hp] + gh[:, 0:Hp])
            z = sigmoid(gx_t[:, Hp:2 * Hp] + gh[:, Hp:2 * Hp])
            n = jnp.tanh(gx_t[:, 2 * Hp:3 * Hp]
                         + r * (gh[:, 2 * Hp:3 * Hp] + b_hhn))
            h_new = (1.0 - z) * n + z * h
            y_ref[pl.ds(row, Bp), :] = h_new.astype(y_ref.dtype)
            return h_new

        # Fully unrolled recurrence: gives the scheduler cross-timestep
        # visibility (MXU push / EUP / VPU gate math of adjacent steps overlap).
        h_last = jax.lax.fori_loop(0, S, step, h0_ref[l].astype(jnp.float32),
                                   unroll=True)
        hN_ref[l] = h_last.astype(hN_ref.dtype)


def cpcar_forward(x, params, hidden=None, reverse=False):
    """CPCAR.forward (mode='GRU'): returns (output_sequence, final_hidden).

    To emulate keepHidden=True, feed the returned final_hidden back as `hidden`.
    """
    B, S, E = x.shape
    L = params["num_layers"]
    H = params["hidden_size"]

    Bp = _round_up(B, 8)      # sublane alignment
    Hp = _round_up(H, 128)    # lane alignment (per gate block)
    Ep = _round_up(E, 128)

    if hidden is None:
        hidden = jnp.zeros((L, B, H), jnp.float32)

    # Time-major, padded activations; row index = t * Bp + b.
    x_tm = jnp.transpose(x, (1, 0, 2)).astype(jnp.float32)            # (S,B,E)
    x_pad = jnp.zeros((S, Bp, Ep), jnp.float32).at[:, :B, :E].set(x_tm)
    x2d = x_pad.reshape(S * Bp, Ep)
    h0_pad = jnp.zeros((L, Bp, Hp), jnp.float32).at[:, :B, :H].set(
        hidden.astype(jnp.float32))

    # Pad weights so each gate (r,z,n) occupies its own lane-aligned Hp block;
    # fold the r/z parts of b_hh into the precomputed gx bias.
    args = [x2d, h0_pad]
    for l in range(L):
        in_l = E if l == 0 else H
        in_lp = Ep if l == 0 else Hp
        w_ih = params["w_ih"][l]     # (in_l, 3H)
        w_hh = params["w_hh"][l]     # (H, 3H)
        b_ih = params["b_ih"][l]     # (1, 3H)
        b_hh = params["b_hh"][l]     # (1, 3H)

        w_ih_p = jnp.zeros((in_lp, 3 * Hp), jnp.float32)
        w_hh_p = jnp.zeros((Hp, 3 * Hp), jnp.float32)
        b_fold_p = jnp.zeros((1, 3 * Hp), jnp.float32)
        for g in range(3):
            w_ih_p = w_ih_p.at[:in_l, g * Hp:g * Hp + H].set(
                w_ih[:, g * H:(g + 1) * H])
            w_hh_p = w_hh_p.at[:H, g * Hp:g * Hp + H].set(
                w_hh[:, g * H:(g + 1) * H])
            b = b_ih[:, g * H:(g + 1) * H]
            if g < 2:  # fold r/z hidden biases into the input projection
                b = b + b_hh[:, g * H:(g + 1) * H]
            b_fold_p = b_fold_p.at[:, g * Hp:g * Hp + H].set(b)
        b_hhn_p = jnp.zeros((1, Hp), jnp.float32).at[:, :H].set(
            b_hh[:, 2 * H:3 * H])
        args += [w_ih_p, w_hh_p, b_fold_p, b_hhn_p]

    def full_spec(shape):
        nd = len(shape)
        return pl.BlockSpec(shape, lambda i, _nd=nd: (0,) * _nd)

    in_specs = [full_spec(a.shape) for a in args]
    kernel = functools.partial(gru_stack_kernel, num_layers=L, hidden_pad=Hp,
                               batch_pad=Bp, seq_len=S, reverse=bool(reverse))

    y2d, hN_pad = pl.pallas_call(
        kernel,
        out_shape=(jax.ShapeDtypeStruct((S * Bp, Hp), jnp.float32),
                   jax.ShapeDtypeStruct((L, Bp, Hp), jnp.float32)),
        grid=(1,),
        in_specs=in_specs,
        out_specs=(full_spec((S * Bp, Hp)), full_spec((L, Bp, Hp))),
        scratch_shapes=[pltpu.VMEM((S * Bp, 3 * Hp), jnp.float32)],
        compiler_params=pltpu.CompilerParams(
            dimension_semantics=("arbitrary",),
            vmem_limit_bytes=32 * 1024 * 1024),
    )(*args)

    y = jnp.transpose(y2d.reshape(S, Bp, Hp)[:, :B, :H], (1, 0, 2))
    h_final = hN_pad[:, :B, :H]
    return y, h_final


def cpcar_reference(x, params, hidden=None, reverse=False):
    """Pure-JAX reference (matches torch.nn.GRU equations)."""
    B, S, E = x.shape
    L = params["num_layers"]
    H = params["hidden_size"]
    if reverse:
        x = jnp.flip(x, axis=1)
    if hidden is None:
        hidden = jnp.zeros((L, B, H), jnp.float32)

    inp = x.astype(jnp.float32)
    h_finals = []
    for l in range(L):
        w_ih, w_hh = params["w_ih"][l], params["w_hh"][l]
        b_ih, b_hh = params["b_ih"][l], params["b_hh"][l]

        def step(h, x_t):
            gx = x_t @ w_ih + b_ih
            gh = h @ w_hh + b_hh
            r = jax.nn.sigmoid(gx[:, 0:H] + gh[:, 0:H])
            z = jax.nn.sigmoid(gx[:, H:2 * H] + gh[:, H:2 * H])
            n = jnp.tanh(gx[:, 2 * H:3 * H] + r * gh[:, 2 * H:3 * H])
            h_new = (1.0 - z) * n + z * h
            return h_new, h_new

        h_last, ys = jax.lax.scan(step, hidden[l], jnp.transpose(inp, (1, 0, 2)))
        inp = jnp.transpose(ys, (1, 0, 2))
        h_finals.append(h_last)
    y = inp
    if reverse:
        y = jnp.flip(y, axis=1)
    return y, jnp.stack(h_finals)


def init_params(key, dim_encoded, dim_output, num_layers):
    """torch.nn.GRU-style init: params ~ U(-1/sqrt(H), 1/sqrt(H)).

    Weights stored pre-transposed to (in, out) so the kernel computes x @ W;
    columns are grouped in torch's (r, z, n) gate order.
    """
    H = dim_output
    k = 1.0 / math.sqrt(H)
    keys = jax.random.split(key, num_layers * 4)
    w_ih, w_hh, b_ih, b_hh = [], [], [], []
    for l in range(num_layers):
        in_l = dim_encoded if l == 0 else H
        k0, k1, k2, k3 = keys[4 * l:4 * l + 4]
        w_ih.append(jax.random.uniform(k0, (in_l, 3 * H), jnp.float32, -k, k))
        w_hh.append(jax.random.uniform(k1, (H, 3 * H), jnp.float32, -k, k))
        b_ih.append(jax.random.uniform(k2, (1, 3 * H), jnp.float32, -k, k))
        b_hh.append(jax.random.uniform(k3, (1, 3 * H), jnp.float32, -k, k))
    return dict(w_ih=w_ih, w_hh=w_hh, b_ih=b_ih, b_hh=b_hh,
                num_layers=num_layers, hidden_size=H)


if __name__ == "__main__":
    # CPCAR(dimEncoded=32, dimOutput=32, keepHidden=False, nLevelsGRU=2, mode='GRU')
    B, S, E, H, L = 2, 8, 32, 32, 2
    key = jax.random.PRNGKey(0)
    kx, kp = jax.random.split(key)
    x = jax.random.normal(kx, (B, S, E), jnp.float32)
    params = init_params(kp, E, H, L)

    # Forward pass (reverse=False), fresh hidden state.
    y, h_final = cpcar_forward(x, params, hidden=None, reverse=False)
    jax.block_until_ready((y, h_final))
    assert y.shape == (B, S, H) and h_final.shape == (L, B, H)
    assert bool(jnp.all(jnp.isfinite(y))) and bool(jnp.all(jnp.isfinite(h_final)))

    y_ref, h_ref = cpcar_reference(x, params, hidden=None, reverse=False)
    err_y = float(jnp.max(jnp.abs(y - y_ref)))
    err_h = float(jnp.max(jnp.abs(h_final - h_ref)))
    assert err_y < 5e-2 and err_h < 5e-2, (err_y, err_h)

    # reverse=True path + carried hidden (emulates keepHidden=True on call 2).
    y2, h2 = cpcar_forward(x, params, hidden=h_final, reverse=True)
    jax.block_until_ready((y2, h2))
    y2_ref, h2_ref = cpcar_reference(x, params, hidden=h_final, reverse=True)
    err_y2 = float(jnp.max(jnp.abs(y2 - y2_ref)))
    err_h2 = float(jnp.max(jnp.abs(h2 - h2_ref)))
    assert err_y2 < 5e-2 and err_h2 < 5e-2, (err_y2, err_h2)

    print("KERNEL_OK")
</pallas_src>

<mosaic_0001>
module attributes {stable_mosaic.version = 11 : i64} {
  func.func @gru_stack_kernel(%arg0: i32, %arg1: memref<64x128xf32, #tpu.memory_space<vmem>>, %arg2: memref<2x8x128xf32, #tpu.memory_space<vmem>>, %arg3: memref<128x384xf32, #tpu.memory_space<vmem>>, %arg4: memref<128x384xf32, #tpu.memory_space<vmem>>, %arg5: memref<1x384xf32, #tpu.memory_space<vmem>>, %arg6: memref<1x128xf32, #tpu.memory_space<vmem>>, %arg7: memref<128x384xf32, #tpu.memory_space<vmem>>, %arg8: memref<128x384xf32, #tpu.memory_space<vmem>>, %arg9: memref<1x384xf32, #tpu.memory_space<vmem>>, %arg10: memref<1x128xf32, #tpu.memory_space<vmem>>, %arg11: memref<64x128xf32, #tpu.memory_space<vmem>>, %arg12: memref<2x8x128xf32, #tpu.memory_space<vmem>>, %arg13: memref<64x384xf32, #tpu.memory_space<vmem>>) attributes {dimension_semantics = [#tpu.dimension_semantics<arbitrary>], iteration_bounds = array<i64: 1>, scalar_prefetch = 0 : i64, scratch_operands = 1 : i64, tpu.core_type = #tpu.core_type<tc>, window_params = [{pipeline_mode = #tpu.pipeline_mode<synchronous>, transform_indices = @transform_0, window_bounds = array<i64: 64, 128>}, {pipeline_mode = #tpu.pipeline_mode<synchronous>, transform_indices = @transform_1, window_bounds = array<i64: 2, 8, 128>}, {pipeline_mode = #tpu.pipeline_mode<synchronous>, transform_indices = @transform_2, window_bounds = array<i64: 128, 384>}, {pipeline_mode = #tpu.pipeline_mode<synchronous>, transform_indices = @transform_3, window_bounds = array<i64: 128, 384>}, {pipeline_mode = #tpu.pipeline_mode<synchronous>, transform_indices = @transform_4, window_bounds = array<i64: 1, 384>}, {pipeline_mode = #tpu.pipeline_mode<synchronous>, transform_indices = @transform_5, window_bounds = array<i64: 1, 128>}, {pipeline_mode = #tpu.pipeline_mode<synchronous>, transform_indices = @transform_6, window_bounds = array<i64: 128, 384>}, {pipeline_mode = #tpu.pipeline_mode<synchronous>, transform_indices = @transform_7, window_bounds = array<i64: 128, 384>}, {pipeline_mode = #tpu.pipeline_mode<synchronous>, transform_indices = @transform_8, window_bounds = array<i64: 1, 384>}, {pipeline_mode = #tpu.pipeline_mode<synchronous>, transform_indices = @transform_9, window_bounds = array<i64: 1, 128>}, {pipeline_mode = #tpu.pipeline_mode<synchronous>, transform_indices = @transform_10, window_bounds = array<i64: 64, 128>}, {pipeline_mode = #tpu.pipeline_mode<synchronous>, transform_indices = @transform_11, window_bounds = array<i64: 2, 8, 128>}]} {
    %c0 = arith.constant 0 : index
    %c0_0 = arith.constant 0 : index
    %0 = vector.load %arg5[%c0, %c0_0] : memref<1x384xf32, #tpu.memory_space<vmem>>, vector<1x384xf32>
    %c0_1 = arith.constant 0 : index
    %c0_2 = arith.constant 0 : index
    %1 = vector.load %arg6[%c0_1, %c0_2] : memref<1x128xf32, #tpu.memory_space<vmem>>, vector<1x128xf32>
    %c0_3 = arith.constant 0 : index
    %c0_4 = arith.constant 0 : index
    %2 = vector.load %arg1[%c0_3, %c0_4] : memref<64x128xf32, #tpu.memory_space<vmem>>, vector<64x128xf32>
    %c0_5 = arith.constant 0 : index
    %c0_6 = arith.constant 0 : index
    %3 = vector.load %arg3[%c0_5, %c0_6] : memref<128x384xf32, #tpu.memory_space<vmem>>, vector<128x384xf32>
    %cst = arith.constant dense<0.000000e+00> : vector<64x384xf32>
    %4 = tpu.matmul %2, %3, %cst {dimension_numbers = #tpu.dot_dimension_numbers<[1], [0], [0], [1], [0, 0, 1, 1], [], []>} : vector<64x128xf32>, vector<128x384xf32>, vector<64x384xf32> -> vector<64x384xf32>
    %5 = vector.broadcast %0 : vector<1x384xf32> to vector<64x384xf32>
    %6 = arith.addf %4, %5 : vector<64x384xf32>
    %c0_7 = arith.constant 0 : index
    %c0_8 = arith.constant 0 : index
    %7 = vector.load %arg13[%c0_7, %c0_8] : memref<64x384xf32, #tpu.memory_space<vmem>>, vector<64x384xf32>
    tpu.vector_store %arg13[%c0_7, %c0_8], %6 {strides = array<i32>} : memref<64x384xf32, #tpu.memory_space<vmem>>, vector<64x384xf32>,
    %c0_9 = arith.constant 0 : index
    %c0_10 = arith.constant 0 : index
    %c0_11 = arith.constant 0 : index
    %8 = vector.load %arg2[%c0_9, %c0_10, %c0_11] : memref<2x8x128xf32, #tpu.memory_space<vmem>>, vector<1x8x128xf32>
    %9 = vector.shape_cast %8 : vector<1x8x128xf32> to vector<8x128xf32>
    %c0_i32 = arith.constant 0 : i32
    %c8_i32 = arith.constant 8 : i32
    %10 = arith.muli %c0_i32, %c8_i32 : i32
    %11 = tpu.assume_multiple %10, 8 : i32
    %12 = arith.index_cast %11 : i32 to index
    %c0_12 = arith.constant 0 : index
    %13 = vector.load %arg13[%12, %c0_12] : memref<64x384xf32, #tpu.memory_space<vmem>>, vector<8x384xf32>
    %c0_13 = arith.constant 0 : index
    %c0_14 = arith.constant 0 : index
    %14 = vector.load %arg4[%c0_13, %c0_14] : memref<128x384xf32, #tpu.memory_space<vmem>>, vector<128x384xf32>
    %cst_15 = arith.constant dense<0.000000e+00> : vector<8x384xf32>
    %15 = tpu.matmul %9, %14, %cst_15 {dimension_numbers = #tpu.dot_dimension_numbers<[1], [0], [0], [1], [0, 0, 1, 1], [], []>} : vector<8x128xf32>, vector<128x384xf32>, vector<8x384xf32> -> vector<8x384xf32>
    %16 = vector.extract_strided_slice %13 {offsets = [0, 0], sizes = [8, 128], strides = [1, 1]} : vector<8x384xf32> to vector<8x128xf32>
    %17 = vector.extract_strided_slice %15 {offsets = [0, 0], sizes = [8, 128], strides = [1, 1]} : vector<8x384xf32> to vector<8x128xf32>
    %18 = arith.addf %16, %17 : vector<8x128xf32>
    %cst_16 = arith.constant 0.000000e+00 : f32
    %19 = vector.broadcast %cst_16 : f32 to vector<8x128xf32>
    %20 = arith.subf %19, %18 : vector<8x128xf32>
    %21 = math.exp %20 : vector<8x128xf32>
    %cst_17 = arith.constant 1.000000e+00 : f32
    %22 = vector.broadcast %cst_17 : f32 to vector<8x128xf32>
    %23 = arith.addf %22, %21 : vector<8x128xf32>
    %24 = tpu.reciprocal %23 {approx = true} : vector<8x128xf32> -> vector<8x128xf32>
    %25 = vector.extract_strided_slice %13 {offsets = [0, 128], sizes = [8, 128], strides = [1, 1]} : vector<8x384xf32> to vector<8x128xf32>
    %26 = vector.extract_strided_slice %15 {offsets = [0, 128], sizes = [8, 128], strides = [1, 1]} : vector<8x384xf32> to vector<8x128xf32>
    %27 = arith.addf %25, %26 : vector<8x128xf32>
    %cst_18 = arith.constant 0.000000e+00 : f32
    %28 = vector.broadcast %cst_18 : f32 to vector<8x128xf32>
    %29 = arith.subf %28, %27 : vector<8x128xf32>
    %30 = math.exp %29 : vector<8x128xf32>
    %cst_19 = arith.constant 1.000000e+00 : f32
    %31 = vector.broadcast %cst_19 : f32 to vector<8x128xf32>
    %32 = arith.addf %31, %30 : vector<8x128xf32>
    %33 = tpu.reciprocal %32 {approx = true} : vector<8x128xf32> -> vector<8x128xf32>
    %34 = vector.extract_strided_slice %13 {offsets = [0, 256], sizes = [8, 128], strides = [1, 1]} : vector<8x384xf32> to vector<8x128xf32>
    %35 = vector.extract_strided_slice %15 {offsets = [0, 256], sizes = [8, 128], strides = [1, 1]} : vector<8x384xf32> to vector<8x128xf32>
    %36 = vector.broadcast %1 : vector<1x128xf32> to vector<8x128xf32>
    %37 = arith.addf %35, %36 : vector<8x128xf32>
    %38 = arith.mulf %24, %37 : vector<8x128xf32>
    %39 = arith.addf %34, %38 : vector<8x128xf32>
    %40 = math.tanh %39 : vector<8x128xf32>
    %cst_20 = arith.constant 1.000000e+00 : f32
    %41 = vector.broadcast %cst_20 : f32 to vector<8x128xf32>
    %42 = arith.subf %41, %33 : vector<8x128xf32>
    %43 = arith.mulf %42, %40 : vector<8x128xf32>
    %44 = arith.mulf %33, %9 : vector<8x128xf32>
    %45 = arith.addf %43, %44 : vector<8x128xf32>
    %46 = arith.index_cast %11 : i32 to index
    %c0_21 = arith.constant 0 : index
    %47 = vector.load %arg11[%46, %c0_21] : memref<64x128xf32, #tpu.memory_space<vmem>>, vector<8x128xf32>
    tpu.vector_store %arg11[%46, %c0_21], %45 {strides = array<i32>} : memref<64x128xf32, #tpu.memory_space<vmem>>, vector<8x128xf32>,
    %c1_i32 = arith.constant 1 : i32
    %c8_i32_22 = arith.constant 8 : i32
    %48 = arith.muli %c1_i32, %c8_i32_22 : i32
    %49 = tpu.assume_multiple %48, 8 : i32
    %50 = arith.index_cast %49 : i32 to index
    %c0_23 = arith.constant 0 : index
    %51 = vector.load %arg13[%50, %c0_23] : memref<64x384xf32, #tpu.memory_space<vmem>>, vector<8x384xf32>
    %c0_24 = arith.constant 0 : index
    %c0_25 = arith.constant 0 : index
    %52 = vector.load %arg4[%c0_24, %c0_25] : memref<128x384xf32, #tpu.memory_space<vmem>>, vector<128x384xf32>
    %cst_26 = arith.constant dense<0.000000e+00> : vector<8x384xf32>
    %53 = tpu.matmul %45, %52, %cst_26 {dimension_numbers = #tpu.dot_dimension_numbers<[1], [0], [0], [1], [0, 0, 1, 1], [], []>} : vector<8x128xf32>, vector<128x384xf32>, vector<8x384xf32> -> vector<8x384xf32>
    %54 = vector.extract_strided_slice %51 {offsets = [0, 0], sizes = [8, 128], strides = [1, 1]} : vector<8x384xf32> to vector<8x128xf32>
    %55 = vector.extract_strided_slice %53 {offsets = [0, 0], sizes = [8, 128], strides = [1, 1]} : vector<8x384xf32> to vector<8x128xf32>
    %56 = arith.addf %54, %55 : vector<8x128xf32>
    %cst_27 = arith.constant 0.000000e+00 : f32
    %57 = vector.broadcast %cst_27 : f32 to vector<8x128xf32>
    %58 = arith.subf %57, %56 : vector<8x128xf32>
    %59 = math.exp %58 : vector<8x128xf32>
    %cst_28 = arith.constant 1.000000e+00 : f32
    %60 = vector.broadcast %cst_28 : f32 to vector<8x128xf32>
    %61 = arith.addf %60, %59 : vector<8x128xf32>
    %62 = tpu.reciprocal %61 {approx = true} : vector<8x128xf32> -> vector<8x128xf32>
    %63 = vector.extract_strided_slice %51 {offsets = [0, 128], sizes = [8, 128], strides = [1, 1]} : vector<8x384xf32> to vector<8x128xf32>
    %64 = vector.extract_strided_slice %53 {offsets = [0, 128], sizes = [8, 128], strides = [1, 1]} : vector<8x384xf32> to vector<8x128xf32>
    %65 = arith.addf %63, %64 : vector<8x128xf32>
    %cst_29 = arith.constant 0.000000e+00 : f32
    %66 = vector.broadcast %cst_29 : f32 to vector<8x128xf32>
    %67 = arith.subf %66, %65 : vector<8x128xf32>
    %68 = math.exp %67 : vector<8x128xf32>
    %cst_30 = arith.constant 1.000000e+00 : f32
    %69 = vector.broadcast %cst_30 : f32 to vector<8x128xf32>
    %70 = arith.addf %69, %68 : vector<8x128xf32>
    %71 = tpu.reciprocal %70 {approx = true} : vector<8x128xf32> -> vector<8x128xf32>
    %72 = vector.extract_strided_slice %51 {offsets = [0, 256], sizes = [8, 128], strides = [1, 1]} : vector<8x384xf32> to vector<8x128xf32>
    %73 = vector.extract_strided_slice %53 {offsets = [0, 256], sizes = [8, 128], strides = [1, 1]} : vector<8x384xf32> to vector<8x128xf32>
    %74 = vector.broadcast %1 : vector<1x128xf32> to vector<8x128xf32>
    %75 = arith.addf %73, %74 : vector<8x128xf32>
    %76 = arith.mulf %62, %75 : vector<8x128xf32>
    %77 = arith.addf %72, %76 : vector<8x128xf32>
    %78 = math.tanh %77 : vector<8x128xf32>
    %cst_31 = arith.constant 1.000000e+00 : f32
    %79 = vector.broadcast %cst_31 : f32 to vector<8x128xf32>
    %80 = arith.subf %79, %71 : vector<8x128xf32>
    %81 = arith.mulf %80, %78 : vector<8x128xf32>
    %82 = arith.mulf %71, %45 : vector<8x128xf32>
    %83 = arith.addf %81, %82 : vector<8x128xf32>
    %84 = arith.index_cast %49 : i32 to index
    %c0_32 = arith.constant 0 : index
    %85 = vector.load %arg11[%84, %c0_32] : memref<64x128xf32, #tpu.memory_space<vmem>>, vector<8x128xf32>
    tpu.vector_store %arg11[%84, %c0_32], %83 {strides = array<i32>} : memref<64x128xf32, #tpu.memory_space<vmem>>, vector<8x128xf32>,
    %c2_i32 = arith.constant 2 : i32
    %c8_i32_33 = arith.constant 8 : i32
    %86 = arith.muli %c2_i32, %c8_i32_33 : i32
    %87 = tpu.assume_multiple %86, 8 : i32
    %88 = arith.index_cast %87 : i32 to index
    %c0_34 = arith.constant 0 : index
    %89 = vector.load %arg13[%88, %c0_34] : memref<64x384xf32, #tpu.memory_space<vmem>>, vector<8x384xf32>
    %c0_35 = arith.constant 0 : index
    %c0_36 = arith.constant 0 : index
    %90 = vector.load %arg4[%c0_35, %c0_36] : memref<128x384xf32, #tpu.memory_space<vmem>>, vector<128x384xf32>
    %cst_37 = arith.constant dense<0.000000e+00> : vector<8x384xf32>
    %91 = tpu.matmul %83, %90, %cst_37 {dimension_numbers = #tpu.dot_dimension_numbers<[1], [0], [0], [1], [0, 0, 1, 1], [], []>} : vector<8x128xf32>, vector<128x384xf32>, vector<8x384xf32> -> vector<8x384xf32>
    %92 = vector.extract_strided_slice %89 {offsets = [0, 0], sizes = [8, 128], strides = [1, 1]} : vector<8x384xf32> to vector<8x128xf32>
    %93 = vector.extract_strided_slice %91 {offsets = [0, 0], sizes = [8, 128], strides = [1, 1]} : vector<8x384xf32> to vector<8x128xf32>
    %94 = arith.addf %92, %93 : vector<8x128xf32>
    %cst_38 = arith.constant 0.000000e+00 : f32
    %95 = vector.broadcast %cst_38 : f32 to vector<8x128xf32>
    %96 = arith.subf %95, %94 : vector<8x128xf32>
    %97 = math.exp %96 : vector<8x128xf32>
    %cst_39 = arith.constant 1.000000e+00 : f32
    %98 = vector.broadcast %cst_39 : f32 to vector<8x128xf32>
    %99 = arith.addf %98, %97 : vector<8x128xf32>
    %100 = tpu.reciprocal %99 {approx = true} : vector<8x128xf32> -> vector<8x128xf32>
    %101 = vector.extract_strided_slice %89 {offsets = [0, 128], sizes = [8, 128], strides = [1, 1]} : vector<8x384xf32> to vector<8x128xf32>
    %102 = vector.extract_strided_slice %91 {offsets = [0, 128], sizes = [8, 128], strides = [1, 1]} : vector<8x384xf32> to vector<8x128xf32>
    %103 = arith.addf %101, %102 : vector<8x128xf32>
    %cst_40 = arith.constant 0.000000e+00 : f32
    %104 = vector.broadcast %cst_40 : f32 to vector<8x128xf32>
    %105 = arith.subf %104, %103 : vector<8x128xf32>
    %106 = math.exp %105 : vector<8x128xf32>
    %cst_41 = arith.constant 1.000000e+00 : f32
    %107 = vector.broadcast %cst_41 : f32 to vector<8x128xf32>
    %108 = arith.addf %107, %106 : vector<8x128xf32>
    %109 = tpu.reciprocal %108 {approx = true} : vector<8x128xf32> -> vector<8x128xf32>
    %110 = vector.extract_strided_slice %89 {offsets = [0, 256], sizes = [8, 128], strides = [1, 1]} : vector<8x384xf32> to vector<8x128xf32>
    %111 = vector.extract_strided_slice %91 {offsets = [0, 256], sizes = [8, 128], strides = [1, 1]} : vector<8x384xf32> to vector<8x128xf32>
    %112 = vector.broadcast %1 : vector<1x128xf32> to vector<8x128xf32>
    %113 = arith.addf %111, %112 : vector<8x128xf32>
    %114 = arith.mulf %100, %113 : vector<8x128xf32>
    %115 = arith.addf %110, %114 : vector<8x128xf32>
    %116 = math.tanh %115 : vector<8x128xf32>
    %cst_42 = arith.constant 1.000000e+00 : f32
    %117 = vector.broadcast %cst_42 : f32 to vector<8x128xf32>
    %118 = arith.subf %117, %109 : vector<8x128xf32>
    %119 = arith.mulf %118, %116 : vector<8x128xf32>
    %120 = arith.mulf %109, %83 : vector<8x128xf32>
    %121 = arith.addf %119, %120 : vector<8x128xf32>
    %122 = arith.index_cast %87 : i32 to index
    %c0_43 = arith.constant 0 : index
    %123 = vector.load %arg11[%122, %c0_43] : memref<64x128xf32, #tpu.memory_space<vmem>>, vector<8x128xf32>
    tpu.vector_store %arg11[%122, %c0_43], %121 {strides = array<i32>} : memref<64x128xf32, #tpu.memory_space<vmem>>, vector<8x128xf32>,
    %c3_i32 = arith.constant 3 : i32
    %c8_i32_44 = arith.constant 8 : i32
    %124 = arith.muli %c3_i32, %c8_i32_44 : i32
    %125 = tpu.assume_multiple %124, 8 : i32
    %126 = arith.index_cast %125 : i32 to index
    %c0_45 = arith.constant 0 : index
    %127 = vector.load %arg13[%126, %c0_45] : memref<64x384xf32, #tpu.memory_space<vmem>>, vector<8x384xf32>
    %c0_46 = arith.constant 0 : index
    %c0_47 = arith.constant 0 : index
    %128 = vector.load %arg4[%c0_46, %c0_47] : memref<128x384xf32, #tpu.memory_space<vmem>>, vector<128x384xf32>
    %cst_48 = arith.constant dense<0.000000e+00> : vector<8x384xf32>
    %129 = tpu.matmul %121, %128, %cst_48 {dimension_numbers = #tpu.dot_dimension_numbers<[1], [0], [0], [1], [0, 0, 1, 1], [], []>} : vector<8x128xf32>, vector<128x384xf32>, vector<8x384xf32> -> vector<8x384xf32>
    %130 = vector.extract_strided_slice %127 {offsets = [0, 0], sizes = [8, 128], strides = [1, 1]} : vector<8x384xf32> to vector<8x128xf32>
    %131 = vector.extract_strided_slice %129 {offsets = [0, 0], sizes = [8, 128], strides = [1, 1]} : vector<8x384xf32> to vector<8x128xf32>
    %132 = arith.addf %130, %131 : vector<8x128xf32>
    %cst_49 = arith.constant 0.000000e+00 : f32
    %133 = vector.broadcast %cst_49 : f32 to vector<8x128xf32>
    %134 = arith.subf %133, %132 : vector<8x128xf32>
    %135 = math.exp %134 : vector<8x128xf32>
    %cst_50 = arith.constant 1.000000e+00 : f32
    %136 = vector.broadcast %cst_50 : f32 to vector<8x128xf32>
    %137 = arith.addf %136, %135 : vector<8x128xf32>
    %138 = tpu.reciprocal %137 {approx = true} : vector<8x128xf32> -> vector<8x128xf32>
    %139 = vector.extract_strided_slice %127 {offsets = [0, 128], sizes = [8, 128], strides = [1, 1]} : vector<8x384xf32> to vector<8x128xf32>
    %140 = vector.extract_strided_slice %129 {offsets = [0, 128], sizes = [8, 128], strides = [1, 1]} : vector<8x384xf32> to vector<8x128xf32>
    %141 = arith.addf %139, %140 : vector<8x128xf32>
    %cst_51 = arith.constant 0.000000e+00 : f32
    %142 = vector.broadcast %cst_51 : f32 to vector<8x128xf32>
    %143 = arith.subf %142, %141 : vector<8x128xf32>
    %144 = math.exp %143 : vector<8x128xf32>
    %cst_52 = arith.constant 1.000000e+00 : f32
    %145 = vector.broadcast %cst_52 : f32 to vector<8x128xf32>
    %146 = arith.addf %145, %144 : vector<8x128xf32>
    %147 = tpu.reciprocal %146 {approx = true} : vector<8x128xf32> -> vector<8x128xf32>
    %148 = vector.extract_strided_slice %127 {offsets = [0, 256], sizes = [8, 128], strides = [1, 1]} : vector<8x384xf32> to vector<8x128xf32>
    %149 = vector.extract_strided_slice %129 {offsets = [0, 256], sizes = [8, 128], strides = [1, 1]} : vector<8x384xf32> to vector<8x128xf32>
    %150 = vector.broadcast %1 : vector<1x128xf32> to vector<8x128xf32>
    %151 = arith.addf %149, %150 : vector<8x128xf32>
    %152 = arith.mulf %138, %151 : vector<8x128xf32>
    %153 = arith.addf %148, %152 : vector<8x128xf32>
    %154 = math.tanh %153 : vector<8x128xf32>
    %cst_53 = arith.constant 1.000000e+00 : f32
    %155 = vector.broadcast %cst_53 : f32 to vector<8x128xf32>
    %156 = arith.subf %155, %147 : vector<8x128xf32>
    %157 = arith.mulf %156, %154 : vector<8x128xf32>
    %158 = arith.mulf %147, %121 : vector<8x128xf32>
    %159 = arith.addf %157, %158 : vector<8x128xf32>
    %160 = arith.index_cast %125 : i32 to index
    %c0_54 = arith.constant 0 : index
    %161 = vector.load %arg11[%160, %c0_54] : memref<64x128xf32, #tpu.memory_space<vmem>>, vector<8x128xf32>
    tpu.vector_store %arg11[%160, %c0_54], %159 {strides = array<i32>} : memref<64x128xf32, #tpu.memory_space<vmem>>, vector<8x128xf32>,
    %c4_i32 = arith.constant 4 : i32
    %c8_i32_55 = arith.constant 8 : i32
    %162 = arith.muli %c4_i32, %c8_i32_55 : i32
    %163 = tpu.assume_multiple %162, 8 : i32
    %164 = arith.index_cast %163 : i32 to index
    %c0_56 = arith.constant 0 : index
    %165 = vector.load %arg13[%164, %c0_56] : memref<64x384xf32, #tpu.memory_space<vmem>>, vector<8x384xf32>
    %c0_57 = arith.constant 0 : index
    %c0_58 = arith.constant 0 : index
    %166 = vector.load %arg4[%c0_57, %c0_58] : memref<128x384xf32, #tpu.memory_space<vmem>>, vector<128x384xf32>
    %cst_59 = arith.constant dense<0.000000e+00> : vector<8x384xf32>
    %167 = tpu.matmul %159, %166, %cst_59 {dimension_numbers = #tpu.dot_dimension_numbers<[1], [0], [0], [1], [0, 0, 1, 1], [], []>} : vector<8x128xf32>, vector<128x384xf32>, vector<8x384xf32> -> vector<8x384xf32>
    %168 = vector.extract_strided_slice %165 {offsets = [0, 0], sizes = [8, 128], strides = [1, 1]} : vector<8x384xf32> to vector<8x128xf32>
    %169 = vector.extract_strided_slice %167 {offsets = [0, 0], sizes = [8, 128], strides = [1, 1]} : vector<8x384xf32> to vector<8x128xf32>
    %170 = arith.addf %168, %169 : vector<8x128xf32>
    %cst_60 = arith.constant 0.000000e+00 : f32
    %171 = vector.broadcast %cst_60 : f32 to vector<8x128xf32>
    %172 = arith.subf %171, %170 : vector<8x128xf32>
    %173 = math.exp %172 : vector<8x128xf32>
    %cst_61 = arith.constant 1.000000e+00 : f32
    %174 = vector.broadcast %cst_61 : f32 to vector<8x128xf32>
    %175 = arith.addf %174, %173 : vector<8x128xf32>
    %176 = tpu.reciprocal %175 {approx = true} : vector<8x128xf32> -> vector<8x128xf32>
    %177 = vector.extract_strided_slice %165 {offsets = [0, 128], sizes = [8, 128], strides = [1, 1]} : vector<8x384xf32> to vector<8x128xf32>
    %178 = vector.extract_strided_slice %167 {offsets = [0, 128], sizes = [8, 128], strides = [1, 1]} : vector<8x384xf32> to vector<8x128xf32>
    %179 = arith.addf %177, %178 : vector<8x128xf32>
    %cst_62 = arith.constant 0.000000e+00 : f32
    %180 = vector.broadcast %cst_62 : f32 to vector<8x128xf32>
    %181 = arith.subf %180, %179 : vector<8x128xf32>
    %182 = math.exp %181 : vector<8x128xf32>
    %cst_63 = arith.constant 1.000000e+00 : f32
    %183 = vector.broadcast %cst_63 : f32 to vector<8x128xf32>
    %184 = arith.addf %183, %182 : vector<8x128xf32>
    %185 = tpu.reciprocal %184 {approx = true} : vector<8x128xf32> -> vector<8x128xf32>
    %186 = vector.extract_strided_slice %165 {offsets = [0, 256], sizes = [8, 128], strides = [1, 1]} : vector<8x384xf32> to vector<8x128xf32>
    %187 = vector.extract_strided_slice %167 {offsets = [0, 256], sizes = [8, 128], strides = [1, 1]} : vector<8x384xf32> to vector<8x128xf32>
    %188 = vector.broadcast %1 : vector<1x128xf32> to vector<8x128xf32>
    %189 = arith.addf %187, %188 : vector<8x128xf32>
    %190 = arith.mulf %176, %189 : vector<8x128xf32>
    %191 = arith.addf %186, %190 : vector<8x128xf32>
    %192 = math.tanh %191 : vector<8x128xf32>
    %cst_64 = arith.constant 1.000000e+00 : f32
    %193 = vector.broadcast %cst_64 : f32 to vector<8x128xf32>
    %194 = arith.subf %193, %185 : vector<8x128xf32>
    %195 = arith.mulf %194, %192 : vector<8x128xf32>
    %196 = arith.mulf %185, %159 : vector<8x128xf32>
    %197 = arith.addf %195, %196 : vector<8x128xf32>
    %198 = arith.index_cast %163 : i32 to index
    %c0_65 = arith.constant 0 : index
    %199 = vector.load %arg11[%198, %c0_65] : memref<64x128xf32, #tpu.memory_space<vmem>>, vector<8x128xf32>
    tpu.vector_store %arg11[%198, %c0_65], %197 {strides = array<i32>} : memref<64x128xf32, #tpu.memory_space<vmem>>, vector<8x128xf32>,
    %c5_i32 = arith.constant 5 : i32
    %c8_i32_66 = arith.constant 8 : i32
    %200 = arith.muli %c5_i32, %c8_i32_66 : i32
    %201 = tpu.assume_multiple %200, 8 : i32
    %202 = arith.index_cast %201 : i32 to index
    %c0_67 = arith.constant 0 : index
    %203 = vector.load %arg13[%202, %c0_67] : memref<64x384xf32, #tpu.memory_space<vmem>>, vector<8x384xf32>
    %c0_68 = arith.constant 0 : index
    %c0_69 = arith.constant 0 : index
    %204 = vector.load %arg4[%c0_68, %c0_69] : memref<128x384xf32, #tpu.memory_space<vmem>>, vector<128x384xf32>
    %cst_70 = arith.constant dense<0.000000e+00> : vector<8x384xf32>
    %205 = tpu.matmul %197, %204, %cst_70 {dimension_numbers = #tpu.dot_dimension_numbers<[1], [0], [0], [1], [0, 0, 1, 1], [], []>} : vector<8x128xf32>, vector<128x384xf32>, vector<8x384xf32> -> vector<8x384xf32>
    %206 = vector.extract_strided_slice %203 {offsets = [0, 0], sizes = [8, 128], strides = [1, 1]} : vector<8x384xf32> to vector<8x128xf32>
    %207 = vector.extract_strided_slice %205 {offsets = [0, 0], sizes = [8, 128], strides = [1, 1]} : vector<8x384xf32> to vector<8x128xf32>
    %208 = arith.addf %206, %207 : vector<8x128xf32>
    %cst_71 = arith.constant 0.000000e+00 : f32
    %209 = vector.broadcast %cst_71 : f32 to vector<8x128xf32>
    %210 = arith.subf %209, %208 : vector<8x128xf32>
    %211 = math.exp %210 : vector<8x128xf32>
    %cst_72 = arith.constant 1.000000e+00 : f32
    %212 = vector.broadcast %cst_72 : f32 to vector<8x128xf32>
    %213 = arith.addf %212, %211 : vector<8x128xf32>
    %214 = tpu.reciprocal %213 {approx = true} : vector<8x128xf32> -> vector<8x128xf32>
    %215 = vector.extract_strided_slice %203 {offsets = [0, 128], sizes = [8, 128], strides = [1, 1]} : vector<8x384xf32> to vector<8x128xf32>
    %216 = vector.extract_strided_slice %205 {offsets = [0, 128], sizes = [8, 128], strides = [1, 1]} : vector<8x384xf32> to vector<8x128xf32>
    %217 = arith.addf %215, %216 : vector<8x128xf32>
    %cst_73 = arith.constant 0.000000e+00 : f32
    %218 = vector.broadcast %cst_73 : f32 to vector<8x128xf32>
    %219 = arith.subf %218, %217 : vector<8x128xf32>
    %220 = math.exp %219 : vector<8x128xf32>
    %cst_74 = arith.constant 1.000000e+00 : f32
    %221 = vector.broadcast %cst_74 : f32 to vector<8x128xf32>
    %222 = arith.addf %221, %220 : vector<8x128xf32>
    %223 = tpu.reciprocal %222 {approx = true} : vector<8x128xf32> -> vector<8x128xf32>
    %224 = vector.extract_strided_slice %203 {offsets = [0, 256], sizes = [8, 128], strides = [1, 1]} : vector<8x384xf32> to vector<8x128xf32>
    %225 = vector.extract_strided_slice %205 {offsets = [0, 256], sizes = [8, 128], strides = [1, 1]} : vector<8x384xf32> to vector<8x128xf32>
    %226 = vector.broadcast %1 : vector<1x128xf32> to vector<8x128xf32>
    %227 = arith.addf %225, %226 : vector<8x128xf32>
    %228 = arith.mulf %214, %227 : vector<8x128xf32>
    %229 = arith.addf %224, %228 : vector<8x128xf32>
    %230 = math.tanh %229 : vector<8x128xf32>
    %cst_75 = arith.constant 1.000000e+00 : f32
    %231 = vector.broadcast %cst_75 : f32 to vector<8x128xf32>
    %232 = arith.subf %231, %223 : vector<8x128xf32>
    %233 = arith.mulf %232, %230 : vector<8x128xf32>
    %234 = arith.mulf %223, %197 : vector<8x128xf32>
    %235 = arith.addf %233, %234 : vector<8x128xf32>
    %236 = arith.index_cast %201 : i32 to index
    %c0_76 = arith.constant 0 : index
    %237 = vector.load %arg11[%236, %c0_76] : memref<64x128xf32, #tpu.memory_space<vmem>>, vector<8x128xf32>
    tpu.vector_store %arg11[%236, %c0_76], %235 {strides = array<i32>} : memref<64x128xf32, #tpu.memory_space<vmem>>, vector<8x128xf32>,
    %c6_i32 = arith.constant 6 : i32
    %c8_i32_77 = arith.constant 8 : i32
    %238 = arith.muli %c6_i32, %c8_i32_77 : i32
    %239 = tpu.assume_multiple %238, 8 : i32
    %240 = arith.index_cast %239 : i32 to index
    %c0_78 = arith.constant 0 : index
    %241 = vector.load %arg13[%240, %c0_78] : memref<64x384xf32, #tpu.memory_space<vmem>>, vector<8x384xf32>
    %c0_79 = arith.constant 0 : index
    %c0_80 = arith.constant 0 : index
    %242 = vector.load %arg4[%c0_79, %c0_80] : memref<128x384xf32, #tpu.memory_space<vmem>>, vector<128x384xf32>
    %cst_81 = arith.constant dense<0.000000e+00> : vector<8x384xf32>
    %243 = tpu.matmul %235, %242, %cst_81 {dimension_numbers = #tpu.dot_dimension_numbers<[1], [0], [0], [1], [0, 0, 1, 1], [], []>} : vector<8x128xf32>, vector<128x384xf32>, vector<8x384xf32> -> vector<8x384xf32>
    %244 = vector.extract_strided_slice %241 {offsets = [0, 0], sizes = [8, 128], strides = [1, 1]} : vector<8x384xf32> to vector<8x128xf32>
    %245 = vector.extract_strided_slice %243 {offsets = [0, 0], sizes = [8, 128], strides = [1, 1]} : vector<8x384xf32> to vector<8x128xf32>
    %246 = arith.addf %244, %245 : vector<8x128xf32>
    %cst_82 = arith.constant 0.000000e+00 : f32
    %247 = vector.broadcast %cst_82 : f32 to vector<8x128xf32>
    %248 = arith.subf %247, %246 : vector<8x128xf32>
    %249 = math.exp %248 : vector<8x128xf32>
    %cst_83 = arith.constant 1.000000e+00 : f32
    %250 = vector.broadcast %cst_83 : f32 to vector<8x128xf32>
    %251 = arith.addf %250, %249 : vector<8x128xf32>
    %252 = tpu.reciprocal %251 {approx = true} : vector<8x128xf32> -> vector<8x128xf32>
    %253 = vector.extract_strided_slice %241 {offsets = [0, 128], sizes = [8, 128], strides = [1, 1]} : vector<8x384xf32> to vector<8x128xf32>
    %254 = vector.extract_strided_slice %243 {offsets = [0, 128], sizes = [8, 128], strides = [1, 1]} : vector<8x384xf32> to vector<8x128xf32>
    %255 = arith.addf %253, %254 : vector<8x128xf32>
    %cst_84 = arith.constant 0.000000e+00 : f32
    %256 = vector.broadcast %cst_84 : f32 to vector<8x128xf32>
    %257 = arith.subf %256, %255 : vector<8x128xf32>
    %258 = math.exp %257 : vector<8x128xf32>
    %cst_85 = arith.constant 1.000000e+00 : f32
    %259 = vector.broadcast %cst_85 : f32 to vector<8x128xf32>
    %260 = arith.addf %259, %258 : vector<8x128xf32>
    %261 = tpu.reciprocal %260 {approx = true} : vector<8x128xf32> -> vector<8x128xf32>
    %262 = vector.extract_strided_slice %241 {offsets = [0, 256], sizes = [8, 128], strides = [1, 1]} : vector<8x384xf32> to vector<8x128xf32>
    %263 = vector.extract_strided_slice %243 {offsets = [0, 256], sizes = [8, 128], strides = [1, 1]} : vector<8x384xf32> to vector<8x128xf32>
    %264 = vector.broadcast %1 : vector<1x128xf32> to vector<8x128xf32>
    %265 = arith.addf %263, %264 : vector<8x128xf32>
    %266 = arith.mulf %252, %265 : vector<8x128xf32>
    %267 = arith.addf %262, %266 : vector<8x128xf32>
    %268 = math.tanh %267 : vector<8x128xf32>
    %cst_86 = arith.constant 1.000000e+00 : f32
    %269 = vector.broadcast %cst_86 : f32 to vector<8x128xf32>
    %270 = arith.subf %269, %261 : vector<8x128xf32>
    %271 = arith.mulf %270, %268 : vector<8x128xf32>
    %272 = arith.mulf %261, %235 : vector<8x128xf32>
    %273 = arith.addf %271, %272 : vector<8x128xf32>
    %274 = arith.index_cast %239 : i32 to index
    %c0_87 = arith.constant 0 : index
    %275 = vector.load %arg11[%274, %c0_87] : memref<64x128xf32, #tpu.memory_space<vmem>>, vector<8x128xf32>
    tpu.vector_store %arg11[%274, %c0_87], %273 {strides = array<i32>} : memref<64x128xf32, #tpu.memory_space<vmem>>, vector<8x128xf32>,
    %c7_i32 = arith.constant 7 : i32
    %c8_i32_88 = arith.constant 8 : i32
    %276 = arith.muli %c7_i32, %c8_i32_88 : i32
    %277 = tpu.assume_multiple %276, 8 : i32
    %278 = arith.index_cast %277 : i32 to index
    %c0_89 = arith.constant 0 : index
    %279 = vector.load %arg13[%278, %c0_89] : memref<64x384xf32, #tpu.memory_space<vmem>>, vector<8x384xf32>
    %c0_90 = arith.constant 0 : index
    %c0_91 = arith.constant 0 : index
    %280 = vector.load %arg4[%c0_90, %c0_91] : memref<128x384xf32, #tpu.memory_space<vmem>>, vector<128x384xf32>
    %cst_92 = arith.constant dense<0.000000e+00> : vector<8x384xf32>
    %281 = tpu.matmul %273, %280, %cst_92 {dimension_numbers = #tpu.dot_dimension_numbers<[1], [0], [0], [1], [0, 0, 1, 1], [], []>} : vector<8x128xf32>, vector<128x384xf32>, vector<8x384xf32> -> vector<8x384xf32>
    %282 = vector.extract_strided_slice %279 {offsets = [0, 0], sizes = [8, 128], strides = [1, 1]} : vector<8x384xf32> to vector<8x128xf32>
    %283 = vector.extract_strided_slice %281 {offsets = [0, 0], sizes = [8, 128], strides = [1, 1]} : vector<8x384xf32> to vector<8x128xf32>
    %284 = arith.addf %282, %283 : vector<8x128xf32>
    %cst_93 = arith.constant 0.000000e+00 : f32
    %285 = vector.broadcast %cst_93 : f32 to vector<8x128xf32>
    %286 = arith.subf %285, %284 : vector<8x128xf32>
    %287 = math.exp %286 : vector<8x128xf32>
    %cst_94 = arith.constant 1.000000e+00 : f32
    %288 = vector.broadcast %cst_94 : f32 to vector<8x128xf32>
    %289 = arith.addf %288, %287 : vector<8x128xf32>
    %290 = tpu.reciprocal %289 {approx = true} : vector<8x128xf32> -> vector<8x128xf32>
    %291 = vector.extract_strided_slice %279 {offsets = [0, 128], sizes = [8, 128], strides = [1, 1]} : vector<8x384xf32> to vector<8x128xf32>
    %292 = vector.extract_strided_slice %281 {offsets = [0, 128], sizes = [8, 128], strides = [1, 1]} : vector<8x384xf32> to vector<8x128xf32>
    %293 = arith.addf %291, %292 : vector<8x128xf32>
    %cst_95 = arith.constant 0.000000e+00 : f32
    %294 = vector.broadcast %cst_95 : f32 to vector<8x128xf32>
    %295 = arith.subf %294, %293 : vector<8x128xf32>
    %296 = math.exp %295 : vector<8x128xf32>
    %cst_96 = arith.constant 1.000000e+00 : f32
    %297 = vector.broadcast %cst_96 : f32 to vector<8x128xf32>
    %298 = arith.addf %297, %296 : vector<8x128xf32>
    %299 = tpu.reciprocal %298 {approx = true} : vector<8x128xf32> -> vector<8x128xf32>
    %300 = vector.extract_strided_slice %279 {offsets = [0, 256], sizes = [8, 128], strides = [1, 1]} : vector<8x384xf32> to vector<8x128xf32>
    %301 = vector.extract_strided_slice %281 {offsets = [0, 256], sizes = [8, 128], strides = [1, 1]} : vector<8x384xf32> to vector<8x128xf32>
    %302 = vector.broadcast %1 : vector<1x128xf32> to vector<8x128xf32>
    %303 = arith.addf %301, %302 : vector<8x128xf32>
    %304 = arith.mulf %290, %303 : vector<8x128xf32>
    %305 = arith.addf %300, %304 : vector<8x128xf32>
    %306 = math.tanh %305 : vector<8x128xf32>
    %cst_97 = arith.constant 1.000000e+00 : f32
    %307 = vector.broadcast %cst_97 : f32 to vector<8x128xf32>
    %308 = arith.subf %307, %299 : vector<8x128xf32>
    %309 = arith.mulf %308, %306 : vector<8x128xf32>
    %310 = arith.mulf %299, %273 : vector<8x128xf32>
    %311 = arith.addf %309, %310 : vector<8x128xf32>
    %312 = arith.index_cast %277 : i32 to index
    %c0_98 = arith.constant 0 : index
    %313 = vector.load %arg11[%312, %c0_98] : memref<64x128xf32, #tpu.memory_space<vmem>>, vector<8x128xf32>
    tpu.vector_store %arg11[%312, %c0_98], %311 {strides = array<i32>} : memref<64x128xf32, #tpu.memory_space<vmem>>, vector<8x128xf32>,
    %c8_i32_99 = arith.constant 8 : i32
    %c0_100 = arith.constant 0 : index
    %c0_101 = arith.constant 0 : index
    %c0_102 = arith.constant 0 : index
    %314 = vector.load %arg12[%c0_100, %c0_101, %c0_102] : memref<2x8x128xf32, #tpu.memory_space<vmem>>, vector<1x8x128xf32>
    %315 = vector.shape_cast %314 : vector<1x8x128xf32> to vector<8x128xf32>
    %316 = vector.shape_cast %311 : vector<8x128xf32> to vector<1x8x128xf32>
    tpu.vector_store %arg12[%c0_100, %c0_101, %c0_102], %316 {strides = array<i32>} : memref<2x8x128xf32, #tpu.memory_space<vmem>>, vector<1x8x128xf32>,
    %c0_103 = arith.constant 0 : index
    %c0_104 = arith.constant 0 : index
    %317 = vector.load %arg9[%c0_103, %c0_104] : memref<1x384xf32, #tpu.memory_space<vmem>>, vector<1x384xf32>
    %c0_105 = arith.constant 0 : index
    %c0_106 = arith.constant 0 : index
    %318 = vector.load %arg10[%c0_105, %c0_106] : memref<1x128xf32, #tpu.memory_space<vmem>>, vector<1x128xf32>
    %c0_107 = arith.constant 0 : index
    %c0_108 = arith.constant 0 : index
    %319 = vector.load %arg11[%c0_107, %c0_108] : memref<64x128xf32, #tpu.memory_space<vmem>>, vector<64x128xf32>
    %c0_109 = arith.constant 0 : index
    %c0_110 = arith.constant 0 : index
    %320 = vector.load %arg7[%c0_109, %c0_110] : memref<128x384xf32, #tpu.memory_space<vmem>>, vector<128x384xf32>
    %cst_111 = arith.constant dense<0.000000e+00> : vector<64x384xf32>
    %321 = tpu.matmul %319, %320, %cst_111 {dimension_numbers = #tpu.dot_dimension_numbers<[1], [0], [0], [1], [0, 0, 1, 1], [], []>} : vector<64x128xf32>, vector<128x384xf32>, vector<64x384xf32> -> vector<64x384xf32>
    %322 = vector.broadcast %317 : vector<1x384xf32> to vector<64x384xf32>
    %323 = arith.addf %321, %322 : vector<64x384xf32>
    %c0_112 = arith.constant 0 : index
    %c0_113 = arith.constant 0 : index
    %324 = vector.load %arg13[%c0_112, %c0_113] : memref<64x384xf32, #tpu.memory_space<vmem>>, vector<64x384xf32>
    tpu.vector_store %arg13[%c0_112, %c0_113], %323 {strides = array<i32>} : memref<64x384xf32, #tpu.memory_space<vmem>>, vector<64x384xf32>,
    %c1 = arith.constant 1 : index
    %c0_114 = arith.constant 0 : index
    %c0_115 = arith.constant 0 : index
    %325 = vector.load %arg2[%c1, %c0_114, %c0_115] : memref<2x8x128xf32, #tpu.memory_space<vmem>>, vector<1x8x128xf32>
    %326 = vector.shape_cast %325 : vector<1x8x128xf32> to vector<8x128xf32>
    %c0_i32_116 = arith.constant 0 : i32
    %c8_i32_117 = arith.constant 8 : i32
    %327 = arith.muli %c0_i32_116, %c8_i32_117 : i32
    %328 = tpu.assume_multiple %327, 8 : i32
    %329 = arith.index_cast %328 : i32 to index
    %c0_118 = arith.constant 0 : index
    %330 = vector.load %arg13[%329, %c0_118] : memref<64x384xf32, #tpu.memory_space<vmem>>, vector<8x384xf32>
    %c0_119 = arith.constant 0 : index
    %c0_120 = arith.constant 0 : index
    %331 = vector.load %arg8[%c0_119, %c0_120] : memref<128x384xf32, #tpu.memory_space<vmem>>, vector<128x384xf32>
    %cst_121 = arith.constant dense<0.000000e+00> : vector<8x384xf32>
    %332 = tpu.matmul %326, %331, %cst_121 {dimension_numbers = #tpu.dot_dimension_numbers<[1], [0], [0], [1], [0, 0, 1, 1], [], []>} : vector<8x128xf32>, vector<128x384xf32>, vector<8x384xf32> -> vector<8x384xf32>
    %333 = vector.extract_strided_slice %330 {offsets = [0, 0], sizes = [8, 128], strides = [1, 1]} : vector<8x384xf32> to vector<8x128xf32>
    %334 = vector.extract_strided_slice %332 {offsets = [0, 0], sizes = [8, 128], strides = [1, 1]} : vector<8x384xf32> to vector<8x128xf32>
    %335 = arith.addf %333, %334 : vector<8x128xf32>
    %cst_122 = arith.constant 0.000000e+00 : f32
    %336 = vector.broadcast %cst_122 : f32 to vector<8x128xf32>
    %337 = arith.subf %336, %335 : vector<8x128xf32>
    %338 = math.exp %337 : vector<8x128xf32>
    %cst_123 = arith.constant 1.000000e+00 : f32
    %339 = vector.broadcast %cst_123 : f32 to vector<8x128xf32>
    %340 = arith.addf %339, %338 : vector<8x128xf32>
    %341 = tpu.reciprocal %340 {approx = true} : vector<8x128xf32> -> vector<8x128xf32>
    %342 = vector.extract_strided_slice %330 {offsets = [0, 128], sizes = [8, 128], strides = [1, 1]} : vector<8x384xf32> to vector<8x128xf32>
    %343 = vector.extract_strided_slice %332 {offsets = [0, 128], sizes = [8, 128], strides = [1, 1]} : vector<8x384xf32> to vector<8x128xf32>
    %344 = arith.addf %342, %343 : vector<8x128xf32>
    %cst_124 = arith.constant 0.000000e+00 : f32
    %345 = vector.broadcast %cst_124 : f32 to vector<8x128xf32>
    %346 = arith.subf %345, %344 : vector<8x128xf32>
    %347 = math.exp %346 : vector<8x128xf32>
    %cst_125 = arith.constant 1.000000e+00 : f32
    %348 = vector.broadcast %cst_125 : f32 to vector<8x128xf32>
    %349 = arith.addf %348, %347 : vector<8x128xf32>
    %350 = tpu.reciprocal %349 {approx = true} : vector<8x128xf32> -> vector<8x128xf32>
    %351 = vector.extract_strided_slice %330 {offsets = [0, 256], sizes = [8, 128], strides = [1, 1]} : vector<8x384xf32> to vector<8x128xf32>
    %352 = vector.extract_strided_slice %332 {offsets = [0, 256], sizes = [8, 128], strides = [1, 1]} : vector<8x384xf32> to vector<8x128xf32>
    %353 = vector.broadcast %318 : vector<1x128xf32> to vector<8x128xf32>
    %354 = arith.addf %352, %353 : vector<8x128xf32>
    %355 = arith.mulf %341, %354 : vector<8x128xf32>
    %356 = arith.addf %351, %355 : vector<8x128xf32>
    %357 = math.tanh %356 : vector<8x128xf32>
    %cst_126 = arith.constant 1.000000e+00 : f32
    %358 = vector.broadcast %cst_126 : f32 to vector<8x128xf32>
    %359 = arith.subf %358, %350 : vector<8x128xf32>
    %360 = arith.mulf %359, %357 : vector<8x128xf32>
    %361 = arith.mulf %350, %326 : vector<8x128xf32>
    %362 = arith.addf %360, %361 : vector<8x128xf32>
    %363 = arith.index_cast %328 : i32 to index
    %c0_127 = arith.constant 0 : index
    %364 = vector.load %arg11[%363, %c0_127] : memref<64x128xf32, #tpu.memory_space<vmem>>, vector<8x128xf32>
    tpu.vector_store %arg11[%363, %c0_127], %362 {strides = array<i32>} : memref<64x128xf32, #tpu.memory_space<vmem>>, vector<8x128xf32>,
    %c1_i32_128 = arith.constant 1 : i32
    %c8_i32_129 = arith.constant 8 : i32
    %365 = arith.muli %c1_i32_128, %c8_i32_129 : i32
    %366 = tpu.assume_multiple %365, 8 : i32
    %367 = arith.index_cast %366 : i32 to index
    %c0_130 = arith.constant 0 : index
    %368 = vector.load %arg13[%367, %c0_130] : memref<64x384xf32, #tpu.memory_space<vmem>>, vector<8x384xf32>
    %c0_131 = arith.constant 0 : index
    %c0_132 = arith.constant 0 : index
    %369 = vector.load %arg8[%c0_131, %c0_132] : memref<128x384xf32, #tpu.memory_space<vmem>>, vector<128x384xf32>
    %cst_133 = arith.constant dense<0.000000e+00> : vector<8x384xf32>
    %370 = tpu.matmul %362, %369, %cst_133 {dimension_numbers = #tpu.dot_dimension_numbers<[1], [0], [0], [1], [0, 0, 1, 1], [], []>} : vector<8x128xf32>, vector<128x384xf32>, vector<8x384xf32> -> vector<8x384xf32>
    %371 = vector.extract_strided_slice %368 {offsets = [0, 0], sizes = [8, 128], strides = [1, 1]} : vector<8x384xf32> to vector<8x128xf32>
    %372 = vector.extract_strided_slice %370 {offsets = [0, 0], sizes = [8, 128], strides = [1, 1]} : vector<8x384xf32> to vector<8x128xf32>
    %373 = arith.addf %371, %372 : vector<8x128xf32>
    %cst_134 = arith.constant 0.000000e+00 : f32
    %374 = vector.broadcast %cst_134 : f32 to vector<8x128xf32>
    %375 = arith.subf %374, %373 : vector<8x128xf32>
    %376 = math.exp %375 : vector<8x128xf32>
    %cst_135 = arith.constant 1.000000e+00 : f32
    %377 = vector.broadcast %cst_135 : f32 to vector<8x128xf32>
    %378 = arith.addf %377, %376 : vector<8x128xf32>
    %379 = tpu.reciprocal %378 {approx = true} : vector<8x128xf32> -> vector<8x128xf32>
    %380 = vector.extract_strided_slice %368 {offsets = [0, 128], sizes = [8, 128], strides = [1, 1]} : vector<8x384xf32> to vector<8x128xf32>
    %381 = vector.extract_strided_slice %370 {offsets = [0, 128], sizes = [8, 128], strides = [1, 1]} : vector<8x384xf32> to vector<8x128xf32>
    %382 = arith.addf %380, %381 : vector<8x128xf32>
    %cst_136 = arith.constant 0.000000e+00 : f32
    %383 = vector.broadcast %cst_136 : f32 to vector<8x128xf32>
    %384 = arith.subf %383, %382 : vector<8x128xf32>
    %385 = math.exp %384 : vector<8x128xf32>
    %cst_137 = arith.constant 1.000000e+00 : f32
    %386 = vector.broadcast %cst_137 : f32 to vector<8x128xf32>
    %387 = arith.addf %386, %385 : vector<8x128xf32>
    %388 = tpu.reciprocal %387 {approx = true} : vector<8x128xf32> -> vector<8x128xf32>
    %389 = vector.extract_strided_slice %368 {offsets = [0, 256], sizes = [8, 128], strides = [1, 1]} : vector<8x384xf32> to vector<8x128xf32>
    %390 = vector.extract_strided_slice %370 {offsets = [0, 256], sizes = [8, 128], strides = [1, 1]} : vector<8x384xf32> to vector<8x128xf32>
    %391 = vector.broadcast %318 : vector<1x128xf32> to vector<8x128xf32>
    %392 = arith.addf %390, %391 : vector<8x128xf32>
    %393 = arith.mulf %379, %392 : vector<8x128xf32>
    %394 = arith.addf %389, %393 : vector<8x128xf32>
    %395 = math.tanh %394 : vector<8x128xf32>
    %cst_138 = arith.constant 1.000000e+00 : f32
    %396 = vector.broadcast %cst_138 : f32 to vector<8x128xf32>
    %397 = arith.subf %396, %388 : vector<8x128xf32>
    %398 = arith.mulf %397, %395 : vector<8x128xf32>
    %399 = arith.mulf %388, %362 : vector<8x128xf32>
    %400 = arith.addf %398, %399 : vector<8x128xf32>
    %401 = arith.index_cast %366 : i32 to index
    %c0_139 = arith.constant 0 : index
    %402 = vector.load %arg11[%401, %c0_139] : memref<64x128xf32, #tpu.memory_space<vmem>>, vector<8x128xf32>
    tpu.vector_store %arg11[%401, %c0_139], %400 {strides = array<i32>} : memref<64x128xf32, #tpu.memory_space<vmem>>, vector<8x128xf32>,
    %c2_i32_140 = arith.constant 2 : i32
    %c8_i32_141 = arith.constant 8 : i32
    %403 = arith.muli %c2_i32_140, %c8_i32_141 : i32
    %404 = tpu.assume_multiple %403, 8 : i32
    %405 = arith.index_cast %404 : i32 to index
    %c0_142 = arith.constant 0 : index
    %406 = vector.load %arg13[%405, %c0_142] : memref<64x384xf32, #tpu.memory_space<vmem>>, vector<8x384xf32>
    %c0_143 = arith.constant 0 : index
    %c0_144 = arith.constant 0 : index
    %407 = vector.load %arg8[%c0_143, %c0_144] : memref<128x384xf32, #tpu.memory_space<vmem>>, vector<128x384xf32>
    %cst_145 = arith.constant dense<0.000000e+00> : vector<8x384xf32>
    %408 = tpu.matmul %400, %407, %cst_145 {dimension_numbers = #tpu.dot_dimension_numbers<[1], [0], [0], [1], [0, 0, 1, 1], [], []>} : vector<8x128xf32>, vector<128x384xf32>, vector<8x384xf32> -> vector<8x384xf32>
    %409 = vector.extract_strided_slice %406 {offsets = [0, 0], sizes = [8, 128], strides = [1, 1]} : vector<8x384xf32> to vector<8x128xf32>
    %410 = vector.extract_strided_slice %408 {offsets = [0, 0], sizes = [8, 128], strides = [1, 1]} : vector<8x384xf32> to vector<8x128xf32>
    %411 = arith.addf %409, %410 : vector<8x128xf32>
    %cst_146 = arith.constant 0.000000e+00 : f32
    %412 = vector.broadcast %cst_146 : f32 to vector<8x128xf32>
    %413 = arith.subf %412, %411 : vector<8x128xf32>
    %414 = math.exp %413 : vector<8x128xf32>
    %cst_147 = arith.constant 1.000000e+00 : f32
    %415 = vector.broadcast %cst_147 : f32 to vector<8x128xf32>
    %416 = arith.addf %415, %414 : vector<8x128xf32>
    %417 = tpu.reciprocal %416 {approx = true} : vector<8x128xf32> -> vector<8x128xf32>
    %418 = vector.extract_strided_slice %406 {offsets = [0, 128], sizes = [8, 128], strides = [1, 1]} : vector<8x384xf32> to vector<8x128xf32>
    %419 = vector.extract_strided_slice %408 {offsets = [0, 128], sizes = [8, 128], strides = [1, 1]} : vector<8x384xf32> to vector<8x128xf32>
    %420 = arith.addf %418, %419 : vector<8x128xf32>
    %cst_148 = arith.constant 0.000000e+00 : f32
    %421 = vector.broadcast %cst_148 : f32 to vector<8x128xf32>
    %422 = arith.subf %421, %420 : vector<8x128xf32>
    %423 = math.exp %422 : vector<8x128xf32>
    %cst_149 = arith.constant 1.000000e+00 : f32
    %424 = vector.broadcast %cst_149 : f32 to vector<8x128xf32>
    %425 = arith.addf %424, %423 : vector<8x128xf32>
    %426 = tpu.reciprocal %425 {approx = true} : vector<8x128xf32> -> vector<8x128xf32>
    %427 = vector.extract_strided_slice %406 {offsets = [0, 256], sizes = [8, 128], strides = [1, 1]} : vector<8x384xf32> to vector<8x128xf32>
    %428 = vector.extract_strided_slice %408 {offsets = [0, 256], sizes = [8, 128], strides = [1, 1]} : vector<8x384xf32> to vector<8x128xf32>
    %429 = vector.broadcast %318 : vector<1x128xf32> to vector<8x128xf32>
    %430 = arith.addf %428, %429 : vector<8x128xf32>
    %431 = arith.mulf %417, %430 : vector<8x128xf32>
    %432 = arith.addf %427, %431 : vector<8x128xf32>
    %433 = math.tanh %432 : vector<8x128xf32>
    %cst_150 = arith.constant 1.000000e+00 : f32
    %434 = vector.broadcast %cst_150 : f32 to vector<8x128xf32>
    %435 = arith.subf %434, %426 : vector<8x128xf32>
    %436 = arith.mulf %435, %433 : vector<8x128xf32>
    %437 = arith.mulf %426, %400 : vector<8x128xf32>
    %438 = arith.addf %436, %437 : vector<8x128xf32>
    %439 = arith.index_cast %404 : i32 to index
    %c0_151 = arith.constant 0 : index
    %440 = vector.load %arg11[%439, %c0_151] : memref<64x128xf32, #tpu.memory_space<vmem>>, vector<8x128xf32>
    tpu.vector_store %arg11[%439, %c0_151], %438 {strides = array<i32>} : memref<64x128xf32, #tpu.memory_space<vmem>>, vector<8x128xf32>,
    %c3_i32_152 = arith.constant 3 : i32
    %c8_i32_153 = arith.constant 8 : i32
    %441 = arith.muli %c3_i32_152, %c8_i32_153 : i32
    %442 = tpu.assume_multiple %441, 8 : i32
    %443 = arith.index_cast %442 : i32 to index
    %c0_154 = arith.constant 0 : index
    %444 = vector.load %arg13[%443, %c0_154] : memref<64x384xf32, #tpu.memory_space<vmem>>, vector<8x384xf32>
    %c0_155 = arith.constant 0 : index
    %c0_156 = arith.constant 0 : index
    %445 = vector.load %arg8[%c0_155, %c0_156] : memref<128x384xf32, #tpu.memory_space<vmem>>, vector<128x384xf32>
    %cst_157 = arith.constant dense<0.000000e+00> : vector<8x384xf32>
    %446 = tpu.matmul %438, %445, %cst_157 {dimension_numbers = #tpu.dot_dimension_numbers<[1], [0], [0], [1], [0, 0, 1, 1], [], []>} : vector<8x128xf32>, vector<128x384xf32>, vector<8x384xf32> -> vector<8x384xf32>
    %447 = vector.extract_strided_slice %444 {offsets = [0, 0], sizes = [8, 128], strides = [1, 1]} : vector<8x384xf32> to vector<8x128xf32>
    %448 = vector.extract_strided_slice %446 {offsets = [0, 0], sizes = [8, 128], strides = [1, 1]} : vector<8x384xf32> to vector<8x128xf32>
    %449 = arith.addf %447, %448 : vector<8x128xf32>
    %cst_158 = arith.constant 0.000000e+00 : f32
    %450 = vector.broadcast %cst_158 : f32 to vector<8x128xf32>
    %451 = arith.subf %450, %449 : vector<8x128xf32>
    %452 = math.exp %451 : vector<8x128xf32>
    %cst_159 = arith.constant 1.000000e+00 : f32
    %453 = vector.broadcast %cst_159 : f32 to vector<8x128xf32>
    %454 = arith.addf %453, %452 : vector<8x128xf32>
    %455 = tpu.reciprocal %454 {approx = true} : vector<8x128xf32> -> vector<8x128xf32>
    %456 = vector.extract_strided_slice %444 {offsets = [0, 128], sizes = [8, 128], strides = [1, 1]} : vector<8x384xf32> to vector<8x128xf32>
    %457 = vector.extract_strided_slice %446 {offsets = [0, 128], sizes = [8, 128], strides = [1, 1]} : vector<8x384xf32> to vector<8x128xf32>
    %458 = arith.addf %456, %457 : vector<8x128xf32>
    %cst_160 = arith.constant 0.000000e+00 : f32
    %459 = vector.broadcast %cst_160 : f32 to vector<8x128xf32>
    %460 = arith.subf %459, %458 : vector<8x128xf32>
    %461 = math.exp %460 : vector<8x128xf32>
    %cst_161 = arith.constant 1.000000e+00 : f32
    %462 = vector.broadcast %cst_161 : f32 to vector<8x128xf32>
    %463 = arith.addf %462, %461 : vector<8x128xf32>
    %464 = tpu.reciprocal %463 {approx = true} : vector<8x128xf32> -> vector<8x128xf32>
    %465 = vector.extract_strided_slice %444 {offsets = [0, 256], sizes = [8, 128], strides = [1, 1]} : vector<8x384xf32> to vector<8x128xf32>
    %466 = vector.extract_strided_slice %446 {offsets = [0, 256], sizes = [8, 128], strides = [1, 1]} : vector<8x384xf32> to vector<8x128xf32>
    %467 = vector.broadcast %318 : vector<1x128xf32> to vector<8x128xf32>
    %468 = arith.addf %466, %467 : vector<8x128xf32>
    %469 = arith.mulf %455, %468 : vector<8x128xf32>
    %470 = arith.addf %465, %469 : vector<8x128xf32>
    %471 = math.tanh %470 : vector<8x128xf32>
    %cst_162 = arith.constant 1.000000e+00 : f32
    %472 = vector.broadcast %cst_162 : f32 to vector<8x128xf32>
    %473 = arith.subf %472, %464 : vector<8x128xf32>
    %474 = arith.mulf %473, %471 : vector<8x128xf32>
    %475 = arith.mulf %464, %438 : vector<8x128xf32>
    %476 = arith.addf %474, %475 : vector<8x128xf32>
    %477 = arith.index_cast %442 : i32 to index
    %c0_163 = arith.constant 0 : index
    %478 = vector.load %arg11[%477, %c0_163] : memref<64x128xf32, #tpu.memory_space<vmem>>, vector<8x128xf32>
    tpu.vector_store %arg11[%477, %c0_163], %476 {strides = array<i32>} : memref<64x128xf32, #tpu.memory_space<vmem>>, vector<8x128xf32>,
    %c4_i32_164 = arith.constant 4 : i32
    %c8_i32_165 = arith.constant 8 : i32
    %479 = arith.muli %c4_i32_164, %c8_i32_165 : i32
    %480 = tpu.assume_multiple %479, 8 : i32
    %481 = arith.index_cast %480 : i32 to index
    %c0_166 = arith.constant 0 : index
    %482 = vector.load %arg13[%481, %c0_166] : memref<64x384xf32, #tpu.memory_space<vmem>>, vector<8x384xf32>
    %c0_167 = arith.constant 0 : index
    %c0_168 = arith.constant 0 : index
    %483 = vector.load %arg8[%c0_167, %c0_168] : memref<128x384xf32, #tpu.memory_space<vmem>>, vector<128x384xf32>
    %cst_169 = arith.constant dense<0.000000e+00> : vector<8x384xf32>
    %484 = tpu.matmul %476, %483, %cst_169 {dimension_numbers = #tpu.dot_dimension_numbers<[1], [0], [0], [1], [0, 0, 1, 1], [], []>} : vector<8x128xf32>, vector<128x384xf32>, vector<8x384xf32> -> vector<8x384xf32>
    %485 = vector.extract_strided_slice %482 {offsets = [0, 0], sizes = [8, 128], strides = [1, 1]} : vector<8x384xf32> to vector<8x128xf32>
    %486 = vector.extract_strided_slice %484 {offsets = [0, 0], sizes = [8, 128], strides = [1, 1]} : vector<8x384xf32> to vector<8x128xf32>
    %487 = arith.addf %485, %486 : vector<8x128xf32>
    %cst_170 = arith.constant 0.000000e+00 : f32
    %488 = vector.broadcast %cst_170 : f32 to vector<8x128xf32>
    %489 = arith.subf %488, %487 : vector<8x128xf32>
    %490 = math.exp %489 : vector<8x128xf32>
    %cst_171 = arith.constant 1.000000e+00 : f32
    %491 = vector.broadcast %cst_171 : f32 to vector<8x128xf32>
    %492 = arith.addf %491, %490 : vector<8x128xf32>
    %493 = tpu.reciprocal %492 {approx = true} : vector<8x128xf32> -> vector<8x128xf32>
    %494 = vector.extract_strided_slice %482 {offsets = [0, 128], sizes = [8, 128], strides = [1, 1]} : vector<8x384xf32> to vector<8x128xf32>
    %495 = vector.extract_strided_slice %484 {offsets = [0, 128], sizes = [8, 128], strides = [1, 1]} : vector<8x384xf32> to vector<8x128xf32>
    %496 = arith.addf %494, %495 : vector<8x128xf32>
    %cst_172 = arith.constant 0.000000e+00 : f32
    %497 = vector.broadcast %cst_172 : f32 to vector<8x128xf32>
    %498 = arith.subf %497, %496 : vector<8x128xf32>
    %499 = math.exp %498 : vector<8x128xf32>
    %cst_173 = arith.constant 1.000000e+00 : f32
    %500 = vector.broadcast %cst_173 : f32 to vector<8x128xf32>
    %501 = arith.addf %500, %499 : vector<8x128xf32>
    %502 = tpu.reciprocal %501 {approx = true} : vector<8x128xf32> -> vector<8x128xf32>
    %503 = vector.extract_strided_slice %482 {offsets = [0, 256], sizes = [8, 128], strides = [1, 1]} : vector<8x384xf32> to vector<8x128xf32>
    %504 = vector.extract_strided_slice %484 {offsets = [0, 256], sizes = [8, 128], strides = [1, 1]} : vector<8x384xf32> to vector<8x128xf32>
    %505 = vector.broadcast %318 : vector<1x128xf32> to vector<8x128xf32>
    %506 = arith.addf %504, %505 : vector<8x128xf32>
    %507 = arith.mulf %493, %506 : vector<8x128xf32>
    %508 = arith.addf %503, %507 : vector<8x128xf32>
    %509 = math.tanh %508 : vector<8x128xf32>
    %cst_174 = arith.constant 1.000000e+00 : f32
    %510 = vector.broadcast %cst_174 : f32 to vector<8x128xf32>
    %511 = arith.subf %510, %502 : vector<8x128xf32>
    %512 = arith.mulf %511, %509 : vector<8x128xf32>
    %513 = arith.mulf %502, %476 : vector<8x128xf32>
    %514 = arith.addf %512, %513 : vector<8x128xf32>
    %515 = arith.index_cast %480 : i32 to index
    %c0_175 = arith.constant 0 : index
    %516 = vector.load %arg11[%515, %c0_175] : memref<64x128xf32, #tpu.memory_space<vmem>>, vector<8x128xf32>
    tpu.vector_store %arg11[%515, %c0_175], %514 {strides = array<i32>} : memref<64x128xf32, #tpu.memory_space<vmem>>, vector<8x128xf32>,
    %c5_i32_176 = arith.constant 5 : i32
    %c8_i32_177 = arith.constant 8 : i32
    %517 = arith.muli %c5_i32_176, %c8_i32_177 : i32
    %518 = tpu.assume_multiple %517, 8 : i32
    %519 = arith.index_cast %518 : i32 to index
    %c0_178 = arith.constant 0 : index
    %520 = vector.load %arg13[%519, %c0_178] : memref<64x384xf32, #tpu.memory_space<vmem>>, vector<8x384xf32>
    %c0_179 = arith.constant 0 : index
    %c0_180 = arith.constant 0 : index
    %521 = vector.load %arg8[%c0_179, %c0_180] : memref<128x384xf32, #tpu.memory_space<vmem>>, vector<128x384xf32>
    %cst_181 = arith.constant dense<0.000000e+00> : vector<8x384xf32>
    %522 = tpu.matmul %514, %521, %cst_181 {dimension_numbers = #tpu.dot_dimension_numbers<[1], [0], [0], [1], [0, 0, 1, 1], [], []>} : vector<8x128xf32>, vector<128x384xf32>, vector<8x384xf32> -> vector<8x384xf32>
    %523 = vector.extract_strided_slice %520 {offsets = [0, 0], sizes = [8, 128], strides = [1, 1]} : vector<8x384xf32> to vector<8x128xf32>
    %524 = vector.extract_strided_slice %522 {offsets = [0, 0], sizes = [8, 128], strides = [1, 1]} : vector<8x384xf32> to vector<8x128xf32>
    %525 = arith.addf %523, %524 : vector<8x128xf32>
    %cst_182 = arith.constant 0.000000e+00 : f32
    %526 = vector.broadcast %cst_182 : f32 to vector<8x128xf32>
    %527 = arith.subf %526, %525 : vector<8x128xf32>
    %528 = math.exp %527 : vector<8x128xf32>
    %cst_183 = arith.constant 1.000000e+00 : f32
    %529 = vector.broadcast %cst_183 : f32 to vector<8x128xf32>
    %530 = arith.addf %529, %528 : vector<8x128xf32>
    %531 = tpu.reciprocal %530 {approx = true} : vector<8x128xf32> -> vector<8x128xf32>
    %532 = vector.extract_strided_slice %520 {offsets = [0, 128], sizes = [8, 128], strides = [1, 1]} : vector<8x384xf32> to vector<8x128xf32>
    %533 = vector.extract_strided_slice %522 {offsets = [0, 128], sizes = [8, 128], strides = [1, 1]} : vector<8x384xf32> to vector<8x128xf32>
    %534 = arith.addf %532, %533 : vector<8x128xf32>
    %cst_184 = arith.constant 0.000000e+00 : f32
    %535 = vector.broadcast %cst_184 : f32 to vector<8x128xf32>
    %536 = arith.subf %535, %534 : vector<8x128xf32>
    %537 = math.exp %536 : vector<8x128xf32>
    %cst_185 = arith.constant 1.000000e+00 : f32
    %538 = vector.broadcast %cst_185 : f32 to vector<8x128xf32>
    %539 = arith.addf %538, %537 : vector<8x128xf32>
    %540 = tpu.reciprocal %539 {approx = true} : vector<8x128xf32> -> vector<8x128xf32>
    %541 = vector.extract_strided_slice %520 {offsets = [0, 256], sizes = [8, 128], strides = [1, 1]} : vector<8x384xf32> to vector<8x128xf32>
    %542 = vector.extract_strided_slice %522 {offsets = [0, 256], sizes = [8, 128], strides = [1, 1]} : vector<8x384xf32> to vector<8x128xf32>
    %543 = vector.broadcast %318 : vector<1x128xf32> to vector<8x128xf32>
    %544 = arith.addf %542, %543 : vector<8x128xf32>
    %545 = arith.mulf %531, %544 : vector<8x128xf32>
    %546 = arith.addf %541, %545 : vector<8x128xf32>
    %547 = math.tanh %546 : vector<8x128xf32>
    %cst_186 = arith.constant 1.000000e+00 : f32
    %548 = vector.broadcast %cst_186 : f32 to vector<8x128xf32>
    %549 = arith.subf %548, %540 : vector<8x128xf32>
    %550 = arith.mulf %549, %547 : vector<8x128xf32>
    %551 = arith.mulf %540, %514 : vector<8x128xf32>
    %552 = arith.addf %550, %551 : vector<8x128xf32>
    %553 = arith.index_cast %518 : i32 to index
    %c0_187 = arith.constant 0 : index
    %554 = vector.load %arg11[%553, %c0_187] : memref<64x128xf32, #tpu.memory_space<vmem>>, vector<8x128xf32>
    tpu.vector_store %arg11[%553, %c0_187], %552 {strides = array<i32>} : memref<64x128xf32, #tpu.memory_space<vmem>>, vector<8x128xf32>,
    %c6_i32_188 = arith.constant 6 : i32
    %c8_i32_189 = arith.constant 8 : i32
    %555 = arith.muli %c6_i32_188, %c8_i32_189 : i32
    %556 = tpu.assume_multiple %555, 8 : i32
    %557 = arith.index_cast %556 : i32 to index
    %c0_190 = arith.constant 0 : index
    %558 = vector.load %arg13[%557, %c0_190] : memref<64x384xf32, #tpu.memory_space<vmem>>, vector<8x384xf32>
    %c0_191 = arith.constant 0 : index
    %c0_192 = arith.constant 0 : index
    %559 = vector.load %arg8[%c0_191, %c0_192] : memref<128x384xf32, #tpu.memory_space<vmem>>, vector<128x384xf32>
    %cst_193 = arith.constant dense<0.000000e+00> : vector<8x384xf32>
    %560 = tpu.matmul %552, %559, %cst_193 {dimension_numbers = #tpu.dot_dimension_numbers<[1], [0], [0], [1], [0, 0, 1, 1], [], []>} : vector<8x128xf32>, vector<128x384xf32>, vector<8x384xf32> -> vector<8x384xf32>
    %561 = vector.extract_strided_slice %558 {offsets = [0, 0], sizes = [8, 128], strides = [1, 1]} : vector<8x384xf32> to vector<8x128xf32>
    %562 = vector.extract_strided_slice %560 {offsets = [0, 0], sizes = [8, 128], strides = [1, 1]} : vector<8x384xf32> to vector<8x128xf32>
    %563 = arith.addf %561, %562 : vector<8x128xf32>
    %cst_194 = arith.constant 0.000000e+00 : f32
    %564 = vector.broadcast %cst_194 : f32 to vector<8x128xf32>
    %565 = arith.subf %564, %563 : vector<8x128xf32>
    %566 = math.exp %565 : vector<8x128xf32>
    %cst_195 = arith.constant 1.000000e+00 : f32
    %567 = vector.broadcast %cst_195 : f32 to vector<8x128xf32>
    %568 = arith.addf %567, %566 : vector<8x128xf32>
    %569 = tpu.reciprocal %568 {approx = true} : vector<8x128xf32> -> vector<8x128xf32>
    %570 = vector.extract_strided_slice %558 {offsets = [0, 128], sizes = [8, 128], strides = [1, 1]} : vector<8x384xf32> to vector<8x128xf32>
    %571 = vector.extract_strided_slice %560 {offsets = [0, 128], sizes = [8, 128], strides = [1, 1]} : vector<8x384xf32> to vector<8x128xf32>
    %572 = arith.addf %570, %571 : vector<8x128xf32>
    %cst_196 = arith.constant 0.000000e+00 : f32
    %573 = vector.broadcast %cst_196 : f32 to vector<8x128xf32>
    %574 = arith.subf %573, %572 : vector<8x128xf32>
    %575 = math.exp %574 : vector<8x128xf32>
    %cst_197 = arith.constant 1.000000e+00 : f32
    %576 = vector.broadcast %cst_197 : f32 to vector<8x128xf32>
    %577 = arith.addf %576, %575 : vector<8x128xf32>
    %578 = tpu.reciprocal %577 {approx = true} : vector<8x128xf32> -> vector<8x128xf32>
    %579 = vector.extract_strided_slice %558 {offsets = [0, 256], sizes = [8, 128], strides = [1, 1]} : vector<8x384xf32> to vector<8x128xf32>
    %580 = vector.extract_strided_slice %560 {offsets = [0, 256], sizes = [8, 128], strides = [1, 1]} : vector<8x384xf32> to vector<8x128xf32>
    %581 = vector.broadcast %318 : vector<1x128xf32> to vector<8x128xf32>
    %582 = arith.addf %580, %581 : vector<8x128xf32>
    %583 = arith.mulf %569, %582 : vector<8x128xf32>
    %584 = arith.addf %579, %583 : vector<8x128xf32>
    %585 = math.tanh %584 : vector<8x128xf32>
    %cst_198 = arith.constant 1.000000e+00 : f32
    %586 = vector.broadcast %cst_198 : f32 to vector<8x128xf32>
    %587 = arith.subf %586, %578 : vector<8x128xf32>
    %588 = arith.mulf %587, %585 : vector<8x128xf32>
    %589 = arith.mulf %578, %552 : vector<8x128xf32>
    %590 = arith.addf %588, %589 : vector<8x128xf32>
    %591 = arith.index_cast %556 : i32 to index
    %c0_199 = arith.constant 0 : index
    %592 = vector.load %arg11[%591, %c0_199] : memref<64x128xf32, #tpu.memory_space<vmem>>, vector<8x128xf32>
    tpu.vector_store %arg11[%591, %c0_199], %590 {strides = array<i32>} : memref<64x128xf32, #tpu.memory_space<vmem>>, vector<8x128xf32>,
    %c7_i32_200 = arith.constant 7 : i32
    %c8_i32_201 = arith.constant 8 : i32
    %593 = arith.muli %c7_i32_200, %c8_i32_201 : i32
    %594 = tpu.assume_multiple %593, 8 : i32
    %595 = arith.index_cast %594 : i32 to index
    %c0_202 = arith.constant 0 : index
    %596 = vector.load %arg13[%595, %c0_202] : memref<64x384xf32, #tpu.memory_space<vmem>>, vector<8x384xf32>
    %c0_203 = arith.constant 0 : index
    %c0_204 = arith.constant 0 : index
    %597 = vector.load %arg8[%c0_203, %c0_204] : memref<128x384xf32, #tpu.memory_space<vmem>>, vector<128x384xf32>
    %cst_205 = arith.constant dense<0.000000e+00> : vector<8x384xf32>
    %598 = tpu.matmul %590, %597, %cst_205 {dimension_numbers = #tpu.dot_dimension_numbers<[1], [0], [0], [1], [0, 0, 1, 1], [], []>} : vector<8x128xf32>, vector<128x384xf32>, vector<8x384xf32> -> vector<8x384xf32>
    %599 = vector.extract_strided_slice %596 {offsets = [0, 0], sizes = [8, 128], strides = [1, 1]} : vector<8x384xf32> to vector<8x128xf32>
    %600 = vector.extract_strided_slice %598 {offsets = [0, 0], sizes = [8, 128], strides = [1, 1]} : vector<8x384xf32> to vector<8x128xf32>
    %601 = arith.addf %599, %600 : vector<8x128xf32>
    %cst_206 = arith.constant 0.000000e+00 : f32
    %602 = vector.broadcast %cst_206 : f32 to vector<8x128xf32>
    %603 = arith.subf %602, %601 : vector<8x128xf32>
    %604 = math.exp %603 : vector<8x128xf32>
    %cst_207 = arith.constant 1.000000e+00 : f32
    %605 = vector.broadcast %cst_207 : f32 to vector<8x128xf32>
    %606 = arith.addf %605, %604 : vector<8x128xf32>
    %607 = tpu.reciprocal %606 {approx = true} : vector<8x128xf32> -> vector<8x128xf32>
    %608 = vector.extract_strided_slice %596 {offsets = [0, 128], sizes = [8, 128], strides = [1, 1]} : vector<8x384xf32> to vector<8x128xf32>
    %609 = vector.extract_strided_slice %598 {offsets = [0, 128], sizes = [8, 128], strides = [1, 1]} : vector<8x384xf32> to vector<8x128xf32>
    %610 = arith.addf %608, %609 : vector<8x128xf32>
    %cst_208 = arith.constant 0.000000e+00 : f32
    %611 = vector.broadcast %cst_208 : f32 to vector<8x128xf32>
    %612 = arith.subf %611, %610 : vector<8x128xf32>
    %613 = math.exp %612 : vector<8x128xf32>
    %cst_209 = arith.constant 1.000000e+00 : f32
    %614 = vector.broadcast %cst_209 : f32 to vector<8x128xf32>
    %615 = arith.addf %614, %613 : vector<8x128xf32>
    %616 = tpu.reciprocal %615 {approx = true} : vector<8x128xf32> -> vector<8x128xf32>
    %617 = vector.extract_strided_slice %596 {offsets = [0, 256], sizes = [8, 128], strides = [1, 1]} : vector<8x384xf32> to vector<8x128xf32>
    %618 = vector.extract_strided_slice %598 {offsets = [0, 256], sizes = [8, 128], strides = [1, 1]} : vector<8x384xf32> to vector<8x128xf32>
    %619 = vector.broadcast %318 : vector<1x128xf32> to vector<8x128xf32>
    %620 = arith.addf %618, %619 : vector<8x128xf32>
    %621 = arith.mulf %607, %620 : vector<8x128xf32>
    %622 = arith.addf %617, %621 : vector<8x128xf32>
    %623 = math.tanh %622 : vector<8x128xf32>
    %cst_210 = arith.constant 1.000000e+00 : f32
    %624 = vector.broadcast %cst_210 : f32 to vector<8x128xf32>
    %625 = arith.subf %624, %616 : vector<8x128xf32>
    %626 = arith.mulf %625, %623 : vector<8x128xf32>
    %627 = arith.mulf %616, %590 : vector<8x128xf32>
    %628 = arith.addf %626, %627 : vector<8x128xf32>
    %629 = arith.index_cast %594 : i32 to index
    %c0_211 = arith.constant 0 : index
    %630 = vector.load %arg11[%629, %c0_211] : memref<64x128xf32, #tpu.memory_space<vmem>>, vector<8x128xf32>
    tpu.vector_store %arg11[%629, %c0_211], %628 {strides = array<i32>} : memref<64x128xf32, #tpu.memory_space<vmem>>, vector<8x128xf32>,
    %c8_i32_212 = arith.constant 8 : i32
    %c1_213 = arith.constant 1 : index
    %c0_214 = arith.constant 0 : index
    %c0_215 = arith.constant 0 : index
    %631 = vector.load %arg12[%c1_213, %c0_214, %c0_215] : memref<2x8x128xf32, #tpu.memory_space<vmem>>, vector<1x8x128xf32>
    %632 = vector.shape_cast %631 : vector<1x8x128xf32> to vector<8x128xf32>
    %633 = vector.shape_cast %628 : vector<8x128xf32> to vector<1x8x128xf32>
    tpu.vector_store %arg12[%c1_213, %c0_214, %c0_215], %633 {strides = array<i32>} : memref<2x8x128xf32, #tpu.memory_space<vmem>>, vector<1x8x128xf32>,
    return
  }
  func.func @transform_0(%arg0: i32) -> (i32, i32) {
    %c0_i32 = arith.constant 0 : i32
    %c0_i32_0 = arith.constant 0 : i32
    %c0_i32_1 = arith.constant 0 : i32
    return %c0_i32, %c0_i32_0 : i32, i32
  }
  func.func @transform_1(%arg0: i32) -> (i32, i32, i32) {
    %c0_i32 = arith.constant 0 : i32
    %c0_i32_0 = arith.constant 0 : i32
    %c0_i32_1 = arith.constant 0 : i32
    %c0_i32_2 = arith.constant 0 : i32
    return %c0_i32, %c0_i32_0, %c0_i32_1 : i32, i32, i32
  }
  func.func @transform_2(%arg0: i32) -> (i32, i32) {
    %c0_i32 = arith.constant 0 : i32
    %c0_i32_0 = arith.constant 0 : i32
    %c0_i32_1 = arith.constant 0 : i32
    return %c0_i32, %c0_i32_0 : i32, i32
  }
  func.func @transform_3(%arg0: i32) -> (i32, i32) {
    %c0_i32 = arith.constant 0 : i32
    %c0_i32_0 = arith.constant 0 : i32
    %c0_i32_1 = arith.constant 0 : i32
    return %c0_i32, %c0_i32_0 : i32, i32
  }
  func.func @transform_4(%arg0: i32) -> (i32, i32) {
    %c0_i32 = arith.constant 0 : i32
    %c0_i32_0 = arith.constant 0 : i32
    %c0_i32_1 = arith.constant 0 : i32
    return %c0_i32, %c0_i32_0 : i32, i32
  }
  func.func @transform_5(%arg0: i32) -> (i32, i32) {
    %c0_i32 = arith.constant 0 : i32
    %c0_i32_0 = arith.constant 0 : i32
    %c0_i32_1 = arith.constant 0 : i32
    return %c0_i32, %c0_i32_0 : i32, i32
  }
  func.func @transform_6(%arg0: i32) -> (i32, i32) {
    %c0_i32 = arith.constant 0 : i32
    %c0_i32_0 = arith.constant 0 : i32
    %c0_i32_1 = arith.constant 0 : i32
    return %c0_i32, %c0_i32_0 : i32, i32
  }
  func.func @transform_7(%arg0: i32) -> (i32, i32) {
    %c0_i32 = arith.constant 0 : i32
    %c0_i32_0 = arith.constant 0 : i32
    %c0_i32_1 = arith.constant 0 : i32
    return %c0_i32, %c0_i32_0 : i32, i32
  }
  func.func @transform_8(%arg0: i32) -> (i32, i32) {
    %c0_i32 = arith.constant 0 : i32
    %c0_i32_0 = arith.constant 0 : i32
    %c0_i32_1 = arith.constant 0 : i32
    return %c0_i32, %c0_i32_0 : i32, i32
  }
  func.func @transform_9(%arg0: i32) -> (i32, i32) {
    %c0_i32 = arith.constant 0 : i32
    %c0_i32_0 = arith.constant 0 : i32
    %c0_i32_1 = arith.constant 0 : i32
    return %c0_i32, %c0_i32_0 : i32, i32
  }
  func.func @transform_10(%arg0: i32) -> (i32, i32) {
    %c0_i32 = arith.constant 0 : i32
    %c0_i32_0 = arith.constant 0 : i32
    %c0_i32_1 = arith.constant 0 : i32
    return %c0_i32, %c0_i32_0 : i32, i32
  }
  func.func @transform_11(%arg0: i32) -> (i32, i32, i32) {
    %c0_i32 = arith.constant 0 : i32
    %c0_i32_0 = arith.constant 0 : i32
    %c0_i32_1 = arith.constant 0 : i32
    %c0_i32_2 = arith.constant 0 : i32
    return %c0_i32, %c0_i32_0, %c0_i32_1 : i32, i32, i32
  }
}

</mosaic_0001>

<llo_original>
// kernel: tpu_custom_call.1
$region0: #{tpu_custom_call.1}
  #allocation0 [shape = 'u32[]', space=smem, size = 0x4, offset = 0x4, fixed_abs, tag = 'smem constant byte address 0x4 - core index']
  #allocation1 [shape = 'u32[72,128]{1,0:T(1,128)}', space=vmem, size = 0x9000, scoped, tag = 'internal scratch']
  #allocation2 [shape = 'f32[64,384]{1,0:T(8,128)}', space=vmem, size = 0x18000, scoped, tag = 'scratch operand']
  %s0 = inlined_call_operand.hbm [shape: f32[64,128], index: 0, kind: input, shape index: {}]
  %s1 = inlined_call_operand.hbm [shape: f32[2,8,128], index: 1, kind: input, shape index: {}]
  %s2 = inlined_call_operand.hbm [shape: f32[128,384], index: 2, kind: input, shape index: {}]
  %s3 = inlined_call_operand.hbm [shape: f32[128,384], index: 3, kind: input, shape index: {}]
  %s4 = inlined_call_operand.vmem [shape: f32[1,384], index: 4, kind: input, shape index: {}]
  %s5 = inlined_call_operand.hbm [shape: f32[1,128], index: 5, kind: input, shape index: {}]
  %s6 = inlined_call_operand.hbm [shape: f32[128,384], index: 6, kind: input, shape index: {}]
  %s7 = inlined_call_operand.hbm [shape: f32[128,384], index: 7, kind: input, shape index: {}]
  %s8 = inlined_call_operand.vmem [shape: f32[1,384], index: 8, kind: input, shape index: {}]
  %s9 = inlined_call_operand.vmem [shape: f32[1,128], index: 9, kind: input, shape index: {}]
  %s10 = inlined_call_operand.hbm [shape: f32[64,128], index: 10, kind: output, shape index: {0}]
  %s11 = inlined_call_operand.hbm [shape: f32[2,8,128], index: 11, kind: output, shape index: {1}]
  %12 = xla_tuple %s10, %s11
  %s13 = sld [smem:[#allocation0]]
  $region86: #{tpu_custom_call.1} parent=0
    _
  %s15 = ssub.s32 1, %s13
  %s16 = scalar_select 0, %s15, %s13
  $region1: #{tpu_custom_call.1} parent=0
    #allocation3 [shape = 'u8[32768]{0}', space=vmem, size = 0x8000, scoped, tag = 'input window, operand 0, single buffered']
    #allocation4 [shape = 's32[1]{0}', space=sflag, size = 0x4, scoped, tag = 'scoped memory for tpu_custom_call.1']
    #allocation5 [shape = 's32[1]{0}', space=sflag, size = 0x4, scoped, tag = 'scoped memory for tpu_custom_call.1']
    #allocation6 [shape = 'u8[8192]{0}', space=vmem, size = 0x2000, scoped, tag = 'input window, operand 1, single buffered']
    #allocation7 [shape = 's32[1]{0}', space=sflag, size = 0x4, scoped, tag = 'scoped memory for tpu_custom_call.1']
    #allocation8 [shape = 'u8[196608]{0}', space=vmem, size = 0x30000, scoped, tag = 'input window, operand 2, single buffered']
    #allocation9 [shape = 'u8[196608]{0}', space=vmem, size = 0x30000, scoped, tag = 'input window, operand 3, single buffered']
    #allocation10 [shape = 's32[1]{0}', space=sflag, size = 0x4, scoped, tag = 'scoped memory for tpu_custom_call.1']
    #allocation11 [shape = 'u8[512]{0}', space=vmem, size = 0x400, scoped, tag = 'input window, operand 5, single buffered']
    #allocation12 [shape = 'u8[196608]{0}', space=vmem, size = 0x30000, scoped, tag = 'input window, operand 6, single buffered']
    #allocation13 [shape = 's32[1]{0}', space=sflag, size = 0x4, scoped, tag = 'scoped memory for tpu_custom_call.1']
    #allocation14 [shape = 'u8[196608]{0}', space=vmem, size = 0x30000, scoped, tag = 'input window, operand 7, single buffered']
    #allocation15 [shape = 'u8[32768]{0}', space=vmem, size = 0x8000, scoped, tag = 'output window, operand 0, single buffered']
    #allocation16 [shape = 'u8[8192]{0}', space=vmem, size = 0x2000, scoped, tag = 'output window, operand 1, single buffered']
    #allocation17 [shape = 's32[1]{0}', space=sflag, size = 0x4, scoped, tag = 'scoped memory for tpu_custom_call.1']
    %17 = vsyncpa [#allocation4], 0
    %18 = vsyncpa [#allocation7], 0
    %19 = vsyncpa [#allocation10], 0
    %20 = vsyncpa [#allocation13], 0
    %21 = vsyncpa [#allocation5], 0
    %22 = vsyncpa [#allocation17], 0
    // Predicated region
    $region2: #{tpu_custom_call.1} parent=1 // pred_check
      _
    $region3: #{tpu_custom_call.1} parent=1 // pred_check_branch
      %24 = sbr.rel (0) target = $region5
    $region4: #{tpu_custom_call.1} parent=1 // pred_region
      %26 = vsyncadd [#allocation4], 0
      %s27 = sshll.u32 %s0, 4
      %s28 = int_to_ptr.hbm [resolvable:$true] %s27
      %s29 = sshll.u32 [#allocation3], 4
      %s30 = int_to_ptr.vmem [resolvable:$true] %s29
      %35 = dma.hbm_to_vmem [thread:$0]  %s28, 1024, %s30, [#allocation4], 128, 128, 8
    $region5: #{tpu_custom_call.1} parent=1 // pred_fallthru
      _
    // Predicated region
    $region6: #{tpu_custom_call.1} parent=1 // pred_check
      _
    $region7: #{tpu_custom_call.1} parent=1 // pred_check_branch
      %37 = sbr.rel (0) target = $region9
    $region8: #{tpu_custom_call.1} parent=1 // pred_region
      %39 = vsyncadd [#allocation7], 0
      %s40 = sshll.u32 %s1, 4
      %s41 = int_to_ptr.hbm [resolvable:$true] %s40
      %s42 = sshll.u32 [#allocation6], 4
      %s43 = int_to_ptr.vmem [resolvable:$true] %s42
      %48 = dma.hbm_to_vmem [thread:$0]  %s41, 256, %s43, [#allocation7], 128, 128, 8
    $region9: #{tpu_custom_call.1} parent=1 // pred_fallthru
      _
    // Predicated region
    $region10: #{tpu_custom_call.1} parent=1 // pred_check
      _
    $region11: #{tpu_custom_call.1} parent=1 // pred_check_branch
      %50 = sbr.rel (0) target = $region13
    $region12: #{tpu_custom_call.1} parent=1 // pred_region
      %52 = vsyncadd [#allocation7], 0
      %s53 = sshll.u32 %s2, 4
      %s54 = int_to_ptr.hbm [resolvable:$true] %s53
      %s55 = sshll.u32 [#allocation8], 4
      %s56 = int_to_ptr.vmem [resolvable:$true] %s55
      %61 = dma.hbm_to_vmem [thread:$0]  %s54, 6144, %s56, [#allocation7], 384, 384, 24
    $region13: #{tpu_custom_call.1} parent=1 // pred_fallthru
      _
    // Predicated region
    $region14: #{tpu_custom_call.1} parent=1 // pred_check
      _
    $region15: #{tpu_custom_call.1} parent=1 // pred_check_branch
      %63 = sbr.rel (0) target = $region17
    $region16: #{tpu_custom_call.1} parent=1 // pred_region
      %65 = vsyncadd [#allocation10], 0
      %s66 = sshll.u32 %s3, 4
      %s67 = int_to_ptr.hbm [resolvable:$true] %s66
      %s68 = sshll.u32 [#allocation9], 4
      %s69 = int_to_ptr.vmem [resolvable:$true] %s68
      %74 = dma.hbm_to_vmem [thread:$0]  %s67, 6144, %s69, [#allocation10], 384, 384, 24
    $region17: #{tpu_custom_call.1} parent=1 // pred_fallthru
      _
    // Predicated region
    $region18: #{tpu_custom_call.1} parent=1 // pred_check
      _
    $region19: #{tpu_custom_call.1} parent=1 // pred_check_branch
      %76 = sbr.rel (0) target = $region21
    $region20: #{tpu_custom_call.1} parent=1 // pred_region
      _
    $region21: #{tpu_custom_call.1} parent=1 // pred_fallthru
      _
    // Predicated region
    $region22: #{tpu_custom_call.1} parent=1 // pred_check
      _
    $region23: #{tpu_custom_call.1} parent=1 // pred_check_branch
      %78 = sbr.rel (0) target = $region25
    $region24: #{tpu_custom_call.1} parent=1 // pred_region
      %80 = vsyncadd [#allocation10], 0
      %s82 = sshll.u32 %s5, 4
      %s83 = int_to_ptr.hbm [resolvable:$true] %s82
      %s84 = sshll.u32 [#allocation11], 4
      %s85 = int_to_ptr.vmem [resolvable:$true] %s84
      %87 = dma.hbm_to_vmem [thread:$0]  %s83, 16, %s85, [#allocation10]
    $region25: #{tpu_custom_call.1} parent=1 // pred_fallthru
      _
    // Predicated region
    $region26: #{tpu_custom_call.1} parent=1 // pred_check
      _
    $region27: #{tpu_custom_call.1} parent=1 // pred_check_branch
      %89 = sbr.rel (0) target = $region29
    $region28: #{tpu_custom_call.1} parent=1 // pred_region
      %91 = vsyncadd [#allocation13], 0
      %s92 = sshll.u32 %s6, 4
      %s93 = int_to_ptr.hbm [resolvable:$true] %s92
      %s94 = sshll.u32 [#allocation12], 4
      %s95 = int_to_ptr.vmem [resolvable:$true] %s94
      %100 = dma.hbm_to_vmem [thread:$0]  %s93, 6144, %s95, [#allocation13], 384, 384, 24
    $region29: #{tpu_custom_call.1} parent=1 // pred_fallthru
      _
    // Predicated region
    $region30: #{tpu_custom_call.1} parent=1 // pred_check
      _
    $region31: #{tpu_custom_call.1} parent=1 // pred_check_branch
      %102 = sbr.rel (0) target = $region33
    $region32: #{tpu_custom_call.1} parent=1 // pred_region
      %104 = vsyncadd [#allocation13], 0
      %s105 = sshll.u32 %s7, 4
      %s106 = int_to_ptr.hbm [resolvable:$true] %s105
      %s107 = sshll.u32 [#allocation14], 4
      %s108 = int_to_ptr.vmem [resolvable:$true] %s107
      %113 = dma.hbm_to_vmem [thread:$0]  %s106, 6144, %s108, [#allocation13], 384, 384, 24
    $region33: #{tpu_custom_call.1} parent=1 // pred_fallthru
      _
    // Predicated region
    $region34: #{tpu_custom_call.1} parent=1 // pred_check
      _
    $region35: #{tpu_custom_call.1} parent=1 // pred_check_branch
      %115 = sbr.rel (0) target = $region37
    $region36: #{tpu_custom_call.1} parent=1 // pred_region
      _
    $region37: #{tpu_custom_call.1} parent=1 // pred_fallthru
      _
    // Predicated region
    $region38: #{tpu_custom_call.1} parent=1 // pred_check
      _
    $region39: #{tpu_custom_call.1} parent=1 // pred_check_branch
      %117 = sbr.rel (0) target = $region41
    $region40: #{tpu_custom_call.1} parent=1 // pred_region
      _
    $region41: #{tpu_custom_call.1} parent=1 // pred_fallthru
      _
    // Predicated region
    $region42: #{tpu_custom_call.1} parent=1 // pred_check
      _
    $region43: #{tpu_custom_call.1} parent=1 // pred_check_branch
      %119 = sbr.rel (0) target = $region45
    $region44: #{tpu_custom_call.1} parent=1 // pred_region
      %121 = dma.done [#allocation4], 1024
    $region45: #{tpu_custom_call.1} parent=1 // pred_fallthru
      _
    // Predicated region
    $region46: #{tpu_custom_call.1} parent=1 // pred_check
      _
    $region47: #{tpu_custom_call.1} parent=1 // pred_check_branch
      %123 = sbr.rel (0) target = $region49
    $region48: #{tpu_custom_call.1} parent=1 // pred_region
      %125 = dma.done [#allocation7], 256
    $region49: #{tpu_custom_call.1} parent=1 // pred_fallthru
      _
    // Predicated region
    $region50: #{tpu_custom_call.1} parent=1 // pred_check
      _
    $region51: #{tpu_custom_call.1} parent=1 // pred_check_branch
      %127 = sbr.rel (0) target = $region53
    $region52: #{tpu_custom_call.1} parent=1 // pred_region
      %129 = dma.done [#allocation7], 6144
    $region53: #{tpu_custom_call.1} parent=1 // pred_fallthru
      _
    // Predicated region
    $region54: #{tpu_custom_call.1} parent=1 // pred_check
      _
    $region55: #{tpu_custom_call.1} parent=1 // pred_check_branch
      %131 = sbr.rel (0) target = $region57
    $region56: #{tpu_custom_call.1} parent=1 // pred_region
      %133 = dma.done [#allocation10], 6144
    $region57: #{tpu_custom_call.1} parent=1 // pred_fallthru
      _
    // Predicated region
    $region58: #{tpu_custom_call.1} parent=1 // pred_check
      _
    $region59: #{tpu_custom_call.1} parent=1 // pred_check_branch
      %135 = sbr.rel (0) target = $region61
    $region60: #{tpu_custom_call.1} parent=1 // pred_region
      %137 = dma.done [#allocation10], 16
    $region61: #{tpu_custom_call.1} parent=1 // pred_fallthru
      _
    // Predicated region
    $region62: #{tpu_custom_call.1} parent=1 // pred_check
      _
    $region63: #{tpu_custom_call.1} parent=1 // pred_check_branch
      %139 = sbr.rel (0) target = $region65
    $region64: #{tpu_custom_call.1} parent=1 // pred_region
      %141 = dma.done [#allocation13], 6144
    $region65: #{tpu_custom_call.1} parent=1 // pred_fallthru
      _
    // Predicated region
    $region66: #{tpu_custom_call.1} parent=1 // pred_check
      _
    $region67: #{tpu_custom_call.1} parent=1 // pred_check_branch
      %143 = sbr.rel (0) target = $region69
    $region68: #{tpu_custom_call.1} parent=1 // pred_region
      %145 = dma.done [#allocation13], 6144
    $region69: #{tpu_custom_call.1} parent=1 // pred_fallthru
      _
    %v146 = vld [vmem:[%s4] sm:$0x7]
    %v147 = vld [vmem:[#allocation11] sm:$0x1]
    %v148 = vld [vmem:[#allocation3] sm:$0xff]
    %v149 = vld [vmem:[#allocation3 + $0x8] sm:$0xff]
    %v150 = vld [vmem:[#allocation3 + $0x10] sm:$0xff]
    %v151 = vld [vmem:[#allocation3 + $0x18] sm:$0xff]
    %v152 = vld [vmem:[#allocation3 + $0x20] sm:$0xff]
    %v153 = vld [vmem:[#allocation3 + $0x28] sm:$0xff]
    %v154 = vld [vmem:[#allocation3 + $0x30] sm:$0xff]
    %v155 = vld [vmem:[#allocation3 + $0x38] sm:$0xff]
    %v156 = vld [vmem:[#allocation8] sm:$0xff]
    %v157 = vld [vmem:[#allocation8 + $0x8] sm:$0xff]
    %v158 = vld [vmem:[#allocation8 + $0x10] sm:$0xff]
    %v159 = vld [vmem:[#allocation8 + $0x18] sm:$0xff]
    %v160 = vld [vmem:[#allocation8 + $0x20] sm:$0xff]
    %v161 = vld [vmem:[#allocation8 + $0x28] sm:$0xff]
    %v162 = vld [vmem:[#allocation8 + $0x30] sm:$0xff]
    %v163 = vld [vmem:[#allocation8 + $0x38] sm:$0xff]
    %v164 = vld [vmem:[#allocation8 + $0x40] sm:$0xff]
    %v165 = vld [vmem:[#allocation8 + $0x48] sm:$0xff]
    %v166 = vld [vmem:[#allocation8 + $0x50] sm:$0xff]
    %v167 = vld [vmem:[#allocation8 + $0x58] sm:$0xff]
    %v168 = vld [vmem:[#allocation8 + $0x60] sm:$0xff]
    %v169 = vld [vmem:[#allocation8 + $0x68] sm:$0xff]
    %v170 = vld [vmem:[#allocation8 + $0x70] sm:$0xff]
    %v171 = vld [vmem:[#allocation8 + $0x78] sm:$0xff]
    %v172 = vld [vmem:[#allocation8 + $0x80] sm:$0xff]
    %v173 = vld [vmem:[#allocation8 + $0x88] sm:$0xff]
    %v174 = vld [vmem:[#allocation8 + $0x90] sm:$0xff]
    %v175 = vld [vmem:[#allocation8 + $0x98] sm:$0xff]
    %v176 = vld [vmem:[#allocation8 + $0xa0] sm:$0xff]
    %v177 = vld [vmem:[#allocation8 + $0xa8] sm:$0xff]
    %v178 = vld [vmem:[#allocation8 + $0xb0] sm:$0xff]
    %v179 = vld [vmem:[#allocation8 + $0xb8] sm:$0xff]
    %v180 = vld [vmem:[#allocation8 + $0xc0] sm:$0xff]
    %v181 = vld [vmem:[#allocation8 + $0xc8] sm:$0xff]
    %v182 = vld [vmem:[#allocation8 + $0xd0] sm:$0xff]
    %v183 = vld [vmem:[#allocation8 + $0xd8] sm:$0xff]
    %v184 = vld [vmem:[#allocation8 + $0xe0] sm:$0xff]
    %v185 = vld [vmem:[#allocation8 + $0xe8] sm:$0xff]
    %v186 = vld [vmem:[#allocation8 + $0xf0] sm:$0xff]
    %v187 = vld [vmem:[#allocation8 + $0xf8] sm:$0xff]
    %v188 = vld [vmem:[#allocation8 + $0x100] sm:$0xff]
    %v189 = vld [vmem:[#allocation8 + $0x108] sm:$0xff]
    %v190 = vld [vmem:[#allocation8 + $0x110] sm:$0xff]
    %v191 = vld [vmem:[#allocation8 + $0x118] sm:$0xff]
    %v192 = vld [vmem:[#allocation8 + $0x120] sm:$0xff]
    %v193 = vld [vmem:[#allocation8 + $0x128] sm:$0xff]
    %v194 = vld [vmem:[#allocation8 + $0x130] sm:$0xff]
    %v195 = vld [vmem:[#allocation8 + $0x138] sm:$0xff]
    %v196 = vld [vmem:[#allocation8 + $0x140] sm:$0xff]
    %v197 = vld [vmem:[#allocation8 + $0x148] sm:$0xff]
    %v198 = vld [vmem:[#allocation8 + $0x150] sm:$0xff]
    %v199 = vld [vmem:[#allocation8 + $0x158] sm:$0xff]
    %v200 = vld [vmem:[#allocation8 + $0x160] sm:$0xff]
    %v201 = vld [vmem:[#allocation8 + $0x168] sm:$0xff]
    %v202 = vld [vmem:[#allocation8 + $0x170] sm:$0xff]
    %v203 = vld [vmem:[#allocation8 + $0x178] sm:$0xff]
    %v205 = vperm.slane %v146, 0
    %v206 = vperm.slane %v146, 1
    %v207 = vperm.slane %v146, 2
    %211 = vmatpush.msra.mxu0 %v201
    %212 = vmatpush.msra.mxu0 %v198
    %213 = vmatpush.msra.mxu0 %v195
    %214 = vmatpush.msra.mxu0 %v192
    %215 = vmatpush.msra.mxu0 %v189
    %216 = vmatpush.msra.mxu0 %v186
    %217 = vmatpush.msra.mxu0 %v183
    %218 = vmatpush.msra.mxu0 %v180
    %219 = vmatpush.msra.mxu0 %v177
    %220 = vmatpush.msra.mxu0 %v174
    %221 = vmatpush.msra.mxu0 %v171
    %222 = vmatpush.msra.mxu0 %v168
    %223 = vmatpush.msra.mxu0 %v165
    %224 = vmatpush.msra.mxu0 %v162
    %225 = vmatpush.msra.mxu0 %v159
    %226 = vmatpush.msra.mxu0 %v156
    %227 = vmatmul.f32.gmra.mxu0 %v148
    %v228 = vpop.f32.mrf.mxu0
    %v229 = vadd.f32 %v205, %v228
    %230 = vmatmul.f32.gmra.mxu0 %v149
    %v231 = vpop.f32.mrf.mxu0
    %v232 = vadd.f32 %v205, %v231
    %233 = vmatmul.f32.gmra.mxu0 %v150
    %v234 = vpop.f32.mrf.mxu0
    %v235 = vadd.f32 %v205, %v234
    %236 = vmatmul.f32.gmra.mxu0 %v151
    %v237 = vpop.f32.mrf.mxu0
    %v238 = vadd.f32 %v205, %v237
    %239 = vmatmul.f32.gmra.mxu0 %v152
    %v240 = vpop.f32.mrf.mxu0
    %v241 = vadd.f32 %v205, %v240
    %242 = vmatmul.f32.gmra.mxu0 %v153
    %v243 = vpop.f32.mrf.mxu0
    %v244 = vadd.f32 %v205, %v243
    %245 = vmatmul.f32.gmra.mxu0 %v154
    %v246 = vpop.f32.mrf.mxu0
    %v247 = vadd.f32 %v205, %v246
    %248 = vmatmul.f32.gmra.mxu0 %v155
    %v249 = vpop.f32.mrf.mxu0
    %v250 = vadd.f32 %v205, %v249
    %251 = vdwg.mxu0
    %252 = vmatpush.msra.mxu0 %v202
    %253 = vmatpush.msra.mxu0 %v199
    %254 = vmatpush.msra.mxu0 %v196
    %255 = vmatpush.msra.mxu0 %v193
    %256 = vmatpush.msra.mxu0 %v190
    %257 = vmatpush.msra.mxu0 %v187
    %258 = vmatpush.msra.mxu0 %v184
    %259 = vmatpush.msra.mxu0 %v181
    %260 = vmatpush.msra.mxu0 %v178
    %261 = vmatpush.msra.mxu0 %v175
    %262 = vmatpush.msra.mxu0 %v172
    %263 = vmatpush.msra.mxu0 %v169
    %264 = vmatpush.msra.mxu0 %v166
    %265 = vmatpush.msra.mxu0 %v163
    %266 = vmatpush.msra.mxu0 %v160
    %267 = vmatpush.msra.mxu0 %v157
    %268 = vmatmul.f32.gmra.mxu0 %v148
    %v269 = vpop.f32.mrf.mxu0
    %v270 = vadd.f32 %v206, %v269
    %271 = vmatmul.f32.gmra.mxu0 %v149
    %v272 = vpop.f32.mrf.mxu0
    %v273 = vadd.f32 %v206, %v272
    %274 = vmatmul.f32.gmra.mxu0 %v150
    %v275 = vpop.f32.mrf.mxu0
    %v276 = vadd.f32 %v206, %v275
    %277 = vmatmul.f32.gmra.mxu0 %v151
    %v278 = vpop.f32.mrf.mxu0
    %v279 = vadd.f32 %v206, %v278
    %280 = vmatmul.f32.gmra.mxu0 %v152
    %v281 = vpop.f32.mrf.mxu0
    %v282 = vadd.f32 %v206, %v281
    %283 = vmatmul.f32.gmra.mxu0 %v153
    %v284 = vpop.f32.mrf.mxu0
    %v285 = vadd.f32 %v206, %v284
    %286 = vmatmul.f32.gmra.mxu0 %v154
    %v287 = vpop.f32.mrf.mxu0
    %v288 = vadd.f32 %v206, %v287
    %289 = vmatmul.f32.gmra.mxu0 %v155
    %v290 = vpop.f32.mrf.mxu0
    %v291 = vadd.f32 %v206, %v290
    %292 = vdwg.mxu0
    %293 = vmatpush.msra.mxu0 %v203
    %294 = vmatpush.msra.mxu0 %v200
    %295 = vmatpush.msra.mxu0 %v197
    %296 = vmatpush.msra.mxu0 %v194
    %297 = vmatpush.msra.mxu0 %v191
    %298 = vmatpush.msra.mxu0 %v188
    %299 = vmatpush.msra.mxu0 %v185
    %300 = vmatpush.msra.mxu0 %v182
    %301 = vmatpush.msra.mxu0 %v179
    %302 = vmatpush.msra.mxu0 %v176
    %303 = vmatpush.msra.mxu0 %v173
    %304 = vmatpush.msra.mxu0 %v170
    %305 = vmatpush.msra.mxu0 %v167
    %306 = vmatpush.msra.mxu0 %v164
    %307 = vmatpush.msra.mxu0 %v161
    %308 = vmatpush.msra.mxu0 %v158
    %309 = vmatmul.f32.gmra.mxu0 %v148
    %v310 = vpop.f32.mrf.mxu0
    %v311 = vadd.f32 %v207, %v310
    %312 = vmatmul.f32.gmra.mxu0 %v149
    %v313 = vpop.f32.mrf.mxu0
    %v314 = vadd.f32 %v207, %v313
    %315 = vmatmul.f32.gmra.mxu0 %v150
    %v316 = vpop.f32.mrf.mxu0
    %v317 = vadd.f32 %v207, %v316
    %318 = vmatmul.f32.gmra.mxu0 %v151
    %v319 = vpop.f32.mrf.mxu0
    %v320 = vadd.f32 %v207, %v319
    %321 = vmatmul.f32.gmra.mxu0 %v152
    %v322 = vpop.f32.mrf.mxu0
    %v323 = vadd.f32 %v207, %v322
    %324 = vmatmul.f32.gmra.mxu0 %v153
    %v325 = vpop.f32.mrf.mxu0
    %v326 = vadd.f32 %v207, %v325
    %327 = vmatmul.f32.gmra.mxu0 %v154
    %v328 = vpop.f32.mrf.mxu0
    %v329 = vadd.f32 %v207, %v328
    %330 = vmatmul.f32.gmra.mxu0 %v155
    %v331 = vpop.f32.mrf.mxu0
    %v332 = vadd.f32 %v207, %v331
    %333 = vdwg.mxu0
    %334 = vst [vmem:[#allocation2] sm:$0xff] %v229
    %335 = vst [vmem:[#allocation2 + $0x8] sm:$0xff] %v270
    %336 = vst [vmem:[#allocation2 + $0x10] sm:$0xff] %v311
    %337 = vst [vmem:[#allocation2 + $0x18] sm:$0xff] %v232
    %338 = vst [vmem:[#allocation2 + $0x20] sm:$0xff] %v273
    %339 = vst [vmem:[#allocation2 + $0x28] sm:$0xff] %v314
    %340 = vst [vmem:[#allocation2 + $0x30] sm:$0xff] %v235
    %341 = vst [vmem:[#allocation2 + $0x38] sm:$0xff] %v276
    %342 = vst [vmem:[#allocation2 + $0x40] sm:$0xff] %v317
    %343 = vst [vmem:[#allocation2 + $0x48] sm:$0xff] %v238
    %344 = vst [vmem:[#allocation2 + $0x50] sm:$0xff] %v279
    %345 = vst [vmem:[#allocation2 + $0x58] sm:$0xff] %v320
    %346 = vst [vmem:[#allocation2 + $0x60] sm:$0xff] %v241
    %347 = vst [vmem:[#allocation2 + $0x68] sm:$0xff] %v282
    %348 = vst [vmem:[#allocation2 + $0x70] sm:$0xff] %v323
    %349 = vst [vmem:[#allocation2 + $0x78] sm:$0xff] %v244
    %350 = vst [vmem:[#allocation2 + $0x80] sm:$0xff] %v285
    %351 = vst [vmem:[#allocation2 + $0x88] sm:$0xff] %v326
    %352 = vst [vmem:[#allocation2 + $0x90] sm:$0xff] %v247
    %353 = vst [vmem:[#allocation2 + $0x98] sm:$0xff] %v288
    %354 = vst [vmem:[#allocation2 + $0xa0] sm:$0xff] %v329
    %355 = vst [vmem:[#allocation2 + $0xa8] sm:$0xff] %v250
    %356 = vst [vmem:[#allocation2 + $0xb0] sm:$0xff] %v291
    %357 = vst [vmem:[#allocation2 + $0xb8] sm:$0xff] %v332
    %v358 = vld [vmem:[#allocation6] sm:$0xff]
    %s359 = smul.u32 0, 3
    %s360 = smul.addr %s359, 8
    %s361 = scalar_lea.vmem [#allocation2], %s360
    %v362 = vld [vmem:[%s361] sm:$0xff]
    %v363 = vld [vmem:[%s361 + $0x8] sm:$0xff]
    %v364 = vld [vmem:[%s361 + $0x10] sm:$0xff]
    %v365 = vld [vmem:[#allocation9] sm:$0xff]
    %v366 = vld [vmem:[#allocation9 + $0x8] sm:$0xff]
    %v367 = vld [vmem:[#allocation9 + $0x10] sm:$0xff]
    %v368 = vld [vmem:[#allocation9 + $0x18] sm:$0xff]
    %v369 = vld [vmem:[#allocation9 + $0x20] sm:$0xff]
    %v370 = vld [vmem:[#allocation9 + $0x28] sm:$0xff]
    %v371 = vld [vmem:[#allocation9 + $0x30] sm:$0xff]
    %v372 = vld [vmem:[#allocation9 + $0x38] sm:$0xff]
    %v373 = vld [vmem:[#allocation9 + $0x40] sm:$0xff]
    %v374 = vld [vmem:[#allocation9 + $0x48] sm:$0xff]
    %v375 = vld [vmem:[#allocation9 + $0x50] sm:$0xff]
    %v376 = vld [vmem:[#allocation9 + $0x58] sm:$0xff]
    %v377 = vld [vmem:[#allocation9 + $0x60] sm:$0xff]
    %v378 = vld [vmem:[#allocation9 + $0x68] sm:$0xff]
    %v379 = vld [vmem:[#allocation9 + $0x70] sm:$0xff]
    %v380 = vld [vmem:[#allocation9 + $0x78] sm:$0xff]
    %v381 = vld [vmem:[#allocation9 + $0x80] sm:$0xff]
    %v382 = vld [vmem:[#allocation9 + $0x88] sm:$0xff]
    %v383 = vld [vmem:[#allocation9 + $0x90] sm:$0xff]
    %v384 = vld [vmem:[#allocation9 + $0x98] sm:$0xff]
    %v385 = vld [vmem:[#allocation9 + $0xa0] sm:$0xff]
    %v386 = vld [vmem:[#allocation9 + $0xa8] sm:$0xff]
    %v387 = vld [vmem:[#allocation9 + $0xb0] sm:$0xff]
    %v388 = vld [vmem:[#allocation9 + $0xb8] sm:$0xff]
    %v389 = vld [vmem:[#allocation9 + $0xc0] sm:$0xff]
    %v390 = vld [vmem:[#allocation9 + $0xc8] sm:$0xff]
    %v391 = vld [vmem:[#allocation9 + $0xd0] sm:$0xff]
    %v392 = vld [vmem:[#allocation9 + $0xd8] sm:$0xff]
    %v393 = vld [vmem:[#allocation9 + $0xe0] sm:$0xff]
    %v394 = vld [vmem:[#allocation9 + $0xe8] sm:$0xff]
    %v395 = vld [vmem:[#allocation9 + $0xf0] sm:$0xff]
    %v396 = vld [vmem:[#allocation9 + $0xf8] sm:$0xff]
    %v397 = vld [vmem:[#allocation9 + $0x100] sm:$0xff]
    %v398 = vld [vmem:[#allocation9 + $0x108] sm:$0xff]
    %v399 = vld [vmem:[#allocation9 + $0x110] sm:$0xff]
    %v400 = vld [vmem:[#allocation9 + $0x118] sm:$0xff]
    %v401 = vld [vmem:[#allocation9 + $0x120] sm:$0xff]
    %v402 = vld [vmem:[#allocation9 + $0x128] sm:$0xff]
    %v403 = vld [vmem:[#allocation9 + $0x130] sm:$0xff]
    %v404 = vld [vmem:[#allocation9 + $0x138] sm:$0xff]
    %v405 = vld [vmem:[#allocation9 + $0x140] sm:$0xff]
    %v406 = vld [vmem:[#allocation9 + $0x148] sm:$0xff]
    %v407 = vld [vmem:[#allocation9 + $0x150] sm:$0xff]
    %v408 = vld [vmem:[#allocation9 + $0x158] sm:$0xff]
    %v409 = vld [vmem:[#allocation9 + $0x160] sm:$0xff]
    %v410 = vld [vmem:[#allocation9 + $0x168] sm:$0xff]
    %v411 = vld [vmem:[#allocation9 + $0x170] sm:$0xff]
    %v412 = vld [vmem:[#allocation9 + $0x178] sm:$0xff]
    %413 = vmatpush.msra.mxu0 %v410
    %414 = vmatpush.msra.mxu0 %v407
    %415 = vmatpush.msra.mxu0 %v404
    %416 = vmatpush.msra.mxu0 %v401
    %417 = vmatpush.msra.mxu0 %v398
    %418 = vmatpush.msra.mxu0 %v395
    %419 = vmatpush.msra.mxu0 %v392
    %420 = vmatpush.msra.mxu0 %v389
    %421 = vmatpush.msra.mxu0 %v386
    %422 = vmatpush.msra.mxu0 %v383
    %423 = vmatpush.msra.mxu0 %v380
    %424 = vmatpush.msra.mxu0 %v377
    %425 = vmatpush.msra.mxu0 %v374
    %426 = vmatpush.msra.mxu0 %v371
    %427 = vmatpush.msra.mxu0 %v368
    %428 = vmatpush.msra.mxu0 %v365
    %429 = vmatmul.f32.gmra.mxu0 %v358
    %v430 = vpop.f32.mrf.mxu0
    %v431 = vadd.f32 0.0, %v430
    %432 = vdwg.mxu0
    %433 = vmatpush.msra.mxu0 %v411
    %434 = vmatpush.msra.mxu0 %v408
    %435 = vmatpush.msra.mxu0 %v405
    %436 = vmatpush.msra.mxu0 %v402
    %437 = vmatpush.msra.mxu0 %v399
    %438 = vmatpush.msra.mxu0 %v396
    %439 = vmatpush.msra.mxu0 %v393
    %440 = vmatpush.msra.mxu0 %v390
    %441 = vmatpush.msra.mxu0 %v387
    %442 = vmatpush.msra.mxu0 %v384
    %443 = vmatpush.msra.mxu0 %v381
    %444 = vmatpush.msra.mxu0 %v378
    %445 = vmatpush.msra.mxu0 %v375
    %446 = vmatpush.msra.mxu0 %v372
    %447 = vmatpush.msra.mxu0 %v369
    %448 = vmatpush.msra.mxu0 %v366
    %449 = vmatmul.f32.gmra.mxu0 %v358
    %v450 = vpop.f32.mrf.mxu0
    %v451 = vadd.f32 0.0, %v450
    %452 = vdwg.mxu0
    %453 = vmatpush.msra.mxu0 %v412
    %454 = vmatpush.msra.mxu0 %v409
    %455 = vmatpush.msra.mxu0 %v406
    %456 = vmatpush.msra.mxu0 %v403
    %457 = vmatpush.msra.mxu0 %v400
    %458 = vmatpush.msra.mxu0 %v397
    %459 = vmatpush.msra.mxu0 %v394
    %460 = vmatpush.msra.mxu0 %v391
    %461 = vmatpush.msra.mxu0 %v388
    %462 = vmatpush.msra.mxu0 %v385
    %463 = vmatpush.msra.mxu0 %v382
    %464 = vmatpush.msra.mxu0 %v379
    %465 = vmatpush.msra.mxu0 %v376
    %466 = vmatpush.msra.mxu0 %v373
    %467 = vmatpush.msra.mxu0 %v370
    %468 = vmatpush.msra.mxu0 %v367
    %469 = vmatmul.f32.gmra.mxu0 %v358
    %v470 = vpop.f32.mrf.mxu0
    %v471 = vadd.f32 0.0, %v470
    %472 = vdwg.mxu0
    %v473 = vadd.f32 %v362, %v431
    %v474 = vsub.f32 0.0, %v473
    %v475 = vmul.f32 %v474, 1.442695
    %v476 = vpow.pop %v475
    %v477 = vadd.f32 %v476, 1.0
    %v478 = vrcp.pop %v477
    %v479 = vadd.f32 %v363, %v451
    %v480 = vsub.f32 0.0, %v479
    %v481 = vmul.f32 %v480, 1.442695
    %v482 = vpow.pop %v481
    %v483 = vadd.f32 %v482, 1.0
    %v484 = vrcp.pop %v483
    %v486 = vperm.slane %v147, 0
    %v488 = vadd.f32 %v471, %v486
    %v489 = vmul.f32 %v478, %v488
    %v490 = vadd.f32 %v364, %v489
    %v491 = vtanh.pop %v490
    %v492 = vsub.f32 1.0, %v484
    %v493 = vmul.f32 %v492, %v491
    %v494 = vmul.f32 %v484, %v358
    %v495 = vadd.f32 %v493, %v494
    %496 = vst [vmem:[#allocation15] sm:$0xff] %v495
    %s497 = smul.u32 1, 3
    %s498 = smul.addr %s497, 8
    %s499 = scalar_lea.vmem [#allocation2], %s498
    %v500 = vld [vmem:[%s499] sm:$0xff]
    %v501 = vld [vmem:[%s499 + $0x8] sm:$0xff]
    %v502 = vld [vmem:[%s499 + $0x10] sm:$0xff]
    %v503 = vld [vmem:[#allocation9] sm:$0xff]
    %v504 = vld [vmem:[#allocation9 + $0x8] sm:$0xff]
    %v505 = vld [vmem:[#allocation9 + $0x10] sm:$0xff]
    %v506 = vld [vmem:[#allocation9 + $0x18] sm:$0xff]
    %v507 = vld [vmem:[#allocation9 + $0x20] sm:$0xff]
    %v508 = vld [vmem:[#allocation9 + $0x28] sm:$0xff]
    %v509 = vld [vmem:[#allocation9 + $0x30] sm:$0xff]
    %v510 = vld [vmem:[#allocation9 + $0x38] sm:$0xff]
    %v511 = vld [vmem:[#allocation9 + $0x40] sm:$0xff]
    %v512 = vld [vmem:[#allocation9 + $0x48] sm:$0xff]
    %v513 = vld [vmem:[#allocation9 + $0x50] sm:$0xff]
    %v514 = vld [vmem:[#allocation9 + $0x58] sm:$0xff]
    %v515 = vld [vmem:[#allocation9 + $0x60] sm:$0xff]
    %v516 = vld [vmem:[#allocation9 + $0x68] sm:$0xff]
    %v517 = vld [vmem:[#allocation9 + $0x70] sm:$0xff]
    %v518 = vld [vmem:[#allocation9 + $0x78] sm:$0xff]
    %v519 = vld [vmem:[#allocation9 + $0x80] sm:$0xff]
    %v520 = vld [vmem:[#allocation9 + $0x88] sm:$0xff]
    %v521 = vld [vmem:[#allocation9 + $0x90] sm:$0xff]
    %v522 = vld [vmem:[#allocation9 + $0x98] sm:$0xff]
    %v523 = vld [vmem:[#allocation9 + $0xa0] sm:$0xff]
    %v524 = vld [vmem:[#allocation9 + $0xa8] sm:$0xff]
    %v525 = vld [vmem:[#allocation9 + $0xb0] sm:$0xff]
    %v526 = vld [vmem:[#allocation9 + $0xb8] sm:$0xff]
    %v527 = vld [vmem:[#allocation9 + $0xc0] sm:$0xff]
    %v528 = vld [vmem:[#allocation9 + $0xc8] sm:$0xff]
    %v529 = vld [vmem:[#allocation9 + $0xd0] sm:$0xff]
    %v530 = vld [vmem:[#allocation9 + $0xd8] sm:$0xff]
    %v531 = vld [vmem:[#allocation9 + $0xe0] sm:$0xff]
    %v532 = vld [vmem:[#allocation9 + $0xe8] sm:$0xff]
    %v533 = vld [vmem:[#allocation9 + $0xf0] sm:$0xff]
    %v534 = vld [vmem:[#allocation9 + $0xf8] sm:$0xff]
    %v535 = vld [vmem:[#allocation9 + $0x100] sm:$0xff]
    %v536 = vld [vmem:[#allocation9 + $0x108] sm:$0xff]
    %v537 = vld [vmem:[#allocation9 + $0x110] sm:$0xff]
    %v538 = vld [vmem:[#allocation9 + $0x118] sm:$0xff]
    %v539 = vld [vmem:[#allocation9 + $0x120] sm:$0xff]
    %v540 = vld [vmem:[#allocation9 + $0x128] sm:$0xff]
    %v541 = vld [vmem:[#allocation9 + $0x130] sm:$0xff]
    %v542 = vld [vmem:[#allocation9 + $0x138] sm:$0xff]
    %v543 = vld [vmem:[#allocation9 + $0x140] sm:$0xff]
    %v544 = vld [vmem:[#allocation9 + $0x148] sm:$0xff]
    %v545 = vld [vmem:[#allocation9 + $0x150] sm:$0xff]
    %v546 = vld [vmem:[#allocation9 + $0x158] sm:$0xff]
    %v547 = vld [vmem:[#allocation9 + $0x160] sm:$0xff]
    %v548 = vld [vmem:[#allocation9 + $0x168] sm:$0xff]
    %v549 = vld [vmem:[#allocation9 + $0x170] sm:$0xff]
    %v550 = vld [vmem:[#allocation9 + $0x178] sm:$0xff]
    %551 = vmatpush.msra.mxu0 %v548
    %552 = vmatpush.msra.mxu0 %v545
    %553 = vmatpush.msra.mxu0 %v542
    %554 = vmatpush.msra.mxu0 %v539
    %555 = vmatpush.msra.mxu0 %v536
    %556 = vmatpush.msra.mxu0 %v533
    %557 = vmatpush.msra.mxu0 %v530
    %558 = vmatpush.msra.mxu0 %v527
    %559 = vmatpush.msra.mxu0 %v524
    %560 = vmatpush.msra.mxu0 %v521
    %561 = vmatpush.msra.mxu0 %v518
    %562 = vmatpush.msra.mxu0 %v515
    %563 = vmatpush.msra.mxu0 %v512
    %564 = vmatpush.msra.mxu0 %v509
    %565 = vmatpush.msra.mxu0 %v506
    %566 = vmatpush.msra.mxu0 %v503
    %567 = vmatmul.f32.gmra.mxu0 %v495
    %v568 = vpop.f32.mrf.mxu0
    %v569 = vadd.f32 0.0, %v568
    %570 = vdwg.mxu0
    %571 = vmatpush.msra.mxu0 %v549
    %572 = vmatpush.msra.mxu0 %v546
    %573 = vmatpush.msra.mxu0 %v543
    %574 = vmatpush.msra.mxu0 %v540
    %575 = vmatpush.msra.mxu0 %v537
    %576 = vmatpush.msra.mxu0 %v534
    %577 = vmatpush.msra.mxu0 %v531
    %578 = vmatpush.msra.mxu0 %v528
    %579 = vmatpush.msra.mxu0 %v525
    %580 = vmatpush.msra.mxu0 %v522
    %581 = vmatpush.msra.mxu0 %v519
    %582 = vmatpush.msra.mxu0 %v516
    %583 = vmatpush.msra.mxu0 %v513
    %584 = vmatpush.msra.mxu0 %v510
    %585 = vmatpush.msra.mxu0 %v507
    %586 = vmatpush.msra.mxu0 %v504
    %587 = vmatmul.f32.gmra.mxu0 %v495
    %v588 = vpop.f32.mrf.mxu0
    %v589 = vadd.f32 0.0, %v588
    %590 = vdwg.mxu0
    %591 = vmatpush.msra.mxu0 %v550
    %592 = vmatpush.msra.mxu0 %v547
    %593 = vmatpush.msra.mxu0 %v544
    %594 = vmatpush.msra.mxu0 %v541
    %595 = vmatpush.msra.mxu0 %v538
    %596 = vmatpush.msra.mxu0 %v535
    %597 = vmatpush.msra.mxu0 %v532
    %598 = vmatpush.msra.mxu0 %v529
    %599 = vmatpush.msra.mxu0 %v526
    %600 = vmatpush.msra.mxu0 %v523
    %601 = vmatpush.msra.mxu0 %v520
    %602 = vmatpush.msra.mxu0 %v517
    %603 = vmatpush.msra.mxu0 %v514
    %604 = vmatpush.msra.mxu0 %v511
    %605 = vmatpush.msra.mxu0 %v508
    %606 = vmatpush.msra.mxu0 %v505
    %607 = vmatmul.f32.gmra.mxu0 %v495
    %v608 = vpop.f32.mrf.mxu0
    %v609 = vadd.f32 0.0, %v608
    %610 = vdwg.mxu0
    %v611 = vadd.f32 %v500, %v569
    %v612 = vsub.f32 0.0, %v611
    %v613 = vmul.f32 %v612, 1.442695
    %v614 = vpow.pop %v613
    %v615 = vadd.f32 %v614, 1.0
    %v616 = vrcp.pop %v615
    %v617 = vadd.f32 %v501, %v589
    %v618 = vsub.f32 0.0, %v617
    %v619 = vmul.f32 %v618, 1.442695
    %v620 = vpow.pop %v619
    %v621 = vadd.f32 %v620, 1.0
    %v622 = vrcp.pop %v621
    %v623 = vadd.f32 %v609, %v486
    %v624 = vmul.f32 %v616, %v623
    %v625 = vadd.f32 %v502, %v624
    %v626 = vtanh.pop %v625
    %v627 = vsub.f32 1.0, %v622
    %v628 = vmul.f32 %v627, %v626
    %v629 = vmul.f32 %v622, %v495
    %v630 = vadd.f32 %v628, %v629
    %s631 = scalar_lea.vmem [#allocation15], 8
    %632 = vst [vmem:[%s631] sm:$0xff] %v630
    %s633 = smul.u32 2, 3
    %s634 = smul.addr %s633, 8
    %s635 = scalar_lea.vmem [#allocation2], %s634
    %v636 = vld [vmem:[%s635] sm:$0xff]
    %v637 = vld [vmem:[%s635 + $0x8] sm:$0xff]
    %v638 = vld [vmem:[%s635 + $0x10] sm:$0xff]
    %v639 = vld [vmem:[#allocation9] sm:$0xff]
    %v640 = vld [vmem:[#allocation9 + $0x8] sm:$0xff]
    %v641 = vld [vmem:[#allocation9 + $0x10] sm:$0xff]
    %v642 = vld [vmem:[#allocation9 + $0x18] sm:$0xff]
    %v643 = vld [vmem:[#allocation9 + $0x20] sm:$0xff]
    %v644 = vld [vmem:[#allocation9 + $0x28] sm:$0xff]
    %v645 = vld [vmem:[#allocation9 + $0x30] sm:$0xff]
    %v646 = vld [vmem:[#allocation9 + $0x38] sm:$0xff]
    %v647 = vld [vmem:[#allocation9 + $0x40] sm:$0xff]
    %v648 = vld [vmem:[#allocation9 + $0x48] sm:$0xff]
    %v649 = vld [vmem:[#allocation9 + $0x50] sm:$0xff]
    %v650 = vld [vmem:[#allocation9 + $0x58] sm:$0xff]
    %v651 = vld [vmem:[#allocation9 + $0x60] sm:$0xff]
    %v652 = vld [vmem:[#allocation9 + $0x68] sm:$0xff]
    %v653 = vld [vmem:[#allocation9 + $0x70] sm:$0xff]
    %v654 = vld [vmem:[#allocation9 + $0x78] sm:$0xff]
    %v655 = vld [vmem:[#allocation9 + $0x80] sm:$0xff]
    %v656 = vld [vmem:[#allocation9 + $0x88] sm:$0xff]
    %v657 = vld [vmem:[#allocation9 + $0x90] sm:$0xff]
    %v658 = vld [vmem:[#allocation9 + $0x98] sm:$0xff]
    %v659 = vld [vmem:[#allocation9 + $0xa0] sm:$0xff]
    %v660 = vld [vmem:[#allocation9 + $0xa8] sm:$0xff]
    %v661 = vld [vmem:[#allocation9 + $0xb0] sm:$0xff]
    %v662 = vld [vmem:[#allocation9 + $0xb8] sm:$0xff]
    %v663 = vld [vmem:[#allocation9 + $0xc0] sm:$0xff]
    %v664 = vld [vmem:[#allocation9 + $0xc8] sm:$0xff]
    %v665 = vld [vmem:[#allocation9 + $0xd0] sm:$0xff]
    %v666 = vld [vmem:[#allocation9 + $0xd8] sm:$0xff]
    %v667 = vld [vmem:[#allocation9 + $0xe0] sm:$0xff]
    %v668 = vld [vmem:[#allocation9 + $0xe8] sm:$0xff]
    %v669 = vld [vmem:[#allocation9 + $0xf0] sm:$0xff]
    %v670 = vld [vmem:[#allocation9 + $0xf8] sm:$0xff]
    %v671 = vld [vmem:[#allocation9 + $0x100] sm:$0xff]
    %v672 = vld [vmem:[#allocation9 + $0x108] sm:$0xff]
    %v673 = vld [vmem:[#allocation9 + $0x110] sm:$0xff]
    %v674 = vld [vmem:[#allocation9 + $0x118] sm:$0xff]
    %v675 = vld [vmem:[#allocation9 + $0x120] sm:$0xff]
    %v676 = vld [vmem:[#allocation9 + $0x128] sm:$0xff]
    %v677 = vld [vmem:[#allocation9 + $0x130] sm:$0xff]
    %v678 = vld [vmem:[#allocation9 + $0x138] sm:$0xff]
    %v679 = vld [vmem:[#allocation9 + $0x140] sm:$0xff]
    %v680 = vld [vmem:[#allocation9 + $0x148] sm:$0xff]
    %v681 = vld [vmem:[#allocation9 + $0x150] sm:$0xff]
    %v682 = vld [vmem:[#allocation9 + $0x158] sm:$0xff]
    %v683 = vld [vmem:[#allocation9 + $0x160] sm:$0xff]
    %v684 = vld [vmem:[#allocation9 + $0x168] sm:$0xff]
    %v685 = vld [vmem:[#allocation9 + $0x170] sm:$0xff]
    %v686 = vld [vmem:[#allocation9 + $0x178] sm:$0xff]
    %687 = vmatpush.msra.mxu0 %v684
    %688 = vmatpush.msra.mxu0 %v681
    %689 = vmatpush.msra.mxu0 %v678
    %690 = vmatpush.msra.mxu0 %v675
    %691 = vmatpush.msra.mxu0 %v672
    %692 = vmatpush.msra.mxu0 %v669
    %693 = vmatpush.msra.mxu0 %v666
    %694 = vmatpush.msra.mxu0 %v663
    %695 = vmatpush.msra.mxu0 %v660
    %696 = vmatpush.msra.mxu0 %v657
    %697 = vmatpush.msra.mxu0 %v654
    %698 = vmatpush.msra.mxu0 %v651
    %699 = vmatpush.msra.mxu0 %v648
    %700 = vmatpush.msra.mxu0 %v645
    %701 = vmatpush.msra.mxu0 %v642
    %702 = vmatpush.msra.mxu0 %v639
    %703 = vmatmul.f32.gmra.mxu0 %v630
    %v704 = vpop.f32.mrf.mxu0
    %v705 = vadd.f32 0.0, %v704
    %706 = vdwg.mxu0
    %707 = vmatpush.msra.mxu0 %v685
    %708 = vmatpush.msra.mxu0 %v682
    %709 = vmatpush.msra.mxu0 %v679
    %710 = vmatpush.msra.mxu0 %v676
    %711 = vmatpush.msra.mxu0 %v673
    %712 = vmatpush.msra.mxu0 %v670
    %713 = vmatpush.msra.mxu0 %v667
    %714 = vmatpush.msra.mxu0 %v664
    %715 = vmatpush.msra.mxu0 %v661
    %716 = vmatpush.msra.mxu0 %v658
    %717 = vmatpush.msra.mxu0 %v655
    %718 = vmatpush.msra.mxu0 %v652
    %719 = vmatpush.msra.mxu0 %v649
    %720 = vmatpush.msra.mxu0 %v646
    %721 = vmatpush.msra.mxu0 %v643
    %722 = vmatpush.msra.mxu0 %v640
    %723 = vmatmul.f32.gmra.mxu0 %v630
    %v724 = vpop.f32.mrf.mxu0
    %v725 = vadd.f32 0.0, %v724
    %726 = vdwg.mxu0
    %727 = vmatpush.msra.mxu0 %v686
    %728 = vmatpush.msra.mxu0 %v683
    %729 = vmatpush.msra.mxu0 %v680
    %730 = vmatpush.msra.mxu0 %v677
    %731 = vmatpush.msra.mxu0 %v674
    %732 = vmatpush.msra.mxu0 %v671
    %733 = vmatpush.msra.mxu0 %v668
    %734 = vmatpush.msra.mxu0 %v665
    %735 = vmatpush.msra.mxu0 %v662
    %736 = vmatpush.msra.mxu0 %v659
    %737 = vmatpush.msra.mxu0 %v656
    %738 = vmatpush.msra.mxu0 %v653
    %739 = vmatpush.msra.mxu0 %v650
    %740 = vmatpush.msra.mxu0 %v647
    %741 = vmatpush.msra.mxu0 %v644
    %742 = vmatpush.msra.mxu0 %v641
    %743 = vmatmul.f32.gmra.mxu0 %v630
    %v744 = vpop.f32.mrf.mxu0
    %v745 = vadd.f32 0.0, %v744
    %746 = vdwg.mxu0
    %v747 = vadd.f32 %v636, %v705
    %v748 = vsub.f32 0.0, %v747
    %v749 = vmul.f32 %v748, 1.442695
    %v750 = vpow.pop %v749
    %v751 = vadd.f32 %v750, 1.0
    %v752 = vrcp.pop %v751
    %v753 = vadd.f32 %v637, %v725
    %v754 = vsub.f32 0.0, %v753
    %v755 = vmul.f32 %v754, 1.442695
    %v756 = vpow.pop %v755
    %v757 = vadd.f32 %v756, 1.0
    %v758 = vrcp.pop %v757
    %v759 = vadd.f32 %v745, %v486
    %v760 = vmul.f32 %v752, %v759
    %v761 = vadd.f32 %v638, %v760
    %v762 = vtanh.pop %v761
    %v763 = vsub.f32 1.0, %v758
    %v764 = vmul.f32 %v763, %v762
    %v765 = vmul.f32 %v758, %v630
    %v766 = vadd.f32 %v764, %v765
    %s767 = scalar_lea.vmem [#allocation15], 16
    %768 = vst [vmem:[%s767] sm:$0xff] %v766
    %s769 = smul.u32 3, 3
    %s770 = smul.addr %s769, 8
    %s771 = scalar_lea.vmem [#allocation2], %s770
    %v772 = vld [vmem:[%s771] sm:$0xff]
    %v773 = vld [vmem:[%s771 + $0x8] sm:$0xff]
    %v774 = vld [vmem:[%s771 + $0x10] sm:$0xff]
    %v775 = vld [vmem:[#allocation9] sm:$0xff]
    %v776 = vld [vmem:[#allocation9 + $0x8] sm:$0xff]
    %v777 = vld [vmem:[#allocation9 + $0x10] sm:$0xff]
    %v778 = vld [vmem:[#allocation9 + $0x18] sm:$0xff]
    %v779 = vld [vmem:[#allocation9 + $0x20] sm:$0xff]
    %v780 = vld [vmem:[#allocation9 + $0x28] sm:$0xff]
    %v781 = vld [vmem:[#allocation9 + $0x30] sm:$0xff]
    %v782 = vld [vmem:[#allocation9 + $0x38] sm:$0xff]
    %v783 = vld [vmem:[#allocation9 + $0x40] sm:$0xff]
    %v784 = vld [vmem:[#allocation9 + $0x48] sm:$0xff]
    %v785 = vld [vmem:[#allocation9 + $0x50] sm:$0xff]
    %v786 = vld [vmem:[#allocation9 + $0x58] sm:$0xff]
    %v787 = vld [vmem:[#allocation9 + $0x60] sm:$0xff]
    %v788 = vld [vmem:[#allocation9 + $0x68] sm:$0xff]
    %v789 = vld [vmem:[#allocation9 + $0x70] sm:$0xff]
    %v790 = vld [vmem:[#allocation9 + $0x78] sm:$0xff]
    %v791 = vld [vmem:[#allocation9 + $0x80] sm:$0xff]
    %v792 = vld [vmem:[#allocation9 + $0x88] sm:$0xff]
    %v793 = vld [vmem:[#allocation9 + $0x90] sm:$0xff]
    %v794 = vld [vmem:[#allocation9 + $0x98] sm:$0xff]
    %v795 = vld [vmem:[#allocation9 + $0xa0] sm:$0xff]
    %v796 = vld [vmem:[#allocation9 + $0xa8] sm:$0xff]
    %v797 = vld [vmem:[#allocation9 + $0xb0] sm:$0xff]
    %v798 = vld [vmem:[#allocation9 + $0xb8] sm:$0xff]
    %v799 = vld [vmem:[#allocation9 + $0xc0] sm:$0xff]
    %v800 = vld [vmem:[#allocation9 + $0xc8] sm:$0xff]
    %v801 = vld [vmem:[#allocation9 + $0xd0] sm:$0xff]
    %v802 = vld [vmem:[#allocation9 + $0xd8] sm:$0xff]
    %v803 = vld [vmem:[#allocation9 + $0xe0] sm:$0xff]
    %v804 = vld [vmem:[#allocation9 + $0xe8] sm:$0xff]
    %v805 = vld [vmem:[#allocation9 + $0xf0] sm:$0xff]
    %v806 = vld [vmem:[#allocation9 + $0xf8] sm:$0xff]
    %v807 = vld [vmem:[#allocation9 + $0x100] sm:$0xff]
    %v808 = vld [vmem:[#allocation9 + $0x108] sm:$0xff]
    %v809 = vld [vmem:[#allocation9 + $0x110] sm:$0xff]
    %v810 = vld [vmem:[#allocation9 + $0x118] sm:$0xff]
    %v811 = vld [vmem:[#allocation9 + $0x120] sm:$0xff]
    %v812 = vld [vmem:[#allocation9 + $0x128] sm:$0xff]
    %v813 = vld [vmem:[#allocation9 + $0x130] sm:$0xff]
    %v814 = vld [vmem:[#allocation9 + $0x138] sm:$0xff]
    %v815 = vld [vmem:[#allocation9 + $0x140] sm:$0xff]
    %v816 = vld [vmem:[#allocation9 + $0x148] sm:$0xff]
    %v817 = vld [vmem:[#allocation9 + $0x150] sm:$0xff]
    %v818 = vld [vmem:[#allocation9 + $0x158] sm:$0xff]
    %v819 = vld [vmem:[#allocation9 + $0x160] sm:$0xff]
    %v820 = vld [vmem:[#allocation9 + $0x168] sm:$0xff]
    %v821 = vld [vmem:[#allocation9 + $0x170] sm:$0xff]
    %v822 = vld [vmem:[#allocation9 + $0x178] sm:$0xff]
    %823 = vmatpush.msra.mxu0 %v820
    %824 = vmatpush.msra.mxu0 %v817
    %825 = vmatpush.msra.mxu0 %v814
    %826 = vmatpush.msra.mxu0 %v811
    %827 = vmatpush.msra.mxu0 %v808
    %828 = vmatpush.msra.mxu0 %v805
    %829 = vmatpush.msra.mxu0 %v802
    %830 = vmatpush.msra.mxu0 %v799
    %831 = vmatpush.msra.mxu0 %v796
    %832 = vmatpush.msra.mxu0 %v793
    %833 = vmatpush.msra.mxu0 %v790
    %834 = vmatpush.msra.mxu0 %v787
    %835 = vmatpush.msra.mxu0 %v784
    %836 = vmatpush.msra.mxu0 %v781
    %837 = vmatpush.msra.mxu0 %v778
    %838 = vmatpush.msra.mxu0 %v775
    %839 = vmatmul.f32.gmra.mxu0 %v766
    %v840 = vpop.f32.mrf.mxu0
    %v841 = vadd.f32 0.0, %v840
    %842 = vdwg.mxu0
    %843 = vmatpush.msra.mxu0 %v821
    %844 = vmatpush.msra.mxu0 %v818
    %845 = vmatpush.msra.mxu0 %v815
    %846 = vmatpush.msra.mxu0 %v812
    %847 = vmatpush.msra.mxu0 %v809
    %848 = vmatpush.msra.mxu0 %v806
    %849 = vmatpush.msra.mxu0 %v803
    %850 = vmatpush.msra.mxu0 %v800
    %851 = vmatpush.msra.mxu0 %v797
    %852 = vmatpush.msra.mxu0 %v794
    %853 = vmatpush.msra.mxu0 %v791
    %854 = vmatpush.msra.mxu0 %v788
    %855 = vmatpush.msra.mxu0 %v785
    %856 = vmatpush.msra.mxu0 %v782
    %857 = vmatpush.msra.mxu0 %v779
    %858 = vmatpush.msra.mxu0 %v776
    %859 = vmatmul.f32.gmra.mxu0 %v766
    %v860 = vpop.f32.mrf.mxu0
    %v861 = vadd.f32 0.0, %v860
    %862 = vdwg.mxu0
    %863 = vmatpush.msra.mxu0 %v822
    %864 = vmatpush.msra.mxu0 %v819
    %865 = vmatpush.msra.mxu0 %v816
    %866 = vmatpush.msra.mxu0 %v813
    %867 = vmatpush.msra.mxu0 %v810
    %868 = vmatpush.msra.mxu0 %v807
    %869 = vmatpush.msra.mxu0 %v804
    %870 = vmatpush.msra.mxu0 %v801
    %871 = vmatpush.msra.mxu0 %v798
    %872 = vmatpush.msra.mxu0 %v795
    %873 = vmatpush.msra.mxu0 %v792
    %874 = vmatpush.msra.mxu0 %v789
    %875 = vmatpush.msra.mxu0 %v786
    %876 = vmatpush.msra.mxu0 %v783
    %877 = vmatpush.msra.mxu0 %v780
    %878 = vmatpush.msra.mxu0 %v777
    %879 = vmatmul.f32.gmra.mxu0 %v766
    %v880 = vpop.f32.mrf.mxu0
    %v881 = vadd.f32 0.0, %v880
    %882 = vdwg.mxu0
    %v883 = vadd.f32 %v772, %v841
    %v884 = vsub.f32 0.0, %v883
    %v885 = vmul.f32 %v884, 1.442695
    %v886 = vpow.pop %v885
    %v887 = vadd.f32 %v886, 1.0
    %v888 = vrcp.pop %v887
    %v889 = vadd.f32 %v773, %v861
    %v890 = vsub.f32 0.0, %v889
    %v891 = vmul.f32 %v890, 1.442695
    %v892 = vpow.pop %v891
    %v893 = vadd.f32 %v892, 1.0
    %v894 = vrcp.pop %v893
    %v895 = vadd.f32 %v881, %v486
    %v896 = vmul.f32 %v888, %v895
    %v897 = vadd.f32 %v774, %v896
    %v898 = vtanh.pop %v897
    %v899 = vsub.f32 1.0, %v894
    %v900 = vmul.f32 %v899, %v898
    %v901 = vmul.f32 %v894, %v766
    %v902 = vadd.f32 %v900, %v901
    %s903 = scalar_lea.vmem [#allocation15], 24
    %904 = vst [vmem:[%s903] sm:$0xff] %v902
    %s905 = smul.u32 4, 3
    %s906 = smul.addr %s905, 8
    %s907 = scalar_lea.vmem [#allocation2], %s906
    %v908 = vld [vmem:[%s907] sm:$0xff]
    %v909 = vld [vmem:[%s907 + $0x8] sm:$0xff]
    %v910 = vld [vmem:[%s907 + $0x10] sm:$0xff]
    %v911 = vld [vmem:[#allocation9] sm:$0xff]
    %v912 = vld [vmem:[#allocation9 + $0x8] sm:$0xff]
    %v913 = vld [vmem:[#allocation9 + $0x10] sm:$0xff]
    %v914 = vld [vmem:[#allocation9 + $0x18] sm:$0xff]
    %v915 = vld [vmem:[#allocation9 + $0x20] sm:$0xff]
    %v916 = vld [vmem:[#allocation9 + $0x28] sm:$0xff]
    %v917 = vld [vmem:[#allocation9 + $0x30] sm:$0xff]
    %v918 = vld [vmem:[#allocation9 + $0x38] sm:$0xff]
    %v919 = vld [vmem:[#allocation9 + $0x40] sm:$0xff]
    %v920 = vld [vmem:[#allocation9 + $0x48] sm:$0xff]
    %v921 = vld [vmem:[#allocation9 + $0x50] sm:$0xff]
    %v922 = vld [vmem:[#allocation9 + $0x58] sm:$0xff]
    %v923 = vld [vmem:[#allocation9 + $0x60] sm:$0xff]
    %v924 = vld [vmem:[#allocation9 + $0x68] sm:$0xff]
    %v925 = vld [vmem:[#allocation9 + $0x70] sm:$0xff]
    %v926 = vld [vmem:[#allocation9 + $0x78] sm:$0xff]
    %v927 = vld [vmem:[#allocation9 + $0x80] sm:$0xff]
    %v928 = vld [vmem:[#allocation9 + $0x88] sm:$0xff]
    %v929 = vld [vmem:[#allocation9 + $0x90] sm:$0xff]
    %v930 = vld [vmem:[#allocation9 + $0x98] sm:$0xff]
    %v931 = vld [vmem:[#allocation9 + $0xa0] sm:$0xff]
    %v932 = vld [vmem:[#allocation9 + $0xa8] sm:$0xff]
    %v933 = vld [vmem:[#allocation9 + $0xb0] sm:$0xff]
    %v934 = vld [vmem:[#allocation9 + $0xb8] sm:$0xff]
    %v935 = vld [vmem:[#allocation9 + $0xc0] sm:$0xff]
    %v936 = vld [vmem:[#allocation9 + $0xc8] sm:$0xff]
    %v937 = vld [vmem:[#allocation9 + $0xd0] sm:$0xff]
    %v938 = vld [vmem:[#allocation9 + $0xd8] sm:$0xff]
    %v939 = vld [vmem:[#allocation9 + $0xe0] sm:$0xff]
    %v940 = vld [vmem:[#allocation9 + $0xe8] sm:$0xff]
    %v941 = vld [vmem:[#allocation9 + $0xf0] sm:$0xff]
    %v942 = vld [vmem:[#allocation9 + $0xf8] sm:$0xff]
    %v943 = vld [vmem:[#allocation9 + $0x100] sm:$0xff]
    %v944 = vld [vmem:[#allocation9 + $0x108] sm:$0xff]
    %v945 = vld [vmem:[#allocation9 + $0x110] sm:$0xff]
    %v946 = vld [vmem:[#allocation9 + $0x118] sm:$0xff]
    %v947 = vld [vmem:[#allocation9 + $0x120] sm:$0xff]
    %v948 = vld [vmem:[#allocation9 + $0x128] sm:$0xff]
    %v949 = vld [vmem:[#allocation9 + $0x130] sm:$0xff]
    %v950 = vld [vmem:[#allocation9 + $0x138] sm:$0xff]
    %v951 = vld [vmem:[#allocation9 + $0x140] sm:$0xff]
    %v952 = vld [vmem:[#allocation9 + $0x148] sm:$0xff]
    %v953 = vld [vmem:[#allocation9 + $0x150] sm:$0xff]
    %v954 = vld [vmem:[#allocation9 + $0x158] sm:$0xff]
    %v955 = vld [vmem:[#allocation9 + $0x160] sm:$0xff]
    %v956 = vld [vmem:[#allocation9 + $0x168] sm:$0xff]
    %v957 = vld [vmem:[#allocation9 + $0x170] sm:$0xff]
    %v958 = vld [vmem:[#allocation9 + $0x178] sm:$0xff]
    %959 = vmatpush.msra.mxu0 %v956
    %960 = vmatpush.msra.mxu0 %v953
    %961 = vmatpush.msra.mxu0 %v950
    %962 = vmatpush.msra.mxu0 %v947
    %963 = vmatpush.msra.mxu0 %v944
    %964 = vmatpush.msra.mxu0 %v941
    %965 = vmatpush.msra.mxu0 %v938
    %966 = vmatpush.msra.mxu0 %v935
    %967 = vmatpush.msra.mxu0 %v932
    %968 = vmatpush.msra.mxu0 %v929
    %969 = vmatpush.msra.mxu0 %v926
    %970 = vmatpush.msra.mxu0 %v923
    %971 = vmatpush.msra.mxu0 %v920
    %972 = vmatpush.msra.mxu0 %v917
    %973 = vmatpush.msra.mxu0 %v914
    %974 = vmatpush.msra.mxu0 %v911
    %975 = vmatmul.f32.gmra.mxu0 %v902
    %v976 = vpop.f32.mrf.mxu0
    %v977 = vadd.f32 0.0, %v976
    %978 = vdwg.mxu0
    %979 = vmatpush.msra.mxu0 %v957
    %980 = vmatpush.msra.mxu0 %v954
    %981 = vmatpush.msra.mxu0 %v951
    %982 = vmatpush.msra.mxu0 %v948
    %983 = vmatpush.msra.mxu0 %v945
    %984 = vmatpush.msra.mxu0 %v942
    %985 = vmatpush.msra.mxu0 %v939
    %986 = vmatpush.msra.mxu0 %v936
    %987 = vmatpush.msra.mxu0 %v933
    %988 = vmatpush.msra.mxu0 %v930
    %989 = vmatpush.msra.mxu0 %v927
    %990 = vmatpush.msra.mxu0 %v924
    %991 = vmatpush.msra.mxu0 %v921
    %992 = vmatpush.msra.mxu0 %v918
    %993 = vmatpush.msra.mxu0 %v915
    %994 = vmatpush.msra.mxu0 %v912
    %995 = vmatmul.f32.gmra.mxu0 %v902
    %v996 = vpop.f32.mrf.mxu0
    %v997 = vadd.f32 0.0, %v996
    %998 = vdwg.mxu0
    %999 = vmatpush.msra.mxu0 %v958
    %1000 = vmatpush.msra.mxu0 %v955
    %1001 = vmatpush.msra.mxu0 %v952
    %1002 = vmatpush.msra.mxu0 %v949
    %1003 = vmatpush.msra.mxu0 %v946
    %1004 = vmatpush.msra.mxu0 %v943
    %1005 = vmatpush.msra.mxu0 %v940
    %1006 = vmatpush.msra.mxu0 %v937
    %1007 = vmatpush.msra.mxu0 %v934
    %1008 = vmatpush.msra.mxu0 %v931
    %1009 = vmatpush.msra.mxu0 %v928
    %1010 = vmatpush.msra.mxu0 %v925
    %1011 = vmatpush.msra.mxu0 %v922
    %1012 = vmatpush.msra.mxu0 %v919
    %1013 = vmatpush.msra.mxu0 %v916
    %1014 = vmatpush.msra.mxu0 %v913
    %1015 = vmatmul.f32.gmra.mxu0 %v902
    %v1016 = vpop.f32.mrf.mxu0
    %v1017 = vadd.f32 0.0, %v1016
    %1018 = vdwg.mxu0
    %v1019 = vadd.f32 %v908, %v977
    %v1020 = vsub.f32 0.0, %v1019
    %v1021 = vmul.f32 %v1020, 1.442695
    %v1022 = vpow.pop %v1021
    %v1023 = vadd.f32 %v1022, 1.0
    %v1024 = vrcp.pop %v1023
    %v1025 = vadd.f32 %v909, %v997
    %v1026 = vsub.f32 0.0, %v1025
    %v1027 = vmul.f32 %v1026, 1.442695
    %v1028 = vpow.pop %v1027
    %v1029 = vadd.f32 %v1028, 1.0
    %v1030 = vrcp.pop %v1029
    %v1031 = vadd.f32 %v1017, %v486
    %v1032 = vmul.f32 %v1024, %v1031
    %v1033 = vadd.f32 %v910, %v1032
    %v1034 = vtanh.pop %v1033
    %v1035 = vsub.f32 1.0, %v1030
    %v1036 = vmul.f32 %v1035, %v1034
    %v1037 = vmul.f32 %v1030, %v902
    %v1038 = vadd.f32 %v1036, %v1037
    %s1039 = scalar_lea.vmem [#allocation15], 32
    %1040 = vst [vmem:[%s1039] sm:$0xff] %v1038
    %s1041 = smul.u32 5, 3
    %s1042 = smul.addr %s1041, 8
    %s1043 = scalar_lea.vmem [#allocation2], %s1042
    %v1044 = vld [vmem:[%s1043] sm:$0xff]
    %v1045 = vld [vmem:[%s1043 + $0x8] sm:$0xff]
    %v1046 = vld [vmem:[%s1043 + $0x10] sm:$0xff]
    %v1047 = vld [vmem:[#allocation9] sm:$0xff]
    %v1048 = vld [vmem:[#allocation9 + $0x8] sm:$0xff]
    %v1049 = vld [vmem:[#allocation9 + $0x10] sm:$0xff]
    %v1050 = vld [vmem:[#allocation9 + $0x18] sm:$0xff]
    %v1051 = vld [vmem:[#allocation9 + $0x20] sm:$0xff]
    %v1052 = vld [vmem:[#allocation9 + $0x28] sm:$0xff]
    %v1053 = vld [vmem:[#allocation9 + $0x30] sm:$0xff]
    %v1054 = vld [vmem:[#allocation9 + $0x38] sm:$0xff]
    %v1055 = vld [vmem:[#allocation9 + $0x40] sm:$0xff]
    %v1056 = vld [vmem:[#allocation9 + $0x48] sm:$0xff]
    %v1057 = vld [vmem:[#allocation9 + $0x50] sm:$0xff]
    %v1058 = vld [vmem:[#allocation9 + $0x58] sm:$0xff]
    %v1059 = vld [vmem:[#allocation9 + $0x60] sm:$0xff]
    %v1060 = vld [vmem:[#allocation9 + $0x68] sm:$0xff]
    %v1061 = vld [vmem:[#allocation9 + $0x70] sm:$0xff]
    %v1062 = vld [vmem:[#allocation9 + $0x78] sm:$0xff]
    %v1063 = vld [vmem:[#allocation9 + $0x80] sm:$0xff]
    %v1064 = vld [vmem:[#allocation9 + $0x88] sm:$0xff]
    %v1065 = vld [vmem:[#allocation9 + $0x90] sm:$0xff]
    %v1066 = vld [vmem:[#allocation9 + $0x98] sm:$0xff]
    %v1067 = vld [vmem:[#allocation9 + $0xa0] sm:$0xff]
    %v1068 = vld [vmem:[#allocation9 + $0xa8] sm:$0xff]
    %v1069 = vld [vmem:[#allocation9 + $0xb0] sm:$0xff]
    %v1070 = vld [vmem:[#allocation9 + $0xb8] sm:$0xff]
    %v1071 = vld [vmem:[#allocation9 + $0xc0] sm:$0xff]
    %v1072 = vld [vmem:[#allocation9 + $0xc8] sm:$0xff]
    %v1073 = vld [vmem:[#allocation9 + $0xd0] sm:$0xff]
    %v1074 = vld [vmem:[#allocation9 + $0xd8] sm:$0xff]
    %v1075 = vld [vmem:[#allocation9 + $0xe0] sm:$0xff]
    %v1076 = vld [vmem:[#allocation9 + $0xe8] sm:$0xff]
    %v1077 = vld [vmem:[#allocation9 + $0xf0] sm:$0xff]
    %v1078 = vld [vmem:[#allocation9 + $0xf8] sm:$0xff]
    %v1079 = vld [vmem:[#allocation9 + $0x100] sm:$0xff]
    %v1080 = vld [vmem:[#allocation9 + $0x108] sm:$0xff]
    %v1081 = vld [vmem:[#allocation9 + $0x110] sm:$0xff]
    %v1082 = vld [vmem:[#allocation9 + $0x118] sm:$0xff]
    %v1083 = vld [vmem:[#allocation9 + $0x120] sm:$0xff]
    %v1084 = vld [vmem:[#allocation9 + $0x128] sm:$0xff]
    %v1085 = vld [vmem:[#allocation9 + $0x130] sm:$0xff]
    %v1086 = vld [vmem:[#allocation9 + $0x138] sm:$0xff]
    %v1087 = vld [vmem:[#allocation9 + $0x140] sm:$0xff]
    %v1088 = vld [vmem:[#allocation9 + $0x148] sm:$0xff]
    %v1089 = vld [vmem:[#allocation9 + $0x150] sm:$0xff]
    %v1090 = vld [vmem:[#allocation9 + $0x158] sm:$0xff]
    %v1091 = vld [vmem:[#allocation9 + $0x160] sm:$0xff]
    %v1092 = vld [vmem:[#allocation9 + $0x168] sm:$0xff]
    %v1093 = vld [vmem:[#allocation9 + $0x170] sm:$0xff]
    %v1094 = vld [vmem:[#allocation9 + $0x178] sm:$0xff]
    %1095 = vmatpush.msra.mxu0 %v1092
    %1096 = vmatpush.msra.mxu0 %v1089
    %1097 = vmatpush.msra.mxu0 %v1086
    %1098 = vmatpush.msra.mxu0 %v1083
    %1099 = vmatpush.msra.mxu0 %v1080
    %1100 = vmatpush.msra.mxu0 %v1077
    %1101 = vmatpush.msra.mxu0 %v1074
    %1102 = vmatpush.msra.mxu0 %v1071
    %1103 = vmatpush.msra.mxu0 %v1068
    %1104 = vmatpush.msra.mxu0 %v1065
    %1105 = vmatpush.msra.mxu0 %v1062
    %1106 = vmatpush.msra.mxu0 %v1059
    %1107 = vmatpush.msra.mxu0 %v1056
    %1108 = vmatpush.msra.mxu0 %v1053
    %1109 = vmatpush.msra.mxu0 %v1050
    %1110 = vmatpush.msra.mxu0 %v1047
    %1111 = vmatmul.f32.gmra.mxu0 %v1038
    %v1112 = vpop.f32.mrf.mxu0
    %v1113 = vadd.f32 0.0, %v1112
    %1114 = vdwg.mxu0
    %1115 = vmatpush.msra.mxu0 %v1093
    %1116 = vmatpush.msra.mxu0 %v1090
    %1117 = vmatpush.msra.mxu0 %v1087
    %1118 = vmatpush.msra.mxu0 %v1084
    %1119 = vmatpush.msra.mxu0 %v1081
    %1120 = vmatpush.msra.mxu0 %v1078
    %1121 = vmatpush.msra.mxu0 %v1075
    %1122 = vmatpush.msra.mxu0 %v1072
    %1123 = vmatpush.msra.mxu0 %v1069
    %1124 = vmatpush.msra.mxu0 %v1066
    %1125 = vmatpush.msra.mxu0 %v1063
    %1126 = vmatpush.msra.mxu0 %v1060
    %1127 = vmatpush.msra.mxu0 %v1057
    %1128 = vmatpush.msra.mxu0 %v1054
    %1129 = vmatpush.msra.mxu0 %v1051
    %1130 = vmatpush.msra.mxu0 %v1048
    %1131 = vmatmul.f32.gmra.mxu0 %v1038
    %v1132 = vpop.f32.mrf.mxu0
    %v1133 = vadd.f32 0.0, %v1132
    %1134 = vdwg.mxu0
    %1135 = vmatpush.msra.mxu0 %v1094
    %1136 = vmatpush.msra.mxu0 %v1091
    %1137 = vmatpush.msra.mxu0 %v1088
    %1138 = vmatpush.msra.mxu0 %v1085
    %1139 = vmatpush.msra.mxu0 %v1082
    %1140 = vmatpush.msra.mxu0 %v1079
    %1141 = vmatpush.msra.mxu0 %v1076
    %1142 = vmatpush.msra.mxu0 %v1073
    %1143 = vmatpush.msra.mxu0 %v1070
    %1144 = vmatpush.msra.mxu0 %v1067
    %1145 = vmatpush.msra.mxu0 %v1064
    %1146 = vmatpush.msra.mxu0 %v1061
    %1147 = vmatpush.msra.mxu0 %v1058
    %1148 = vmatpush.msra.mxu0 %v1055
    %1149 = vmatpush.msra.mxu0 %v1052
    %1150 = vmatpush.msra.mxu0 %v1049
    %1151 = vmatmul.f32.gmra.mxu0 %v1038
    %v1152 = vpop.f32.mrf.mxu0
    %v1153 = vadd.f32 0.0, %v1152
    %1154 = vdwg.mxu0
    %v1155 = vadd.f32 %v1044, %v1113
    %v1156 = vsub.f32 0.0, %v1155
    %v1157 = vmul.f32 %v1156, 1.442695
    %v1158 = vpow.pop %v1157
    %v1159 = vadd.f32 %v1158, 1.0
    %v1160 = vrcp.pop %v1159
    %v1161 = vadd.f32 %v1045, %v1133
    %v1162 = vsub.f32 0.0, %v1161
    %v1163 = vmul.f32 %v1162, 1.442695
    %v1164 = vpow.pop %v1163
    %v1165 = vadd.f32 %v1164, 1.0
    %v1166 = vrcp.pop %v1165
    %v1167 = vadd.f32 %v1153, %v486
    %v1168 = vmul.f32 %v1160, %v1167
    %v1169 = vadd.f32 %v1046, %v1168
    %v1170 = vtanh.pop %v1169
    %v1171 = vsub.f32 1.0, %v1166
    %v1172 = vmul.f32 %v1171, %v1170
    %v1173 = vmul.f32 %v1166, %v1038
    %v1174 = vadd.f32 %v1172, %v1173
    %s1175 = scalar_lea.vmem [#allocation15], 40
    %1176 = vst [vmem:[%s1175] sm:$0xff] %v1174
    %s1177 = smul.u32 6, 3
    %s1178 = smul.addr %s1177, 8
    %s1179 = scalar_lea.vmem [#allocation2], %s1178
    %v1180 = vld [vmem:[%s1179] sm:$0xff]
    %v1181 = vld [vmem:[%s1179 + $0x8] sm:$0xff]
    %v1182 = vld [vmem:[%s1179 + $0x10] sm:$0xff]
    %v1183 = vld [vmem:[#allocation9] sm:$0xff]
    %v1184 = vld [vmem:[#allocation9 + $0x8] sm:$0xff]
    %v1185 = vld [vmem:[#allocation9 + $0x10] sm:$0xff]
    %v1186 = vld [vmem:[#allocation9 + $0x18] sm:$0xff]
    %v1187 = vld [vmem:[#allocation9 + $0x20] sm:$0xff]
    %v1188 = vld [vmem:[#allocation9 + $0x28] sm:$0xff]
    %v1189 = vld [vmem:[#allocation9 + $0x30] sm:$0xff]
    %v1190 = vld [vmem:[#allocation9 + $0x38] sm:$0xff]
    %v1191 = vld [vmem:[#allocation9 + $0x40] sm:$0xff]
    %v1192 = vld [vmem:[#allocation9 + $0x48] sm:$0xff]
    %v1193 = vld [vmem:[#allocation9 + $0x50] sm:$0xff]
    %v1194 = vld [vmem:[#allocation9 + $0x58] sm:$0xff]
    %v1195 = vld [vmem:[#allocation9 + $0x60] sm:$0xff]
    %v1196 = vld [vmem:[#allocation9 + $0x68] sm:$0xff]
    %v1197 = vld [vmem:[#allocation9 + $0x70] sm:$0xff]
    %v1198 = vld [vmem:[#allocation9 + $0x78] sm:$0xff]
    %v1199 = vld [vmem:[#allocation9 + $0x80] sm:$0xff]
    %v1200 = vld [vmem:[#allocation9 + $0x88] sm:$0xff]
    %v1201 = vld [vmem:[#allocation9 + $0x90] sm:$0xff]
    %v1202 = vld [vmem:[#allocation9 + $0x98] sm:$0xff]
    %v1203 = vld [vmem:[#allocation9 + $0xa0] sm:$0xff]
    %v1204 = vld [vmem:[#allocation9 + $0xa8] sm:$0xff]
    %v1205 = vld [vmem:[#allocation9 + $0xb0] sm:$0xff]
    %v1206 = vld [vmem:[#allocation9 + $0xb8] sm:$0xff]
    %v1207 = vld [vmem:[#allocation9 + $0xc0] sm:$0xff]
    %v1208 = vld [vmem:[#allocation9 + $0xc8] sm:$0xff]
    %v1209 = vld [vmem:[#allocation9 + $0xd0] sm:$0xff]
    %v1210 = vld [vmem:[#allocation9 + $0xd8] sm:$0xff]
    %v1211 = vld [vmem:[#allocation9 + $0xe0] sm:$0xff]
    %v1212 = vld [vmem:[#allocation9 + $0xe8] sm:$0xff]
    %v1213 = vld [vmem:[#allocation9 + $0xf0] sm:$0xff]
    %v1214 = vld [vmem:[#allocation9 + $0xf8] sm:$0xff]
    %v1215 = vld [vmem:[#allocation9 + $0x100] sm:$0xff]
    %v1216 = vld [vmem:[#allocation9 + $0x108] sm:$0xff]
    %v1217 = vld [vmem:[#allocation9 + $0x110] sm:$0xff]
    %v1218 = vld [vmem:[#allocation9 + $0x118] sm:$0xff]
    %v1219 = vld [vmem:[#allocation9 + $0x120] sm:$0xff]
    %v1220 = vld [vmem:[#allocation9 + $0x128] sm:$0xff]
    %v1221 = vld [vmem:[#allocation9 + $0x130] sm:$0xff]
    %v1222 = vld [vmem:[#allocation9 + $0x138] sm:$0xff]
    %v1223 = vld [vmem:[#allocation9 + $0x140] sm:$0xff]
    %v1224 = vld [vmem:[#allocation9 + $0x148] sm:$0xff]
    %v1225 = vld [vmem:[#allocation9 + $0x150] sm:$0xff]
    %v1226 = vld [vmem:[#allocation9 + $0x158] sm:$0xff]
    %v1227 = vld [vmem:[#allocation9 + $0x160] sm:$0xff]
    %v1228 = vld [vmem:[#allocation9 + $0x168] sm:$0xff]
    %v1229 = vld [vmem:[#allocation9 + $0x170] sm:$0xff]
    %v1230 = vld [vmem:[#allocation9 + $0x178] sm:$0xff]
    %1231 = vmatpush.msra.mxu0 %v1228
    %1232 = vmatpush.msra.mxu0 %v1225
    %1233 = vmatpush.msra.mxu0 %v1222
    %1234 = vmatpush.msra.mxu0 %v1219
    %1235 = vmatpush.msra.mxu0 %v1216
    %1236 = vmatpush.msra.mxu0 %v1213
    %1237 = vmatpush.msra.mxu0 %v1210
    %1238 = vmatpush.msra.mxu0 %v1207
    %1239 = vmatpush.msra.mxu0 %v1204
    %1240 = vmatpush.msra.mxu0 %v1201
    %1241 = vmatpush.msra.mxu0 %v1198
    %1242 = vmatpush.msra.mxu0 %v1195
    %1243 = vmatpush.msra.mxu0 %v1192
    %1244 = vmatpush.msra.mxu0 %v1189
    %1245 = vmatpush.msra.mxu0 %v1186
    %1246 = vmatpush.msra.mxu0 %v1183
    %1247 = vmatmul.f32.gmra.mxu0 %v1174
    %v1248 = vpop.f32.mrf.mxu0
    %v1249 = vadd.f32 0.0, %v1248
    %1250 = vdwg.mxu0
    %1251 = vmatpush.msra.mxu0 %v1229
    %1252 = vmatpush.msra.mxu0 %v1226
    %1253 = vmatpush.msra.mxu0 %v1223
    %1254 = vmatpush.msra.mxu0 %v1220
    %1255 = vmatpush.msra.mxu0 %v1217
    %1256 = vmatpush.msra.mxu0 %v1214
    %1257 = vmatpush.msra.mxu0 %v1211
    %1258 = vmatpush.msra.mxu0 %v1208
    %1259 = vmatpush.msra.mxu0 %v1205
    %1260 = vmatpush.msra.mxu0 %v1202
    %1261 = vmatpush.msra.mxu0 %v1199
    %1262 = vmatpush.msra.mxu0 %v1196
    %1263 = vmatpush.msra.mxu0 %v1193
    %1264 = vmatpush.msra.mxu0 %v1190
    %1265 = vmatpush.msra.mxu0 %v1187
    %1266 = vmatpush.msra.mxu0 %v1184
    %1267 = vmatmul.f32.gmra.mxu0 %v1174
    %v1268 = vpop.f32.mrf.mxu0
    %v1269 = vadd.f32 0.0, %v1268
    %1270 = vdwg.mxu0
    %1271 = vmatpush.msra.mxu0 %v1230
    %1272 = vmatpush.msra.mxu0 %v1227
    %1273 = vmatpush.msra.mxu0 %v1224
    %1274 = vmatpush.msra.mxu0 %v1221
    %1275 = vmatpush.msra.mxu0 %v1218
    %1276 = vmatpush.msra.mxu0 %v1215
    %1277 = vmatpush.msra.mxu0 %v1212
    %1278 = vmatpush.msra.mxu0 %v1209
    %1279 = vmatpush.msra.mxu0 %v1206
    %1280 = vmatpush.msra.mxu0 %v1203
    %1281 = vmatpush.msra.mxu0 %v1200
    %1282 = vmatpush.msra.mxu0 %v1197
    %1283 = vmatpush.msra.mxu0 %v1194
    %1284 = vmatpush.msra.mxu0 %v1191
    %1285 = vmatpush.msra.mxu0 %v1188
    %1286 = vmatpush.msra.mxu0 %v1185
    %1287 = vmatmul.f32.gmra.mxu0 %v1174
    %v1288 = vpop.f32.mrf.mxu0
    %v1289 = vadd.f32 0.0, %v1288
    %1290 = vdwg.mxu0
    %v1291 = vadd.f32 %v1180, %v1249
    %v1292 = vsub.f32 0.0, %v1291
    %v1293 = vmul.f32 %v1292, 1.442695
    %v1294 = vpow.pop %v1293
    %v1295 = vadd.f32 %v1294, 1.0
    %v1296 = vrcp.pop %v1295
    %v1297 = vadd.f32 %v1181, %v1269
    %v1298 = vsub.f32 0.0, %v1297
    %v1299 = vmul.f32 %v1298, 1.442695
    %v1300 = vpow.pop %v1299
    %v1301 = vadd.f32 %v1300, 1.0
    %v1302 = vrcp.pop %v1301
    %v1303 = vadd.f32 %v1289, %v486
    %v1304 = vmul.f32 %v1296, %v1303
    %v1305 = vadd.f32 %v1182, %v1304
    %v1306 = vtanh.pop %v1305
    %v1307 = vsub.f32 1.0, %v1302
    %v1308 = vmul.f32 %v1307, %v1306
    %v1309 = vmul.f32 %v1302, %v1174
    %v1310 = vadd.f32 %v1308, %v1309
    %s1311 = scalar_lea.vmem [#allocation15], 48
    %1312 = vst [vmem:[%s1311] sm:$0xff] %v1310
    %s1313 = smul.u32 7, 3
    %s1314 = smul.addr %s1313, 8
    %s1315 = scalar_lea.vmem [#allocation2], %s1314
    %v1316 = vld [vmem:[%s1315] sm:$0xff]
    %v1317 = vld [vmem:[%s1315 + $0x8] sm:$0xff]
    %v1318 = vld [vmem:[%s1315 + $0x10] sm:$0xff]
    %v1319 = vld [vmem:[#allocation9] sm:$0xff]
    %v1320 = vld [vmem:[#allocation9 + $0x8] sm:$0xff]
    %v1321 = vld [vmem:[#allocation9 + $0x10] sm:$0xff]
    %v1322 = vld [vmem:[#allocation9 + $0x18] sm:$0xff]
    %v1323 = vld [vmem:[#allocation9 + $0x20] sm:$0xff]
    %v1324 = vld [vmem:[#allocation9 + $0x28] sm:$0xff]
    %v1325 = vld [vmem:[#allocation9 + $0x30] sm:$0xff]
    %v1326 = vld [vmem:[#allocation9 + $0x38] sm:$0xff]
    %v1327 = vld [vmem:[#allocation9 + $0x40] sm:$0xff]
    %v1328 = vld [vmem:[#allocation9 + $0x48] sm:$0xff]
    %v1329 = vld [vmem:[#allocation9 + $0x50] sm:$0xff]
    %v1330 = vld [vmem:[#allocation9 + $0x58] sm:$0xff]
    %v1331 = vld [vmem:[#allocation9 + $0x60] sm:$0xff]
    %v1332 = vld [vmem:[#allocation9 + $0x68] sm:$0xff]
    %v1333 = vld [vmem:[#allocation9 + $0x70] sm:$0xff]
    %v1334 = vld [vmem:[#allocation9 + $0x78] sm:$0xff]
    %v1335 = vld [vmem:[#allocation9 + $0x80] sm:$0xff]
    %v1336 = vld [vmem:[#allocation9 + $0x88] sm:$0xff]
    %v1337 = vld [vmem:[#allocation9 + $0x90] sm:$0xff]
    %v1338 = vld [vmem:[#allocation9 + $0x98] sm:$0xff]
    %v1339 = vld [vmem:[#allocation9 + $0xa0] sm:$0xff]
    %v1340 = vld [vmem:[#allocation9 + $0xa8] sm:$0xff]
    %v1341 = vld [vmem:[#allocation9 + $0xb0] sm:$0xff]
    %v1342 = vld [vmem:[#allocation9 + $0xb8] sm:$0xff]
    %v1343 = vld [vmem:[#allocation9 + $0xc0] sm:$0xff]
    %v1344 = vld [vmem:[#allocation9 + $0xc8] sm:$0xff]
    %v1345 = vld [vmem:[#allocation9 + $0xd0] sm:$0xff]
    %v1346 = vld [vmem:[#allocation9 + $0xd8] sm:$0xff]
    %v1347 = vld [vmem:[#allocation9 + $0xe0] sm:$0xff]
    %v1348 = vld [vmem:[#allocation9 + $0xe8] sm:$0xff]
    %v1349 = vld [vmem:[#allocation9 + $0xf0] sm:$0xff]
    %v1350 = vld [vmem:[#allocation9 + $0xf8] sm:$0xff]
    %v1351 = vld [vmem:[#allocation9 + $0x100] sm:$0xff]
    %v1352 = vld [vmem:[#allocation9 + $0x108] sm:$0xff]
    %v1353 = vld [vmem:[#allocation9 + $0x110] sm:$0xff]
    %v1354 = vld [vmem:[#allocation9 + $0x118] sm:$0xff]
    %v1355 = vld [vmem:[#allocation9 + $0x120] sm:$0xff]
    %v1356 = vld [vmem:[#allocation9 + $0x128] sm:$0xff]
    %v1357 = vld [vmem:[#allocation9 + $0x130] sm:$0xff]
    %v1358 = vld [vmem:[#allocation9 + $0x138] sm:$0xff]
    %v1359 = vld [vmem:[#allocation9 + $0x140] sm:$0xff]
    %v1360 = vld [vmem:[#allocation9 + $0x148] sm:$0xff]
    %v1361 = vld [vmem:[#allocation9 + $0x150] sm:$0xff]
    %v1362 = vld [vmem:[#allocation9 + $0x158] sm:$0xff]
    %v1363 = vld [vmem:[#allocation9 + $0x160] sm:$0xff]
    %v1364 = vld [vmem:[#allocation9 + $0x168] sm:$0xff]
    %v1365 = vld [vmem:[#allocation9 + $0x170] sm:$0xff]
    %v1366 = vld [vmem:[#allocation9 + $0x178] sm:$0xff]
    %1367 = vmatpush.msra.mxu0 %v1364
    %1368 = vmatpush.msra.mxu0 %v1361
    %1369 = vmatpush.msra.mxu0 %v1358
    %1370 = vmatpush.msra.mxu0 %v1355
    %1371 = vmatpush.msra.mxu0 %v1352
    %1372 = vmatpush.msra.mxu0 %v1349
    %1373 = vmatpush.msra.mxu0 %v1346
    %1374 = vmatpush.msra.mxu0 %v1343
    %1375 = vmatpush.msra.mxu0 %v1340
    %1376 = vmatpush.msra.mxu0 %v1337
    %1377 = vmatpush.msra.mxu0 %v1334
    %1378 = vmatpush.msra.mxu0 %v1331
    %1379 = vmatpush.msra.mxu0 %v1328
    %1380 = vmatpush.msra.mxu0 %v1325
    %1381 = vmatpush.msra.mxu0 %v1322
    %1382 = vmatpush.msra.mxu0 %v1319
    %1383 = vmatmul.f32.gmra.mxu0 %v1310
    %v1384 = vpop.f32.mrf.mxu0
    %v1385 = vadd.f32 0.0, %v1384
    %1386 = vdwg.mxu0
    %1387 = vmatpush.msra.mxu0 %v1365
    %1388 = vmatpush.msra.mxu0 %v1362
    %1389 = vmatpush.msra.mxu0 %v1359
    %1390 = vmatpush.msra.mxu0 %v1356
    %1391 = vmatpush.msra.mxu0 %v1353
    %1392 = vmatpush.msra.mxu0 %v1350
    %1393 = vmatpush.msra.mxu0 %v1347
    %1394 = vmatpush.msra.mxu0 %v1344
    %1395 = vmatpush.msra.mxu0 %v1341
    %1396 = vmatpush.msra.mxu0 %v1338
    %1397 = vmatpush.msra.mxu0 %v1335
    %1398 = vmatpush.msra.mxu0 %v1332
    %1399 = vmatpush.msra.mxu0 %v1329
    %1400 = vmatpush.msra.mxu0 %v1326
    %1401 = vmatpush.msra.mxu0 %v1323
    %1402 = vmatpush.msra.mxu0 %v1320
    %1403 = vmatmul.f32.gmra.mxu0 %v1310
    %v1404 = vpop.f32.mrf.mxu0
    %v1405 = vadd.f32 0.0, %v1404
    %1406 = vdwg.mxu0
    %1407 = vmatpush.msra.mxu0 %v1366
    %1408 = vmatpush.msra.mxu0 %v1363
    %1409 = vmatpush.msra.mxu0 %v1360
    %1410 = vmatpush.msra.mxu0 %v1357
    %1411 = vmatpush.msra.mxu0 %v1354
    %1412 = vmatpush.msra.mxu0 %v1351
    %1413 = vmatpush.msra.mxu0 %v1348
    %1414 = vmatpush.msra.mxu0 %v1345
    %1415 = vmatpush.msra.mxu0 %v1342
    %1416 = vmatpush.msra.mxu0 %v1339
    %1417 = vmatpush.msra.mxu0 %v1336
    %1418 = vmatpush.msra.mxu0 %v1333
    %1419 = vmatpush.msra.mxu0 %v1330
    %1420 = vmatpush.msra.mxu0 %v1327
    %1421 = vmatpush.msra.mxu0 %v1324
    %1422 = vmatpush.msra.mxu0 %v1321
    %1423 = vmatmul.f32.gmra.mxu0 %v1310
    %v1424 = vpop.f32.mrf.mxu0
    %v1425 = vadd.f32 0.0, %v1424
    %1426 = vdwg.mxu0
    %v1427 = vadd.f32 %v1316, %v1385
    %v1428 = vsub.f32 0.0, %v1427
    %v1429 = vmul.f32 %v1428, 1.442695
    %v1430 = vpow.pop %v1429
    %v1431 = vadd.f32 %v1430, 1.0
    %v1432 = vrcp.pop %v1431
    %v1433 = vadd.f32 %v1317, %v1405
    %v1434 = vsub.f32 0.0, %v1433
    %v1435 = vmul.f32 %v1434, 1.442695
    %v1436 = vpow.pop %v1435
    %v1437 = vadd.f32 %v1436, 1.0
    %v1438 = vrcp.pop %v1437
    %v1439 = vadd.f32 %v1425, %v486
    %v1440 = vmul.f32 %v1432, %v1439
    %v1441 = vadd.f32 %v1318, %v1440
    %v1442 = vtanh.pop %v1441
    %v1443 = vsub.f32 1.0, %v1438
    %v1444 = vmul.f32 %v1443, %v1442
    %v1445 = vmul.f32 %v1438, %v1310
    %v1446 = vadd.f32 %v1444, %v1445
    %s1447 = scalar_lea.vmem [#allocation15], 56
    %1448 = vst [vmem:[%s1447] sm:$0xff] %v1446
    %1449 = vst [vmem:[#allocation16] sm:$0xff] %v1446
    %v1450 = vld [vmem:[%s8] sm:$0x7]
    %v1451 = vld [vmem:[%s9] sm:$0x1]
    %v1452 = vld [vmem:[#allocation15] sm:$0xff]
    %v1453 = vld [vmem:[#allocation15 + $0x8] sm:$0xff]
    %v1454 = vld [vmem:[#allocation15 + $0x10] sm:$0xff]
    %v1455 = vld [vmem:[#allocation15 + $0x18] sm:$0xff]
    %v1456 = vld [vmem:[#allocation15 + $0x20] sm:$0xff]
    %v1457 = vld [vmem:[#allocation15 + $0x28] sm:$0xff]
    %v1458 = vld [vmem:[#allocation15 + $0x30] sm:$0xff]
    %v1459 = vld [vmem:[#allocation15 + $0x38] sm:$0xff]
    %v1460 = vld [vmem:[#allocation12] sm:$0xff]
    %v1461 = vld [vmem:[#allocation12 + $0x8] sm:$0xff]
    %v1462 = vld [vmem:[#allocation12 + $0x10] sm:$0xff]
    %v1463 = vld [vmem:[#allocation12 + $0x18] sm:$0xff]
    %v1464 = vld [vmem:[#allocation12 + $0x20] sm:$0xff]
    %v1465 = vld [vmem:[#allocation12 + $0x28] sm:$0xff]
    %v1466 = vld [vmem:[#allocation12 + $0x30] sm:$0xff]
    %v1467 = vld [vmem:[#allocation12 + $0x38] sm:$0xff]
    %v1468 = vld [vmem:[#allocation12 + $0x40] sm:$0xff]
    %v1469 = vld [vmem:[#allocation12 + $0x48] sm:$0xff]
    %v1470 = vld [vmem:[#allocation12 + $0x50] sm:$0xff]
    %v1471 = vld [vmem:[#allocation12 + $0x58] sm:$0xff]
    %v1472 = vld [vmem:[#allocation12 + $0x60] sm:$0xff]
    %v1473 = vld [vmem:[#allocation12 + $0x68] sm:$0xff]
    %v1474 = vld [vmem:[#allocation12 + $0x70] sm:$0xff]
    %v1475 = vld [vmem:[#allocation12 + $0x78] sm:$0xff]
    %v1476 = vld [vmem:[#allocation12 + $0x80] sm:$0xff]
    %v1477 = vld [vmem:[#allocation12 + $0x88] sm:$0xff]
    %v1478 = vld [vmem:[#allocation12 + $0x90] sm:$0xff]
    %v1479 = vld [vmem:[#allocation12 + $0x98] sm:$0xff]
    %v1480 = vld [vmem:[#allocation12 + $0xa0] sm:$0xff]
    %v1481 = vld [vmem:[#allocation12 + $0xa8] sm:$0xff]
    %v1482 = vld [vmem:[#allocation12 + $0xb0] sm:$0xff]
    %v1483 = vld [vmem:[#allocation12 + $0xb8] sm:$0xff]
    %v1484 = vld [vmem:[#allocation12 + $0xc0] sm:$0xff]
    %v1485 = vld [vmem:[#allocation12 + $0xc8] sm:$0xff]
    %v1486 = vld [vmem:[#allocation12 + $0xd0] sm:$0xff]
    %v1487 = vld [vmem:[#allocation12 + $0xd8] sm:$0xff]
    %v1488 = vld [vmem:[#allocation12 + $0xe0] sm:$0xff]
    %v1489 = vld [vmem:[#allocation12 + $0xe8] sm:$0xff]
    %v1490 = vld [vmem:[#allocation12 + $0xf0] sm:$0xff]
    %v1491 = vld [vmem:[#allocation12 + $0xf8] sm:$0xff]
    %v1492 = vld [vmem:[#allocation12 + $0x100] sm:$0xff]
    %v1493 = vld [vmem:[#allocation12 + $0x108] sm:$0xff]
    %v1494 = vld [vmem:[#allocation12 + $0x110] sm:$0xff]
    %v1495 = vld [vmem:[#allocation12 + $0x118] sm:$0xff]
    %v1496 = vld [vmem:[#allocation12 + $0x120] sm:$0xff]
    %v1497 = vld [vmem:[#allocation12 + $0x128] sm:$0xff]
    %v1498 = vld [vmem:[#allocation12 + $0x130] sm:$0xff]
    %v1499 = vld [vmem:[#allocation12 + $0x138] sm:$0xff]
    %v1500 = vld [vmem:[#allocation12 + $0x140] sm:$0xff]
    %v1501 = vld [vmem:[#allocation12 + $0x148] sm:$0xff]
    %v1502 = vld [vmem:[#allocation12 + $0x150] sm:$0xff]
    %v1503 = vld [vmem:[#allocation12 + $0x158] sm:$0xff]
    %v1504 = vld [vmem:[#allocation12 + $0x160] sm:$0xff]
    %v1505 = vld [vmem:[#allocation12 + $0x168] sm:$0xff]
    %v1506 = vld [vmem:[#allocation12 + $0x170] sm:$0xff]
    %v1507 = vld [vmem:[#allocation12 + $0x178] sm:$0xff]
    %v1509 = vperm.slane %v1450, 0
    %v1510 = vperm.slane %v1450, 1
    %v1511 = vperm.slane %v1450, 2
    %1515 = vmatpush.msra.mxu0 %v1505
    %1516 = vmatpush.msra.mxu0 %v1502
    %1517 = vmatpush.msra.mxu0 %v1499
    %1518 = vmatpush.msra.mxu0 %v1496
    %1519 = vmatpush.msra.mxu0 %v1493
    %1520 = vmatpush.msra.mxu0 %v1490
    %1521 = vmatpush.msra.mxu0 %v1487
    %1522 = vmatpush.msra.mxu0 %v1484
    %1523 = vmatpush.msra.mxu0 %v1481
    %1524 = vmatpush.msra.mxu0 %v1478
    %1525 = vmatpush.msra.mxu0 %v1475
    %1526 = vmatpush.msra.mxu0 %v1472
    %1527 = vmatpush.msra.mxu0 %v1469
    %1528 = vmatpush.msra.mxu0 %v1466
    %1529 = vmatpush.msra.mxu0 %v1463
    %1530 = vmatpush.msra.mxu0 %v1460
    %1531 = vmatmul.f32.gmra.mxu0 %v1452
    %v1532 = vpop.f32.mrf.mxu0
    %v1533 = vadd.f32 %v1509, %v1532
    %1534 = vmatmul.f32.gmra.mxu0 %v1453
    %v1535 = vpop.f32.mrf.mxu0
    %v1536 = vadd.f32 %v1509, %v1535
    %1537 = vmatmul.f32.gmra.mxu0 %v1454
    %v1538 = vpop.f32.mrf.mxu0
    %v1539 = vadd.f32 %v1509, %v1538
    %1540 = vmatmul.f32.gmra.mxu0 %v1455
    %v1541 = vpop.f32.mrf.mxu0
    %v1542 = vadd.f32 %v1509, %v1541
    %1543 = vmatmul.f32.gmra.mxu0 %v1456
    %v1544 = vpop.f32.mrf.mxu0
    %v1545 = vadd.f32 %v1509, %v1544
    %1546 = vmatmul.f32.gmra.mxu0 %v1457
    %v1547 = vpop.f32.mrf.mxu0
    %v1548 = vadd.f32 %v1509, %v1547
    %1549 = vmatmul.f32.gmra.mxu0 %v1458
    %v1550 = vpop.f32.mrf.mxu0
    %v1551 = vadd.f32 %v1509, %v1550
    %1552 = vmatmul.f32.gmra.mxu0 %v1459
    %v1553 = vpop.f32.mrf.mxu0
    %v1554 = vadd.f32 %v1509, %v1553
    %1555 = vdwg.mxu0
    %1556 = vmatpush.msra.mxu0 %v1506
    %1557 = vmatpush.msra.mxu0 %v1503
    %1558 = vmatpush.msra.mxu0 %v1500
    %1559 = vmatpush.msra.mxu0 %v1497
    %1560 = vmatpush.msra.mxu0 %v1494
    %1561 = vmatpush.msra.mxu0 %v1491
    %1562 = vmatpush.msra.mxu0 %v1488
    %1563 = vmatpush.msra.mxu0 %v1485
    %1564 = vmatpush.msra.mxu0 %v1482
    %1565 = vmatpush.msra.mxu0 %v1479
    %1566 = vmatpush.msra.mxu0 %v1476
    %1567 = vmatpush.msra.mxu0 %v1473
    %1568 = vmatpush.msra.mxu0 %v1470
    %1569 = vmatpush.msra.mxu0 %v1467
    %1570 = vmatpush.msra.mxu0 %v1464
    %1571 = vmatpush.msra.mxu0 %v1461
    %1572 = vmatmul.f32.gmra.mxu0 %v1452
    %v1573 = vpop.f32.mrf.mxu0
    %v1574 = vadd.f32 %v1510, %v1573
    %1575 = vmatmul.f32.gmra.mxu0 %v1453
    %v1576 = vpop.f32.mrf.mxu0
    %v1577 = vadd.f32 %v1510, %v1576
    %1578 = vmatmul.f32.gmra.mxu0 %v1454
    %v1579 = vpop.f32.mrf.mxu0
    %v1580 = vadd.f32 %v1510, %v1579
    %1581 = vmatmul.f32.gmra.mxu0 %v1455
    %v1582 = vpop.f32.mrf.mxu0
    %v1583 = vadd.f32 %v1510, %v1582
    %1584 = vmatmul.f32.gmra.mxu0 %v1456
    %v1585 = vpop.f32.mrf.mxu0
    %v1586 = vadd.f32 %v1510, %v1585
    %1587 = vmatmul.f32.gmra.mxu0 %v1457
    %v1588 = vpop.f32.mrf.mxu0
    %v1589 = vadd.f32 %v1510, %v1588
    %1590 = vmatmul.f32.gmra.mxu0 %v1458
    %v1591 = vpop.f32.mrf.mxu0
    %v1592 = vadd.f32 %v1510, %v1591
    %1593 = vmatmul.f32.gmra.mxu0 %v1459
    %v1594 = vpop.f32.mrf.mxu0
    %v1595 = vadd.f32 %v1510, %v1594
    %1596 = vdwg.mxu0
    %1597 = vmatpush.msra.mxu0 %v1507
    %1598 = vmatpush.msra.mxu0 %v1504
    %1599 = vmatpush.msra.mxu0 %v1501
    %1600 = vmatpush.msra.mxu0 %v1498
    %1601 = vmatpush.msra.mxu0 %v1495
    %1602 = vmatpush.msra.mxu0 %v1492
    %1603 = vmatpush.msra.mxu0 %v1489
    %1604 = vmatpush.msra.mxu0 %v1486
    %1605 = vmatpush.msra.mxu0 %v1483
    %1606 = vmatpush.msra.mxu0 %v1480
    %1607 = vmatpush.msra.mxu0 %v1477
    %1608 = vmatpush.msra.mxu0 %v1474
    %1609 = vmatpush.msra.mxu0 %v1471
    %1610 = vmatpush.msra.mxu0 %v1468
    %1611 = vmatpush.msra.mxu0 %v1465
    %1612 = vmatpush.msra.mxu0 %v1462
    %1613 = vmatmul.f32.gmra.mxu0 %v1452
    %v1614 = vpop.f32.mrf.mxu0
    %v1615 = vadd.f32 %v1511, %v1614
    %1616 = vmatmul.f32.gmra.mxu0 %v1453
    %v1617 = vpop.f32.mrf.mxu0
    %v1618 = vadd.f32 %v1511, %v1617
    %1619 = vmatmul.f32.gmra.mxu0 %v1454
    %v1620 = vpop.f32.mrf.mxu0
    %v1621 = vadd.f32 %v1511, %v1620
    %1622 = vmatmul.f32.gmra.mxu0 %v1455
    %v1623 = vpop.f32.mrf.mxu0
    %v1624 = vadd.f32 %v1511, %v1623
    %1625 = vmatmul.f32.gmra.mxu0 %v1456
    %v1626 = vpop.f32.mrf.mxu0
    %v1627 = vadd.f32 %v1511, %v1626
    %1628 = vmatmul.f32.gmra.mxu0 %v1457
    %v1629 = vpop.f32.mrf.mxu0
    %v1630 = vadd.f32 %v1511, %v1629
    %1631 = vmatmul.f32.gmra.mxu0 %v1458
    %v1632 = vpop.f32.mrf.mxu0
    %v1633 = vadd.f32 %v1511, %v1632
    %1634 = vmatmul.f32.gmra.mxu0 %v1459
    %v1635 = vpop.f32.mrf.mxu0
    %v1636 = vadd.f32 %v1511, %v1635
    %1637 = vdwg.mxu0
    %1638 = vst [vmem:[#allocation2] sm:$0xff] %v1533
    %1639 = vst [vmem:[#allocation2 + $0x8] sm:$0xff] %v1574
    %1640 = vst [vmem:[#allocation2 + $0x10] sm:$0xff] %v1615
    %1641 = vst [vmem:[#allocation2 + $0x18] sm:$0xff] %v1536
    %1642 = vst [vmem:[#allocation2 + $0x20] sm:$0xff] %v1577
    %1643 = vst [vmem:[#allocation2 + $0x28] sm:$0xff] %v1618
    %1644 = vst [vmem:[#allocation2 + $0x30] sm:$0xff] %v1539
    %1645 = vst [vmem:[#allocation2 + $0x38] sm:$0xff] %v1580
    %1646 = vst [vmem:[#allocation2 + $0x40] sm:$0xff] %v1621
    %1647 = vst [vmem:[#allocation2 + $0x48] sm:$0xff] %v1542
    %1648 = vst [vmem:[#allocation2 + $0x50] sm:$0xff] %v1583
    %1649 = vst [vmem:[#allocation2 + $0x58] sm:$0xff] %v1624
    %1650 = vst [vmem:[#allocation2 + $0x60] sm:$0xff] %v1545
    %1651 = vst [vmem:[#allocation2 + $0x68] sm:$0xff] %v1586
    %1652 = vst [vmem:[#allocation2 + $0x70] sm:$0xff] %v1627
    %1653 = vst [vmem:[#allocation2 + $0x78] sm:$0xff] %v1548
    %1654 = vst [vmem:[#allocation2 + $0x80] sm:$0xff] %v1589
    %1655 = vst [vmem:[#allocation2 + $0x88] sm:$0xff] %v1630
    %1656 = vst [vmem:[#allocation2 + $0x90] sm:$0xff] %v1551
    %1657 = vst [vmem:[#allocation2 + $0x98] sm:$0xff] %v1592
    %1658 = vst [vmem:[#allocation2 + $0xa0] sm:$0xff] %v1633
    %1659 = vst [vmem:[#allocation2 + $0xa8] sm:$0xff] %v1554
    %1660 = vst [vmem:[#allocation2 + $0xb0] sm:$0xff] %v1595
    %1661 = vst [vmem:[#allocation2 + $0xb8] sm:$0xff] %v1636
    %s1662 = scalar_lea.vmem [#allocation6], 8
    %v1663 = vld [vmem:[%s1662] sm:$0xff]
    %v1664 = vld [vmem:[%s361] sm:$0xff]
    %v1665 = vld [vmem:[%s361 + $0x8] sm:$0xff]
    %v1666 = vld [vmem:[%s361 + $0x10] sm:$0xff]
    %v1667 = vld [vmem:[#allocation14] sm:$0xff]
    %v1668 = vld [vmem:[#allocation14 + $0x8] sm:$0xff]
    %v1669 = vld [vmem:[#allocation14 + $0x10] sm:$0xff]
    %v1670 = vld [vmem:[#allocation14 + $0x18] sm:$0xff]
    %v1671 = vld [vmem:[#allocation14 + $0x20] sm:$0xff]
    %v1672 = vld [vmem:[#allocation14 + $0x28] sm:$0xff]
    %v1673 = vld [vmem:[#allocation14 + $0x30] sm:$0xff]
    %v1674 = vld [vmem:[#allocation14 + $0x38] sm:$0xff]
    %v1675 = vld [vmem:[#allocation14 + $0x40] sm:$0xff]
    %v1676 = vld [vmem:[#allocation14 + $0x48] sm:$0xff]
    %v1677 = vld [vmem:[#allocation14 + $0x50] sm:$0xff]
    %v1678 = vld [vmem:[#allocation14 + $0x58] sm:$0xff]
    %v1679 = vld [vmem:[#allocation14 + $0x60] sm:$0xff]
    %v1680 = vld [vmem:[#allocation14 + $0x68] sm:$0xff]
    %v1681 = vld [vmem:[#allocation14 + $0x70] sm:$0xff]
    %v1682 = vld [vmem:[#allocation14 + $0x78] sm:$0xff]
    %v1683 = vld [vmem:[#allocation14 + $0x80] sm:$0xff]
    %v1684 = vld [vmem:[#allocation14 + $0x88] sm:$0xff]
    %v1685 = vld [vmem:[#allocation14 + $0x90] sm:$0xff]
    %v1686 = vld [vmem:[#allocation14 + $0x98] sm:$0xff]
    %v1687 = vld [vmem:[#allocation14 + $0xa0] sm:$0xff]
    %v1688 = vld [vmem:[#allocation14 + $0xa8] sm:$0xff]
    %v1689 = vld [vmem:[#allocation14 + $0xb0] sm:$0xff]
    %v1690 = vld [vmem:[#allocation14 + $0xb8] sm:$0xff]
    %v1691 = vld [vmem:[#allocation14 + $0xc0] sm:$0xff]
    %v1692 = vld [vmem:[#allocation14 + $0xc8] sm:$0xff]
    %v1693 = vld [vmem:[#allocation14 + $0xd0] sm:$0xff]
    %v1694 = vld [vmem:[#allocation14 + $0xd8] sm:$0xff]
    %v1695 = vld [vmem:[#allocation14 + $0xe0] sm:$0xff]
    %v1696 = vld [vmem:[#allocation14 + $0xe8] sm:$0xff]
    %v1697 = vld [vmem:[#allocation14 + $0xf0] sm:$0xff]
    %v1698 = vld [vmem:[#allocation14 + $0xf8] sm:$0xff]
    %v1699 = vld [vmem:[#allocation14 + $0x100] sm:$0xff]
    %v1700 = vld [vmem:[#allocation14 + $0x108] sm:$0xff]
    %v1701 = vld [vmem:[#allocation14 + $0x110] sm:$0xff]
    %v1702 = vld [vmem:[#allocation14 + $0x118] sm:$0xff]
    %v1703 = vld [vmem:[#allocation14 + $0x120] sm:$0xff]
    %v1704 = vld [vmem:[#allocation14 + $0x128] sm:$0xff]
    %v1705 = vld [vmem:[#allocation14 + $0x130] sm:$0xff]
    %v1706 = vld [vmem:[#allocation14 + $0x138] sm:$0xff]
    %v1707 = vld [vmem:[#allocation14 + $0x140] sm:$0xff]
    %v1708 = vld [vmem:[#allocation14 + $0x148] sm:$0xff]
    %v1709 = vld [vmem:[#allocation14 + $0x150] sm:$0xff]
    %v1710 = vld [vmem:[#allocation14 + $0x158] sm:$0xff]
    %v1711 = vld [vmem:[#allocation14 + $0x160] sm:$0xff]
    %v1712 = vld [vmem:[#allocation14 + $0x168] sm:$0xff]
    %v1713 = vld [vmem:[#allocation14 + $0x170] sm:$0xff]
    %v1714 = vld [vmem:[#allocation14 + $0x178] sm:$0xff]
    %1715 = vmatpush.msra.mxu0 %v1712
    %1716 = vmatpush.msra.mxu0 %v1709
    %1717 = vmatpush.msra.mxu0 %v1706
    %1718 = vmatpush.msra.mxu0 %v1703
    %1719 = vmatpush.msra.mxu0 %v1700
    %1720 = vmatpush.msra.mxu0 %v1697
    %1721 = vmatpush.msra.mxu0 %v1694
    %1722 = vmatpush.msra.mxu0 %v1691
    %1723 = vmatpush.msra.mxu0 %v1688
    %1724 = vmatpush.msra.mxu0 %v1685
    %1725 = vmatpush.msra.mxu0 %v1682
    %1726 = vmatpush.msra.mxu0 %v1679
    %1727 = vmatpush.msra.mxu0 %v1676
    %1728 = vmatpush.msra.mxu0 %v1673
    %1729 = vmatpush.msra.mxu0 %v1670
    %1730 = vmatpush.msra.mxu0 %v1667
    %1731 = vmatmul.f32.gmra.mxu0 %v1663
    %v1732 = vpop.f32.mrf.mxu0
    %v1733 = vadd.f32 0.0, %v1732
    %1734 = vdwg.mxu0
    %1735 = vmatpush.msra.mxu0 %v1713
    %1736 = vmatpush.msra.mxu0 %v1710
    %1737 = vmatpush.msra.mxu0 %v1707
    %1738 = vmatpush.msra.mxu0 %v1704
    %1739 = vmatpush.msra.mxu0 %v1701
    %1740 = vmatpush.msra.mxu0 %v1698
    %1741 = vmatpush.msra.mxu0 %v1695
    %1742 = vmatpush.msra.mxu0 %v1692
    %1743 = vmatpush.msra.mxu0 %v1689
    %1744 = vmatpush.msra.mxu0 %v1686
    %1745 = vmatpush.msra.mxu0 %v1683
    %1746 = vmatpush.msra.mxu0 %v1680
    %1747 = vmatpush.msra.mxu0 %v1677
    %1748 = vmatpush.msra.mxu0 %v1674
    %1749 = vmatpush.msra.mxu0 %v1671
    %1750 = vmatpush.msra.mxu0 %v1668
    %1751 = vmatmul.f32.gmra.mxu0 %v1663
    %v1752 = vpop.f32.mrf.mxu0
    %v1753 = vadd.f32 0.0, %v1752
    %1754 = vdwg.mxu0
    %1755 = vmatpush.msra.mxu0 %v1714
    %1756 = vmatpush.msra.mxu0 %v1711
    %1757 = vmatpush.msra.mxu0 %v1708
    %1758 = vmatpush.msra.mxu0 %v1705
    %1759 = vmatpush.msra.mxu0 %v1702
    %1760 = vmatpush.msra.mxu0 %v1699
    %1761 = vmatpush.msra.mxu0 %v1696
    %1762 = vmatpush.msra.mxu0 %v1693
    %1763 = vmatpush.msra.mxu0 %v1690
    %1764 = vmatpush.msra.mxu0 %v1687
    %1765 = vmatpush.msra.mxu0 %v1684
    %1766 = vmatpush.msra.mxu0 %v1681
    %1767 = vmatpush.msra.mxu0 %v1678
    %1768 = vmatpush.msra.mxu0 %v1675
    %1769 = vmatpush.msra.mxu0 %v1672
    %1770 = vmatpush.msra.mxu0 %v1669
    %1771 = vmatmul.f32.gmra.mxu0 %v1663
    %v1772 = vpop.f32.mrf.mxu0
    %v1773 = vadd.f32 0.0, %v1772
    %1774 = vdwg.mxu0
    %v1775 = vadd.f32 %v1664, %v1733
    %v1776 = vsub.f32 0.0, %v1775
    %v1777 = vmul.f32 %v1776, 1.442695
    %v1778 = vpow.pop %v1777
    %v1779 = vadd.f32 %v1778, 1.0
    %v1780 = vrcp.pop %v1779
    %v1781 = vadd.f32 %v1665, %v1753
    %v1782 = vsub.f32 0.0, %v1781
    %v1783 = vmul.f32 %v1782, 1.442695
    %v1784 = vpow.pop %v1783
    %v1785 = vadd.f32 %v1784, 1.0
    %v1786 = vrcp.pop %v1785
    %v1788 = vperm.slane %v1451, 0
    %v1790 = vadd.f32 %v1773, %v1788
    %v1791 = vmul.f32 %v1780, %v1790
    %v1792 = vadd.f32 %v1666, %v1791
    %v1793 = vtanh.pop %v1792
    %v1794 = vsub.f32 1.0, %v1786
    %v1795 = vmul.f32 %v1794, %v1793
    %v1796 = vmul.f32 %v1786, %v1663
    %v1797 = vadd.f32 %v1795, %v1796
    %1798 = vst [vmem:[#allocation15] sm:$0xff] %v1797
    %v1799 = vld [vmem:[%s499] sm:$0xff]
    %v1800 = vld [vmem:[%s499 + $0x8] sm:$0xff]
    %v1801 = vld [vmem:[%s499 + $0x10] sm:$0xff]
    %v1802 = vld [vmem:[#allocation14] sm:$0xff]
    %v1803 = vld [vmem:[#allocation14 + $0x8] sm:$0xff]
    %v1804 = vld [vmem:[#allocation14 + $0x10] sm:$0xff]
    %v1805 = vld [vmem:[#allocation14 + $0x18] sm:$0xff]
    %v1806 = vld [vmem:[#allocation14 + $0x20] sm:$0xff]
    %v1807 = vld [vmem:[#allocation14 + $0x28] sm:$0xff]
    %v1808 = vld [vmem:[#allocation14 + $0x30] sm:$0xff]
    %v1809 = vld [vmem:[#allocation14 + $0x38] sm:$0xff]
    %v1810 = vld [vmem:[#allocation14 + $0x40] sm:$0xff]
    %v1811 = vld [vmem:[#allocation14 + $0x48] sm:$0xff]
    %v1812 = vld [vmem:[#allocation14 + $0x50] sm:$0xff]
    %v1813 = vld [vmem:[#allocation14 + $0x58] sm:$0xff]
    %v1814 = vld [vmem:[#allocation14 + $0x60] sm:$0xff]
    %v1815 = vld [vmem:[#allocation14 + $0x68] sm:$0xff]
    %v1816 = vld [vmem:[#allocation14 + $0x70] sm:$0xff]
    %v1817 = vld [vmem:[#allocation14 + $0x78] sm:$0xff]
    %v1818 = vld [vmem:[#allocation14 + $0x80] sm:$0xff]
    %v1819 = vld [vmem:[#allocation14 + $0x88] sm:$0xff]
    %v1820 = vld [vmem:[#allocation14 + $0x90] sm:$0xff]
    %v1821 = vld [vmem:[#allocation14 + $0x98] sm:$0xff]
    %v1822 = vld [vmem:[#allocation14 + $0xa0] sm:$0xff]
    %v1823 = vld [vmem:[#allocation14 + $0xa8] sm:$0xff]
    %v1824 = vld [vmem:[#allocation14 + $0xb0] sm:$0xff]
    %v1825 = vld [vmem:[#allocation14 + $0xb8] sm:$0xff]
    %v1826 = vld [vmem:[#allocation14 + $0xc0] sm:$0xff]
    %v1827 = vld [vmem:[#allocation14 + $0xc8] sm:$0xff]
    %v1828 = vld [vmem:[#allocation14 + $0xd0] sm:$0xff]
    %v1829 = vld [vmem:[#allocation14 + $0xd8] sm:$0xff]
    %v1830 = vld [vmem:[#allocation14 + $0xe0] sm:$0xff]
    %v1831 = vld [vmem:[#allocation14 + $0xe8] sm:$0xff]
    %v1832 = vld [vmem:[#allocation14 + $0xf0] sm:$0xff]
    %v1833 = vld [vmem:[#allocation14 + $0xf8] sm:$0xff]
    %v1834 = vld [vmem:[#allocation14 + $0x100] sm:$0xff]
    %v1835 = vld [vmem:[#allocation14 + $0x108] sm:$0xff]
    %v1836 = vld [vmem:[#allocation14 + $0x110] sm:$0xff]
    %v1837 = vld [vmem:[#allocation14 + $0x118] sm:$0xff]
    %v1838 = vld [vmem:[#allocation14 + $0x120] sm:$0xff]
    %v1839 = vld [vmem:[#allocation14 + $0x128] sm:$0xff]
    %v1840 = vld [vmem:[#allocation14 + $0x130] sm:$0xff]
    %v1841 = vld [vmem:[#allocation14 + $0x138] sm:$0xff]
    %v1842 = vld [vmem:[#allocation14 + $0x140] sm:$0xff]
    %v1843 = vld [vmem:[#allocation14 + $0x148] sm:$0xff]
    %v1844 = vld [vmem:[#allocation14 + $0x150] sm:$0xff]
    %v1845 = vld [vmem:[#allocation14 + $0x158] sm:$0xff]
    %v1846 = vld [vmem:[#allocation14 + $0x160] sm:$0xff]
    %v1847 = vld [vmem:[#allocation14 + $0x168] sm:$0xff]
    %v1848 = vld [vmem:[#allocation14 + $0x170] sm:$0xff]
    %v1849 = vld [vmem:[#allocation14 + $0x178] sm:$0xff]
    %1850 = vmatpush.msra.mxu0 %v1847
    %1851 = vmatpush.msra.mxu0 %v1844
    %1852 = vmatpush.msra.mxu0 %v1841
    %1853 = vmatpush.msra.mxu0 %v1838
    %1854 = vmatpush.msra.mxu0 %v1835
    %1855 = vmatpush.msra.mxu0 %v1832
    %1856 = vmatpush.msra.mxu0 %v1829
    %1857 = vmatpush.msra.mxu0 %v1826
    %1858 = vmatpush.msra.mxu0 %v1823
    %1859 = vmatpush.msra.mxu0 %v1820
    %1860 = vmatpush.msra.mxu0 %v1817
    %1861 = vmatpush.msra.mxu0 %v1814
    %1862 = vmatpush.msra.mxu0 %v1811
    %1863 = vmatpush.msra.mxu0 %v1808
    %1864 = vmatpush.msra.mxu0 %v1805
    %1865 = vmatpush.msra.mxu0 %v1802
    %1866 = vmatmul.f32.gmra.mxu0 %v1797
    %v1867 = vpop.f32.mrf.mxu0
    %v1868 = vadd.f32 0.0, %v1867
    %1869 = vdwg.mxu0
    %1870 = vmatpush.msra.mxu0 %v1848
    %1871 = vmatpush.msra.mxu0 %v1845
    %1872 = vmatpush.msra.mxu0 %v1842
    %1873 = vmatpush.msra.mxu0 %v1839
    %1874 = vmatpush.msra.mxu0 %v1836
    %1875 = vmatpush.msra.mxu0 %v1833
    %1876 = vmatpush.msra.mxu0 %v1830
    %1877 = vmatpush.msra.mxu0 %v1827
    %1878 = vmatpush.msra.mxu0 %v1824
    %1879 = vmatpush.msra.mxu0 %v1821
    %1880 = vmatpush.msra.mxu0 %v1818
    %1881 = vmatpush.msra.mxu0 %v1815
    %1882 = vmatpush.msra.mxu0 %v1812
    %1883 = vmatpush.msra.mxu0 %v1809
    %1884 = vmatpush.msra.mxu0 %v1806
    %1885 = vmatpush.msra.mxu0 %v1803
    %1886 = vmatmul.f32.gmra.mxu0 %v1797
    %v1887 = vpop.f32.mrf.mxu0
    %v1888 = vadd.f32 0.0, %v1887
    %1889 = vdwg.mxu0
    %1890 = vmatpush.msra.mxu0 %v1849
    %1891 = vmatpush.msra.mxu0 %v1846
    %1892 = vmatpush.msra.mxu0 %v1843
    %1893 = vmatpush.msra.mxu0 %v1840
    %1894 = vmatpush.msra.mxu0 %v1837
    %1895 = vmatpush.msra.mxu0 %v1834
    %1896 = vmatpush.msra.mxu0 %v1831
    %1897 = vmatpush.msra.mxu0 %v1828
    %1898 = vmatpush.msra.mxu0 %v1825
    %1899 = vmatpush.msra.mxu0 %v1822
    %1900 = vmatpush.msra.mxu0 %v1819
    %1901 = vmatpush.msra.mxu0 %v1816
    %1902 = vmatpush.msra.mxu0 %v1813
    %1903 = vmatpush.msra.mxu0 %v1810
    %1904 = vmatpush.msra.mxu0 %v1807
    %1905 = vmatpush.msra.mxu0 %v1804
    %1906 = vmatmul.f32.gmra.mxu0 %v1797
    %v1907 = vpop.f32.mrf.mxu0
    %v1908 = vadd.f32 0.0, %v1907
    %1909 = vdwg.mxu0
    %v1910 = vadd.f32 %v1799, %v1868
    %v1911 = vsub.f32 0.0, %v1910
    %v1912 = vmul.f32 %v1911, 1.442695
    %v1913 = vpow.pop %v1912
    %v1914 = vadd.f32 %v1913, 1.0
    %v1915 = vrcp.pop %v1914
    %v1916 = vadd.f32 %v1800, %v1888
    %v1917 = vsub.f32 0.0, %v1916
    %v1918 = vmul.f32 %v1917, 1.442695
    %v1919 = vpow.pop %v1918
    %v1920 = vadd.f32 %v1919, 1.0
    %v1921 = vrcp.pop %v1920
    %v1922 = vadd.f32 %v1908, %v1788
    %v1923 = vmul.f32 %v1915, %v1922
    %v1924 = vadd.f32 %v1801, %v1923
    %v1925 = vtanh.pop %v1924
    %v1926 = vsub.f32 1.0, %v1921
    %v1927 = vmul.f32 %v1926, %v1925
    %v1928 = vmul.f32 %v1921, %v1797
    %v1929 = vadd.f32 %v1927, %v1928
    %1930 = vst [vmem:[%s631] sm:$0xff] %v1929
    %v1931 = vld [vmem:[%s635] sm:$0xff]
    %v1932 = vld [vmem:[%s635 + $0x8] sm:$0xff]
    %v1933 = vld [vmem:[%s635 + $0x10] sm:$0xff]
    %v1934 = vld [vmem:[#allocation14] sm:$0xff]
    %v1935 = vld [vmem:[#allocation14 + $0x8] sm:$0xff]
    %v1936 = vld [vmem:[#allocation14 + $0x10] sm:$0xff]
    %v1937 = vld [vmem:[#allocation14 + $0x18] sm:$0xff]
    %v1938 = vld [vmem:[#allocation14 + $0x20] sm:$0xff]
    %v1939 = vld [vmem:[#allocation14 + $0x28] sm:$0xff]
    %v1940 = vld [vmem:[#allocation14 + $0x30] sm:$0xff]
    %v1941 = vld [vmem:[#allocation14 + $0x38] sm:$0xff]
    %v1942 = vld [vmem:[#allocation14 + $0x40] sm:$0xff]
    %v1943 = vld [vmem:[#allocation14 + $0x48] sm:$0xff]
    %v1944 = vld [vmem:[#allocation14 + $0x50] sm:$0xff]
    %v1945 = vld [vmem:[#allocation14 + $0x58] sm:$0xff]
    %v1946 = vld [vmem:[#allocation14 + $0x60] sm:$0xff]
    %v1947 = vld [vmem:[#allocation14 + $0x68] sm:$0xff]
    %v1948 = vld [vmem:[#allocation14 + $0x70] sm:$0xff]
    %v1949 = vld [vmem:[#allocation14 + $0x78] sm:$0xff]
    %v1950 = vld [vmem:[#allocation14 + $0x80] sm:$0xff]
    %v1951 = vld [vmem:[#allocation14 + $0x88] sm:$0xff]
    %v1952 = vld [vmem:[#allocation14 + $0x90] sm:$0xff]
    %v1953 = vld [vmem:[#allocation14 + $0x98] sm:$0xff]
    %v1954 = vld [vmem:[#allocation14 + $0xa0] sm:$0xff]
    %v1955 = vld [vmem:[#allocation14 + $0xa8] sm:$0xff]
    %v1956 = vld [vmem:[#allocation14 + $0xb0] sm:$0xff]
    %v1957 = vld [vmem:[#allocation14 + $0xb8] sm:$0xff]
    %v1958 = vld [vmem:[#allocation14 + $0xc0] sm:$0xff]
    %v1959 = vld [vmem:[#allocation14 + $0xc8] sm:$0xff]
    %v1960 = vld [vmem:[#allocation14 + $0xd0] sm:$0xff]
    %v1961 = vld [vmem:[#allocation14 + $0xd8] sm:$0xff]
    %v1962 = vld [vmem:[#allocation14 + $0xe0] sm:$0xff]
    %v1963 = vld [vmem:[#allocation14 + $0xe8] sm:$0xff]
    %v1964 = vld [vmem:[#allocation14 + $0xf0] sm:$0xff]
    %v1965 = vld [vmem:[#allocation14 + $0xf8] sm:$0xff]
    %v1966 = vld [vmem:[#allocation14 + $0x100] sm:$0xff]
    %v1967 = vld [vmem:[#allocation14 + $0x108] sm:$0xff]
    %v1968 = vld [vmem:[#allocation14 + $0x110] sm:$0xff]
    %v1969 = vld [vmem:[#allocation14 + $0x118] sm:$0xff]
    %v1970 = vld [vmem:[#allocation14 + $0x120] sm:$0xff]
    %v1971 = vld [vmem:[#allocation14 + $0x128] sm:$0xff]
    %v1972 = vld [vmem:[#allocation14 + $0x130] sm:$0xff]
    %v1973 = vld [vmem:[#allocation14 + $0x138] sm:$0xff]
    %v1974 = vld [vmem:[#allocation14 + $0x140] sm:$0xff]
    %v1975 = vld [vmem:[#allocation14 + $0x148] sm:$0xff]
    %v1976 = vld [vmem:[#allocation14 + $0x150] sm:$0xff]
    %v1977 = vld [vmem:[#allocation14 + $0x158] sm:$0xff]
    %v1978 = vld [vmem:[#allocation14 + $0x160] sm:$0xff]
    %v1979 = vld [vmem:[#allocation14 + $0x168] sm:$0xff]
    %v1980 = vld [vmem:[#allocation14 + $0x170] sm:$0xff]
    %v1981 = vld [vmem:[#allocation14 + $0x178] sm:$0xff]
    %1982 = vmatpush.msra.mxu0 %v1979
    %1983 = vmatpush.msra.mxu0 %v1976
    %1984 = vmatpush.msra.mxu0 %v1973
    %1985 = vmatpush.msra.mxu0 %v1970
    %1986 = vmatpush.msra.mxu0 %v1967
    %1987 = vmatpush.msra.mxu0 %v1964
    %1988 = vmatpush.msra.mxu0 %v1961
    %1989 = vmatpush.msra.mxu0 %v1958
    %1990 = vmatpush.msra.mxu0 %v1955
    %1991 = vmatpush.msra.mxu0 %v1952
    %1992 = vmatpush.msra.mxu0 %v1949
    %1993 = vmatpush.msra.mxu0 %v1946
    %1994 = vmatpush.msra.mxu0 %v1943
    %1995 = vmatpush.msra.mxu0 %v1940
    %1996 = vmatpush.msra.mxu0 %v1937
    %1997 = vmatpush.msra.mxu0 %v1934
    %1998 = vmatmul.f32.gmra.mxu0 %v1929
    %v1999 = vpop.f32.mrf.mxu0
    %v2000 = vadd.f32 0.0, %v1999
    %2001 = vdwg.mxu0
    %2002 = vmatpush.msra.mxu0 %v1980
    %2003 = vmatpush.msra.mxu0 %v1977
    %2004 = vmatpush.msra.mxu0 %v1974
    %2005 = vmatpush.msra.mxu0 %v1971
    %2006 = vmatpush.msra.mxu0 %v1968
    %2007 = vmatpush.msra.mxu0 %v1965
    %2008 = vmatpush.msra.mxu0 %v1962
    %2009 = vmatpush.msra.mxu0 %v1959
    %2010 = vmatpush.msra.mxu0 %v1956
    %2011 = vmatpush.msra.mxu0 %v1953
    %2012 = vmatpush.msra.mxu0 %v1950
    %2013 = vmatpush.msra.mxu0 %v1947
    %2014 = vmatpush.msra.mxu0 %v1944
    %2015 = vmatpush.msra.mxu0 %v1941
    %2016 = vmatpush.msra.mxu0 %v1938
    %2017 = vmatpush.msra.mxu0 %v1935
    %2018 = vmatmul.f32.gmra.mxu0 %v1929
    %v2019 = vpop.f32.mrf.mxu0
    %v2020 = vadd.f32 0.0, %v2019
    %2021 = vdwg.mxu0
    %2022 = vmatpush.msra.mxu0 %v1981
    %2023 = vmatpush.msra.mxu0 %v1978
    %2024 = vmatpush.msra.mxu0 %v1975
    %2025 = vmatpush.msra.mxu0 %v1972
    %2026 = vmatpush.msra.mxu0 %v1969
    %2027 = vmatpush.msra.mxu0 %v1966
    %2028 = vmatpush.msra.mxu0 %v1963
    %2029 = vmatpush.msra.mxu0 %v1960
    %2030 = vmatpush.msra.mxu0 %v1957
    %2031 = vmatpush.msra.mxu0 %v1954
    %2032 = vmatpush.msra.mxu0 %v1951
    %2033 = vmatpush.msra.mxu0 %v1948
    %2034 = vmatpush.msra.mxu0 %v1945
    %2035 = vmatpush.msra.mxu0 %v1942
    %2036 = vmatpush.msra.mxu0 %v1939
    %2037 = vmatpush.msra.mxu0 %v1936
    %2038 = vmatmul.f32.gmra.mxu0 %v1929
    %v2039 = vpop.f32.mrf.mxu0
    %v2040 = vadd.f32 0.0, %v2039
    %2041 = vdwg.mxu0
    %v2042 = vadd.f32 %v1931, %v2000
    %v2043 = vsub.f32 0.0, %v2042
    %v2044 = vmul.f32 %v2043, 1.442695
    %v2045 = vpow.pop %v2044
    %v2046 = vadd.f32 %v2045, 1.0
    %v2047 = vrcp.pop %v2046
    %v2048 = vadd.f32 %v1932, %v2020
    %v2049 = vsub.f32 0.0, %v2048
    %v2050 = vmul.f32 %v2049, 1.442695
    %v2051 = vpow.pop %v2050
    %v2052 = vadd.f32 %v2051, 1.0
    %v2053 = vrcp.pop %v2052
    %v2054 = vadd.f32 %v2040, %v1788
    %v2055 = vmul.f32 %v2047, %v2054
    %v2056 = vadd.f32 %v1933, %v2055
    %v2057 = vtanh.pop %v2056
    %v2058 = vsub.f32 1.0, %v2053
    %v2059 = vmul.f32 %v2058, %v2057
    %v2060 = vmul.f32 %v2053, %v1929
    %v2061 = vadd.f32 %v2059, %v2060
    %2062 = vst [vmem:[%s767] sm:$0xff] %v2061
    %v2063 = vld [vmem:[%s771] sm:$0xff]
    %v2064 = vld [vmem:[%s771 + $0x8] sm:$0xff]
    %v2065 = vld [vmem:[%s771 + $0x10] sm:$0xff]
    %v2066 = vld [vmem:[#allocation14] sm:$0xff]
    %v2067 = vld [vmem:[#allocation14 + $0x8] sm:$0xff]
    %v2068 = vld [vmem:[#allocation14 + $0x10] sm:$0xff]
    %v2069 = vld [vmem:[#allocation14 + $0x18] sm:$0xff]
    %v2070 = vld [vmem:[#allocation14 + $0x20] sm:$0xff]
    %v2071 = vld [vmem:[#allocation14 + $0x28] sm:$0xff]
    %v2072 = vld [vmem:[#allocation14 + $0x30] sm:$0xff]
    %v2073 = vld [vmem:[#allocation14 + $0x38] sm:$0xff]
    %v2074 = vld [vmem:[#allocation14 + $0x40] sm:$0xff]
    %v2075 = vld [vmem:[#allocation14 + $0x48] sm:$0xff]
    %v2076 = vld [vmem:[#allocation14 + $0x50] sm:$0xff]
    %v2077 = vld [vmem:[#allocation14 + $0x58] sm:$0xff]
    %v2078 = vld [vmem:[#allocation14 + $0x60] sm:$0xff]
    %v2079 = vld [vmem:[#allocation14 + $0x68] sm:$0xff]
    %v2080 = vld [vmem:[#allocation14 + $0x70] sm:$0xff]
    %v2081 = vld [vmem:[#allocation14 + $0x78] sm:$0xff]
    %v2082 = vld [vmem:[#allocation14 + $0x80] sm:$0xff]
    %v2083 = vld [vmem:[#allocation14 + $0x88] sm:$0xff]
    %v2084 = vld [vmem:[#allocation14 + $0x90] sm:$0xff]
    %v2085 = vld [vmem:[#allocation14 + $0x98] sm:$0xff]
    %v2086 = vld [vmem:[#allocation14 + $0xa0] sm:$0xff]
    %v2087 = vld [vmem:[#allocation14 + $0xa8] sm:$0xff]
    %v2088 = vld [vmem:[#allocation14 + $0xb0] sm:$0xff]
    %v2089 = vld [vmem:[#allocation14 + $0xb8] sm:$0xff]
    %v2090 = vld [vmem:[#allocation14 + $0xc0] sm:$0xff]
    %v2091 = vld [vmem:[#allocation14 + $0xc8] sm:$0xff]
    %v2092 = vld [vmem:[#allocation14 + $0xd0] sm:$0xff]
    %v2093 = vld [vmem:[#allocation14 + $0xd8] sm:$0xff]
    %v2094 = vld [vmem:[#allocation14 + $0xe0] sm:$0xff]
    %v2095 = vld [vmem:[#allocation14 + $0xe8] sm:$0xff]
    %v2096 = vld [vmem:[#allocation14 + $0xf0] sm:$0xff]
    %v2097 = vld [vmem:[#allocation14 + $0xf8] sm:$0xff]
    %v2098 = vld [vmem:[#allocation14 + $0x100] sm:$0xff]
    %v2099 = vld [vmem:[#allocation14 + $0x108] sm:$0xff]
    %v2100 = vld [vmem:[#allocation14 + $0x110] sm:$0xff]
    %v2101 = vld [vmem:[#allocation14 + $0x118] sm:$0xff]
    %v2102 = vld [vmem:[#allocation14 + $0x120] sm:$0xff]
    %v2103 = vld [vmem:[#allocation14 + $0x128] sm:$0xff]
    %v2104 = vld [vmem:[#allocation14 + $0x130] sm:$0xff]
    %v2105 = vld [vmem:[#allocation14 + $0x138] sm:$0xff]
    %v2106 = vld [vmem:[#allocation14 + $0x140] sm:$0xff]
    %v2107 = vld [vmem:[#allocation14 + $0x148] sm:$0xff]
    %v2108 = vld [vmem:[#allocation14 + $0x150] sm:$0xff]
    %v2109 = vld [vmem:[#allocation14 + $0x158] sm:$0xff]
    %v2110 = vld [vmem:[#allocation14 + $0x160] sm:$0xff]
    %v2111 = vld [vmem:[#allocation14 + $0x168] sm:$0xff]
    %v2112 = vld [vmem:[#allocation14 + $0x170] sm:$0xff]
    %v2113 = vld [vmem:[#allocation14 + $0x178] sm:$0xff]
    %2114 = vmatpush.msra.mxu0 %v2111
    %2115 = vmatpush.msra.mxu0 %v2108
    %2116 = vmatpush.msra.mxu0 %v2105
    %2117 = vmatpush.msra.mxu0 %v2102
    %2118 = vmatpush.msra.mxu0 %v2099
    %2119 = vmatpush.msra.mxu0 %v2096
    %2120 = vmatpush.msra.mxu0 %v2093
    %2121 = vmatpush.msra.mxu0 %v2090
    %2122 = vmatpush.msra.mxu0 %v2087
    %2123 = vmatpush.msra.mxu0 %v2084
    %2124 = vmatpush.msra.mxu0 %v2081
    %2125 = vmatpush.msra.mxu0 %v2078
    %2126 = vmatpush.msra.mxu0 %v2075
    %2127 = vmatpush.msra.mxu0 %v2072
    %2128 = vmatpush.msra.mxu0 %v2069
    %2129 = vmatpush.msra.mxu0 %v2066
    %2130 = vmatmul.f32.gmra.mxu0 %v2061
    %v2131 = vpop.f32.mrf.mxu0
    %v2132 = vadd.f32 0.0, %v2131
    %2133 = vdwg.mxu0
    %2134 = vmatpush.msra.mxu0 %v2112
    %2135 = vmatpush.msra.mxu0 %v2109
    %2136 = vmatpush.msra.mxu0 %v2106
    %2137 = vmatpush.msra.mxu0 %v2103
    %2138 = vmatpush.msra.mxu0 %v2100
    %2139 = vmatpush.msra.mxu0 %v2097
    %2140 = vmatpush.msra.mxu0 %v2094
    %2141 = vmatpush.msra.mxu0 %v2091
    %2142 = vmatpush.msra.mxu0 %v2088
    %2143 = vmatpush.msra.mxu0 %v2085
    %2144 = vmatpush.msra.mxu0 %v2082
    %2145 = vmatpush.msra.mxu0 %v2079
    %2146 = vmatpush.msra.mxu0 %v2076
    %2147 = vmatpush.msra.mxu0 %v2073
    %2148 = vmatpush.msra.mxu0 %v2070
    %2149 = vmatpush.msra.mxu0 %v2067
    %2150 = vmatmul.f32.gmra.mxu0 %v2061
    %v2151 = vpop.f32.mrf.mxu0
    %v2152 = vadd.f32 0.0, %v2151
    %2153 = vdwg.mxu0
    %2154 = vmatpush.msra.mxu0 %v2113
    %2155 = vmatpush.msra.mxu0 %v2110
    %2156 = vmatpush.msra.mxu0 %v2107
    %2157 = vmatpush.msra.mxu0 %v2104
    %2158 = vmatpush.msra.mxu0 %v2101
    %2159 = vmatpush.msra.mxu0 %v2098
    %2160 = vmatpush.msra.mxu0 %v2095
    %2161 = vmatpush.msra.mxu0 %v2092
    %2162 = vmatpush.msra.mxu0 %v2089
    %2163 = vmatpush.msra.mxu0 %v2086
    %2164 = vmatpush.msra.mxu0 %v2083
    %2165 = vmatpush.msra.mxu0 %v2080
    %2166 = vmatpush.msra.mxu0 %v2077
    %2167 = vmatpush.msra.mxu0 %v2074
    %2168 = vmatpush.msra.mxu0 %v2071
    %2169 = vmatpush.msra.mxu0 %v2068
    %2170 = vmatmul.f32.gmra.mxu0 %v2061
    %v2171 = vpop.f32.mrf.mxu0
    %v2172 = vadd.f32 0.0, %v2171
    %2173 = vdwg.mxu0
    %v2174 = vadd.f32 %v2063, %v2132
    %v2175 = vsub.f32 0.0, %v2174
    %v2176 = vmul.f32 %v2175, 1.442695
    %v2177 = vpow.pop %v2176
    %v2178 = vadd.f32 %v2177, 1.0
    %v2179 = vrcp.pop %v2178
    %v2180 = vadd.f32 %v2064, %v2152
    %v2181 = vsub.f32 0.0, %v2180
    %v2182 = vmul.f32 %v2181, 1.442695
    %v2183 = vpow.pop %v2182
    %v2184 = vadd.f32 %v2183, 1.0
    %v2185 = vrcp.pop %v2184
    %v2186 = vadd.f32 %v2172, %v1788
    %v2187 = vmul.f32 %v2179, %v2186
    %v2188 = vadd.f32 %v2065, %v2187
    %v2189 = vtanh.pop %v2188
    %v2190 = vsub.f32 1.0, %v2185
    %v2191 = vmul.f32 %v2190, %v2189
    %v2192 = vmul.f32 %v2185, %v2061
    %v2193 = vadd.f32 %v2191, %v2192
    %2194 = vst [vmem:[%s903] sm:$0xff] %v2193
    %v2195 = vld [vmem:[%s907] sm:$0xff]
    %v2196 = vld [vmem:[%s907 + $0x8] sm:$0xff]
    %v2197 = vld [vmem:[%s907 + $0x10] sm:$0xff]
    %v2198 = vld [vmem:[#allocation14] sm:$0xff]
    %v2199 = vld [vmem:[#allocation14 + $0x8] sm:$0xff]
    %v2200 = vld [vmem:[#allocation14 + $0x10] sm:$0xff]
    %v2201 = vld [vmem:[#allocation14 + $0x18] sm:$0xff]
    %v2202 = vld [vmem:[#allocation14 + $0x20] sm:$0xff]
    %v2203 = vld [vmem:[#allocation14 + $0x28] sm:$0xff]
    %v2204 = vld [vmem:[#allocation14 + $0x30] sm:$0xff]
    %v2205 = vld [vmem:[#allocation14 + $0x38] sm:$0xff]
    %v2206 = vld [vmem:[#allocation14 + $0x40] sm:$0xff]
    %v2207 = vld [vmem:[#allocation14 + $0x48] sm:$0xff]
    %v2208 = vld [vmem:[#allocation14 + $0x50] sm:$0xff]
    %v2209 = vld [vmem:[#allocation14 + $0x58] sm:$0xff]
    %v2210 = vld [vmem:[#allocation14 + $0x60] sm:$0xff]
    %v2211 = vld [vmem:[#allocation14 + $0x68] sm:$0xff]
    %v2212 = vld [vmem:[#allocation14 + $0x70] sm:$0xff]
    %v2213 = vld [vmem:[#allocation14 + $0x78] sm:$0xff]
    %v2214 = vld [vmem:[#allocation14 + $0x80] sm:$0xff]
    %v2215 = vld [vmem:[#allocation14 + $0x88] sm:$0xff]
    %v2216 = vld [vmem:[#allocation14 + $0x90] sm:$0xff]
    %v2217 = vld [vmem:[#allocation14 + $0x98] sm:$0xff]
    %v2218 = vld [vmem:[#allocation14 + $0xa0] sm:$0xff]
    %v2219 = vld [vmem:[#allocation14 + $0xa8] sm:$0xff]
    %v2220 = vld [vmem:[#allocation14 + $0xb0] sm:$0xff]
    %v2221 = vld [vmem:[#allocation14 + $0xb8] sm:$0xff]
    %v2222 = vld [vmem:[#allocation14 + $0xc0] sm:$0xff]
    %v2223 = vld [vmem:[#allocation14 + $0xc8] sm:$0xff]
    %v2224 = vld [vmem:[#allocation14 + $0xd0] sm:$0xff]
    %v2225 = vld [vmem:[#allocation14 + $0xd8] sm:$0xff]
    %v2226 = vld [vmem:[#allocation14 + $0xe0] sm:$0xff]
    %v2227 = vld [vmem:[#allocation14 + $0xe8] sm:$0xff]
    %v2228 = vld [vmem:[#allocation14 + $0xf0] sm:$0xff]
    %v2229 = vld [vmem:[#allocation14 + $0xf8] sm:$0xff]
    %v2230 = vld [vmem:[#allocation14 + $0x100] sm:$0xff]
    %v2231 = vld [vmem:[#allocation14 + $0x108] sm:$0xff]
    %v2232 = vld [vmem:[#allocation14 + $0x110] sm:$0xff]
    %v2233 = vld [vmem:[#allocation14 + $0x118] sm:$0xff]
    %v2234 = vld [vmem:[#allocation14 + $0x120] sm:$0xff]
    %v2235 = vld [vmem:[#allocation14 + $0x128] sm:$0xff]
    %v2236 = vld [vmem:[#allocation14 + $0x130] sm:$0xff]
    %v2237 = vld [vmem:[#allocation14 + $0x138] sm:$0xff]
    %v2238 = vld [vmem:[#allocation14 + $0x140] sm:$0xff]
    %v2239 = vld [vmem:[#allocation14 + $0x148] sm:$0xff]
    %v2240 = vld [vmem:[#allocation14 + $0x150] sm:$0xff]
    %v2241 = vld [vmem:[#allocation14 + $0x158] sm:$0xff]
    %v2242 = vld [vmem:[#allocation14 + $0x160] sm:$0xff]
    %v2243 = vld [vmem:[#allocation14 + $0x168] sm:$0xff]
    %v2244 = vld [vmem:[#allocation14 + $0x170] sm:$0xff]
    %v2245 = vld [vmem:[#allocation14 + $0x178] sm:$0xff]
    %2246 = vmatpush.msra.mxu0 %v2243
    %2247 = vmatpush.msra.mxu0 %v2240
    %2248 = vmatpush.msra.mxu0 %v2237
    %2249 = vmatpush.msra.mxu0 %v2234
    %2250 = vmatpush.msra.mxu0 %v2231
    %2251 = vmatpush.msra.mxu0 %v2228
    %2252 = vmatpush.msra.mxu0 %v2225
    %2253 = vmatpush.msra.mxu0 %v2222
    %2254 = vmatpush.msra.mxu0 %v2219
    %2255 = vmatpush.msra.mxu0 %v2216
    %2256 = vmatpush.msra.mxu0 %v2213
    %2257 = vmatpush.msra.mxu0 %v2210
    %2258 = vmatpush.msra.mxu0 %v2207
    %2259 = vmatpush.msra.mxu0 %v2204
    %2260 = vmatpush.msra.mxu0 %v2201
    %2261 = vmatpush.msra.mxu0 %v2198
    %2262 = vmatmul.f32.gmra.mxu0 %v2193
    %v2263 = vpop.f32.mrf.mxu0
    %v2264 = vadd.f32 0.0, %v2263
    %2265 = vdwg.mxu0
    %2266 = vmatpush.msra.mxu0 %v2244
    %2267 = vmatpush.msra.mxu0 %v2241
    %2268 = vmatpush.msra.mxu0 %v2238
    %2269 = vmatpush.msra.mxu0 %v2235
    %2270 = vmatpush.msra.mxu0 %v2232
    %2271 = vmatpush.msra.mxu0 %v2229
    %2272 = vmatpush.msra.mxu0 %v2226
    %2273 = vmatpush.msra.mxu0 %v2223
    %2274 = vmatpush.msra.mxu0 %v2220
    %2275 = vmatpush.msra.mxu0 %v2217
    %2276 = vmatpush.msra.mxu0 %v2214
    %2277 = vmatpush.msra.mxu0 %v2211
    %2278 = vmatpush.msra.mxu0 %v2208
    %2279 = vmatpush.msra.mxu0 %v2205
    %2280 = vmatpush.msra.mxu0 %v2202
    %2281 = vmatpush.msra.mxu0 %v2199
    %2282 = vmatmul.f32.gmra.mxu0 %v2193
    %v2283 = vpop.f32.mrf.mxu0
    %v2284 = vadd.f32 0.0, %v2283
    %2285 = vdwg.mxu0
    %2286 = vmatpush.msra.mxu0 %v2245
    %2287 = vmatpush.msra.mxu0 %v2242
    %2288 = vmatpush.msra.mxu0 %v2239
    %2289 = vmatpush.msra.mxu0 %v2236
    %2290 = vmatpush.msra.mxu0 %v2233
    %2291 = vmatpush.msra.mxu0 %v2230
    %2292 = vmatpush.msra.mxu0 %v2227
    %2293 = vmatpush.msra.mxu0 %v2224
    %2294 = vmatpush.msra.mxu0 %v2221
    %2295 = vmatpush.msra.mxu0 %v2218
    %2296 = vmatpush.msra.mxu0 %v2215
    %2297 = vmatpush.msra.mxu0 %v2212
    %2298 = vmatpush.msra.mxu0 %v2209
    %2299 = vmatpush.msra.mxu0 %v2206
    %2300 = vmatpush.msra.mxu0 %v2203
    %2301 = vmatpush.msra.mxu0 %v2200
    %2302 = vmatmul.f32.gmra.mxu0 %v2193
    %v2303 = vpop.f32.mrf.mxu0
    %v2304 = vadd.f32 0.0, %v2303
    %2305 = vdwg.mxu0
    %v2306 = vadd.f32 %v2195, %v2264
    %v2307 = vsub.f32 0.0, %v2306
    %v2308 = vmul.f32 %v2307, 1.442695
    %v2309 = vpow.pop %v2308
    %v2310 = vadd.f32 %v2309, 1.0
    %v2311 = vrcp.pop %v2310
    %v2312 = vadd.f32 %v2196, %v2284
    %v2313 = vsub.f32 0.0, %v2312
    %v2314 = vmul.f32 %v2313, 1.442695
    %v2315 = vpow.pop %v2314
    %v2316 = vadd.f32 %v2315, 1.0
    %v2317 = vrcp.pop %v2316
    %v2318 = vadd.f32 %v2304, %v1788
    %v2319 = vmul.f32 %v2311, %v2318
    %v2320 = vadd.f32 %v2197, %v2319
    %v2321 = vtanh.pop %v2320
    %v2322 = vsub.f32 1.0, %v2317
    %v2323 = vmul.f32 %v2322, %v2321
    %v2324 = vmul.f32 %v2317, %v2193
    %v2325 = vadd.f32 %v2323, %v2324
    %2326 = vst [vmem:[%s1039] sm:$0xff] %v2325
    %v2327 = vld [vmem:[%s1043] sm:$0xff]
    %v2328 = vld [vmem:[%s1043 + $0x8] sm:$0xff]
    %v2329 = vld [vmem:[%s1043 + $0x10] sm:$0xff]
    %v2330 = vld [vmem:[#allocation14] sm:$0xff]
    %v2331 = vld [vmem:[#allocation14 + $0x8] sm:$0xff]
    %v2332 = vld [vmem:[#allocation14 + $0x10] sm:$0xff]
    %v2333 = vld [vmem:[#allocation14 + $0x18] sm:$0xff]
    %v2334 = vld [vmem:[#allocation14 + $0x20] sm:$0xff]
    %v2335 = vld [vmem:[#allocation14 + $0x28] sm:$0xff]
    %v2336 = vld [vmem:[#allocation14 + $0x30] sm:$0xff]
    %v2337 = vld [vmem:[#allocation14 + $0x38] sm:$0xff]
    %v2338 = vld [vmem:[#allocation14 + $0x40] sm:$0xff]
    %v2339 = vld [vmem:[#allocation14 + $0x48] sm:$0xff]
    %v2340 = vld [vmem:[#allocation14 + $0x50] sm:$0xff]
    %v2341 = vld [vmem:[#allocation14 + $0x58] sm:$0xff]
    %v2342 = vld [vmem:[#allocation14 + $0x60] sm:$0xff]
    %v2343 = vld [vmem:[#allocation14 + $0x68] sm:$0xff]
    %v2344 = vld [vmem:[#allocation14 + $0x70] sm:$0xff]
    %v2345 = vld [vmem:[#allocation14 + $0x78] sm:$0xff]
    %v2346 = vld [vmem:[#allocation14 + $0x80] sm:$0xff]
    %v2347 = vld [vmem:[#allocation14 + $0x88] sm:$0xff]
    %v2348 = vld [vmem:[#allocation14 + $0x90] sm:$0xff]
    %v2349 = vld [vmem:[#allocation14 + $0x98] sm:$0xff]
    %v2350 = vld [vmem:[#allocation14 + $0xa0] sm:$0xff]
    %v2351 = vld [vmem:[#allocation14 + $0xa8] sm:$0xff]
    %v2352 = vld [vmem:[#allocation14 + $0xb0] sm:$0xff]
    %v2353 = vld [vmem:[#allocation14 + $0xb8] sm:$0xff]
    %v2354 = vld [vmem:[#allocation14 + $0xc0] sm:$0xff]
    %v2355 = vld [vmem:[#allocation14 + $0xc8] sm:$0xff]
    %v2356 = vld [vmem:[#allocation14 + $0xd0] sm:$0xff]
    %v2357 = vld [vmem:[#allocation14 + $0xd8] sm:$0xff]
    %v2358 = vld [vmem:[#allocation14 + $0xe0] sm:$0xff]
    %v2359 = vld [vmem:[#allocation14 + $0xe8] sm:$0xff]
    %v2360 = vld [vmem:[#allocation14 + $0xf0] sm:$0xff]
    %v2361 = vld [vmem:[#allocation14 + $0xf8] sm:$0xff]
    %v2362 = vld [vmem:[#allocation14 + $0x100] sm:$0xff]
    %v2363 = vld [vmem:[#allocation14 + $0x108] sm:$0xff]
    %v2364 = vld [vmem:[#allocation14 + $0x110] sm:$0xff]
    %v2365 = vld [vmem:[#allocation14 + $0x118] sm:$0xff]
    %v2366 = vld [vmem:[#allocation14 + $0x120] sm:$0xff]
    %v2367 = vld [vmem:[#allocation14 + $0x128] sm:$0xff]
    %v2368 = vld [vmem:[#allocation14 + $0x130] sm:$0xff]
    %v2369 = vld [vmem:[#allocation14 + $0x138] sm:$0xff]
    %v2370 = vld [vmem:[#allocation14 + $0x140] sm:$0xff]
    %v2371 = vld [vmem:[#allocation14 + $0x148] sm:$0xff]
    %v2372 = vld [vmem:[#allocation14 + $0x150] sm:$0xff]
    %v2373 = vld [vmem:[#allocation14 + $0x158] sm:$0xff]
    %v2374 = vld [vmem:[#allocation14 + $0x160] sm:$0xff]
    %v2375 = vld [vmem:[#allocation14 + $0x168] sm:$0xff]
    %v2376 = vld [vmem:[#allocation14 + $0x170] sm:$0xff]
    %v2377 = vld [vmem:[#allocation14 + $0x178] sm:$0xff]
    %2378 = vmatpush.msra.mxu0 %v2375
    %2379 = vmatpush.msra.mxu0 %v2372
    %2380 = vmatpush.msra.mxu0 %v2369
    %2381 = vmatpush.msra.mxu0 %v2366
    %2382 = vmatpush.msra.mxu0 %v2363
    %2383 = vmatpush.msra.mxu0 %v2360
    %2384 = vmatpush.msra.mxu0 %v2357
    %2385 = vmatpush.msra.mxu0 %v2354
    %2386 = vmatpush.msra.mxu0 %v2351
    %2387 = vmatpush.msra.mxu0 %v2348
    %2388 = vmatpush.msra.mxu0 %v2345
    %2389 = vmatpush.msra.mxu0 %v2342
    %2390 = vmatpush.msra.mxu0 %v2339
    %2391 = vmatpush.msra.mxu0 %v2336
    %2392 = vmatpush.msra.mxu0 %v2333
    %2393 = vmatpush.msra.mxu0 %v2330
    %2394 = vmatmul.f32.gmra.mxu0 %v2325
    %v2395 = vpop.f32.mrf.mxu0
    %v2396 = vadd.f32 0.0, %v2395
    %2397 = vdwg.mxu0
    %2398 = vmatpush.msra.mxu0 %v2376
    %2399 = vmatpush.msra.mxu0 %v2373
    %2400 = vmatpush.msra.mxu0 %v2370
    %2401 = vmatpush.msra.mxu0 %v2367
    %2402 = vmatpush.msra.mxu0 %v2364
    %2403 = vmatpush.msra.mxu0 %v2361
    %2404 = vmatpush.msra.mxu0 %v2358
    %2405 = vmatpush.msra.mxu0 %v2355
    %2406 = vmatpush.msra.mxu0 %v2352
    %2407 = vmatpush.msra.mxu0 %v2349
    %2408 = vmatpush.msra.mxu0 %v2346
    %2409 = vmatpush.msra.mxu0 %v2343
    %2410 = vmatpush.msra.mxu0 %v2340
    %2411 = vmatpush.msra.mxu0 %v2337
    %2412 = vmatpush.msra.mxu0 %v2334
    %2413 = vmatpush.msra.mxu0 %v2331
    %2414 = vmatmul.f32.gmra.mxu0 %v2325
    %v2415 = vpop.f32.mrf.mxu0
    %v2416 = vadd.f32 0.0, %v2415
    %2417 = vdwg.mxu0
    %2418 = vmatpush.msra.mxu0 %v2377
    %2419 = vmatpush.msra.mxu0 %v2374
    %2420 = vmatpush.msra.mxu0 %v2371
    %2421 = vmatpush.msra.mxu0 %v2368
    %2422 = vmatpush.msra.mxu0 %v2365
    %2423 = vmatpush.msra.mxu0 %v2362
    %2424 = vmatpush.msra.mxu0 %v2359
    %2425 = vmatpush.msra.mxu0 %v2356
    %2426 = vmatpush.msra.mxu0 %v2353
    %2427 = vmatpush.msra.mxu0 %v2350
    %2428 = vmatpush.msra.mxu0 %v2347
    %2429 = vmatpush.msra.mxu0 %v2344
    %2430 = vmatpush.msra.mxu0 %v2341
    %2431 = vmatpush.msra.mxu0 %v2338
    %2432 = vmatpush.msra.mxu0 %v2335
    %2433 = vmatpush.msra.mxu0 %v2332
    %2434 = vmatmul.f32.gmra.mxu0 %v2325
    %v2435 = vpop.f32.mrf.mxu0
    %v2436 = vadd.f32 0.0, %v2435
    %2437 = vdwg.mxu0
    %v2438 = vadd.f32 %v2327, %v2396
    %v2439 = vsub.f32 0.0, %v2438
    %v2440 = vmul.f32 %v2439, 1.442695
    %v2441 = vpow.pop %v2440
    %v2442 = vadd.f32 %v2441, 1.0
    %v2443 = vrcp.pop %v2442
    %v2444 = vadd.f32 %v2328, %v2416
    %v2445 = vsub.f32 0.0, %v2444
    %v2446 = vmul.f32 %v2445, 1.442695
    %v2447 = vpow.pop %v2446
    %v2448 = vadd.f32 %v2447, 1.0
    %v2449 = vrcp.pop %v2448
    %v2450 = vadd.f32 %v2436, %v1788
    %v2451 = vmul.f32 %v2443, %v2450
    %v2452 = vadd.f32 %v2329, %v2451
    %v2453 = vtanh.pop %v2452
    %v2454 = vsub.f32 1.0, %v2449
    %v2455 = vmul.f32 %v2454, %v2453
    %v2456 = vmul.f32 %v2449, %v2325
    %v2457 = vadd.f32 %v2455, %v2456
    %2458 = vst [vmem:[%s1175] sm:$0xff] %v2457
    %v2459 = vld [vmem:[%s1179] sm:$0xff]
    %v2460 = vld [vmem:[%s1179 + $0x8] sm:$0xff]
    %v2461 = vld [vmem:[%s1179 + $0x10] sm:$0xff]
    %v2462 = vld [vmem:[#allocation14] sm:$0xff]
    %v2463 = vld [vmem:[#allocation14 + $0x8] sm:$0xff]
    %v2464 = vld [vmem:[#allocation14 + $0x10] sm:$0xff]
    %v2465 = vld [vmem:[#allocation14 + $0x18] sm:$0xff]
    %v2466 = vld [vmem:[#allocation14 + $0x20] sm:$0xff]
    %v2467 = vld [vmem:[#allocation14 + $0x28] sm:$0xff]
    %v2468 = vld [vmem:[#allocation14 + $0x30] sm:$0xff]
    %v2469 = vld [vmem:[#allocation14 + $0x38] sm:$0xff]
    %v2470 = vld [vmem:[#allocation14 + $0x40] sm:$0xff]
    %v2471 = vld [vmem:[#allocation14 + $0x48] sm:$0xff]
    %v2472 = vld [vmem:[#allocation14 + $0x50] sm:$0xff]
    %v2473 = vld [vmem:[#allocation14 + $0x58] sm:$0xff]
    %v2474 = vld [vmem:[#allocation14 + $0x60] sm:$0xff]
    %v2475 = vld [vmem:[#allocation14 + $0x68] sm:$0xff]
    %v2476 = vld [vmem:[#allocation14 + $0x70] sm:$0xff]
    %v2477 = vld [vmem:[#allocation14 + $0x78] sm:$0xff]
    %v2478 = vld [vmem:[#allocation14 + $0x80] sm:$0xff]
    %v2479 = vld [vmem:[#allocation14 + $0x88] sm:$0xff]
    %v2480 = vld [vmem:[#allocation14 + $0x90] sm:$0xff]
    %v2481 = vld [vmem:[#allocation14 + $0x98] sm:$0xff]
    %v2482 = vld [vmem:[#allocation14 + $0xa0] sm:$0xff]
    %v2483 = vld [vmem:[#allocation14 + $0xa8] sm:$0xff]
    %v2484 = vld [vmem:[#allocation14 + $0xb0] sm:$0xff]
    %v2485 = vld [vmem:[#allocation14 + $0xb8] sm:$0xff]
    %v2486 = vld [vmem:[#allocation14 + $0xc0] sm:$0xff]
    %v2487 = vld [vmem:[#allocation14 + $0xc8] sm:$0xff]
    %v2488 = vld [vmem:[#allocation14 + $0xd0] sm:$0xff]
    %v2489 = vld [vmem:[#allocation14 + $0xd8] sm:$0xff]
    %v2490 = vld [vmem:[#allocation14 + $0xe0] sm:$0xff]
    %v2491 = vld [vmem:[#allocation14 + $0xe8] sm:$0xff]
    %v2492 = vld [vmem:[#allocation14 + $0xf0] sm:$0xff]
    %v2493 = vld [vmem:[#allocation14 + $0xf8] sm:$0xff]
    %v2494 = vld [vmem:[#allocation14 + $0x100] sm:$0xff]
    %v2495 = vld [vmem:[#allocation14 + $0x108] sm:$0xff]
    %v2496 = vld [vmem:[#allocation14 + $0x110] sm:$0xff]
    %v2497 = vld [vmem:[#allocation14 + $0x118] sm:$0xff]
    %v2498 = vld [vmem:[#allocation14 + $0x120] sm:$0xff]
    %v2499 = vld [vmem:[#allocation14 + $0x128] sm:$0xff]
    %v2500 = vld [vmem:[#allocation14 + $0x130] sm:$0xff]
    %v2501 = vld [vmem:[#allocation14 + $0x138] sm:$0xff]
    %v2502 = vld [vmem:[#allocation14 + $0x140] sm:$0xff]
    %v2503 = vld [vmem:[#allocation14 + $0x148] sm:$0xff]
    %v2504 = vld [vmem:[#allocation14 + $0x150] sm:$0xff]
    %v2505 = vld [vmem:[#allocation14 + $0x158] sm:$0xff]
    %v2506 = vld [vmem:[#allocation14 + $0x160] sm:$0xff]
    %v2507 = vld [vmem:[#allocation14 + $0x168] sm:$0xff]
    %v2508 = vld [vmem:[#allocation14 + $0x170] sm:$0xff]
    %v2509 = vld [vmem:[#allocation14 + $0x178] sm:$0xff]
    %2510 = vmatpush.msra.mxu0 %v2507
    %2511 = vmatpush.msra.mxu0 %v2504
    %2512 = vmatpush.msra.mxu0 %v2501
    %2513 = vmatpush.msra.mxu0 %v2498
    %2514 = vmatpush.msra.mxu0 %v2495
    %2515 = vmatpush.msra.mxu0 %v2492
    %2516 = vmatpush.msra.mxu0 %v2489
    %2517 = vmatpush.msra.mxu0 %v2486
    %2518 = vmatpush.msra.mxu0 %v2483
    %2519 = vmatpush.msra.mxu0 %v2480
    %2520 = vmatpush.msra.mxu0 %v2477
    %2521 = vmatpush.msra.mxu0 %v2474
    %2522 = vmatpush.msra.mxu0 %v2471
    %2523 = vmatpush.msra.mxu0 %v2468
    %2524 = vmatpush.msra.mxu0 %v2465
    %2525 = vmatpush.msra.mxu0 %v2462
    %2526 = vmatmul.f32.gmra.mxu0 %v2457
    %v2527 = vpop.f32.mrf.mxu0
    %v2528 = vadd.f32 0.0, %v2527
    %2529 = vdwg.mxu0
    %2530 = vmatpush.msra.mxu0 %v2508
    %2531 = vmatpush.msra.mxu0 %v2505
    %2532 = vmatpush.msra.mxu0 %v2502
    %2533 = vmatpush.msra.mxu0 %v2499
    %2534 = vmatpush.msra.mxu0 %v2496
    %2535 = vmatpush.msra.mxu0 %v2493
    %2536 = vmatpush.msra.mxu0 %v2490
    %2537 = vmatpush.msra.mxu0 %v2487
    %2538 = vmatpush.msra.mxu0 %v2484
    %2539 = vmatpush.msra.mxu0 %v2481
    %2540 = vmatpush.msra.mxu0 %v2478
    %2541 = vmatpush.msra.mxu0 %v2475
    %2542 = vmatpush.msra.mxu0 %v2472
    %2543 = vmatpush.msra.mxu0 %v2469
    %2544 = vmatpush.msra.mxu0 %v2466
    %2545 = vmatpush.msra.mxu0 %v2463
    %2546 = vmatmul.f32.gmra.mxu0 %v2457
    %v2547 = vpop.f32.mrf.mxu0
    %v2548 = vadd.f32 0.0, %v2547
    %2549 = vdwg.mxu0
    %2550 = vmatpush.msra.mxu0 %v2509
    %2551 = vmatpush.msra.mxu0 %v2506
    %2552 = vmatpush.msra.mxu0 %v2503
    %2553 = vmatpush.msra.mxu0 %v2500
    %2554 = vmatpush.msra.mxu0 %v2497
    %2555 = vmatpush.msra.mxu0 %v2494
    %2556 = vmatpush.msra.mxu0 %v2491
    %2557 = vmatpush.msra.mxu0 %v2488
    %2558 = vmatpush.msra.mxu0 %v2485
    %2559 = vmatpush.msra.mxu0 %v2482
    %2560 = vmatpush.msra.mxu0 %v2479
    %2561 = vmatpush.msra.mxu0 %v2476
    %2562 = vmatpush.msra.mxu0 %v2473
    %2563 = vmatpush.msra.mxu0 %v2470
    %2564 = vmatpush.msra.mxu0 %v2467
    %2565 = vmatpush.msra.mxu0 %v2464
    %2566 = vmatmul.f32.gmra.mxu0 %v2457
    %v2567 = vpop.f32.mrf.mxu0
    %v2568 = vadd.f32 0.0, %v2567
    %2569 = vdwg.mxu0
    %v2570 = vadd.f32 %v2459, %v2528
    %v2571 = vsub.f32 0.0, %v2570
    %v2572 = vmul.f32 %v2571, 1.442695
    %v2573 = vpow.pop %v2572
    %v2574 = vadd.f32 %v2573, 1.0
    %v2575 = vrcp.pop %v2574
    %v2576 = vadd.f32 %v2460, %v2548
    %v2577 = vsub.f32 0.0, %v2576
    %v2578 = vmul.f32 %v2577, 1.442695
    %v2579 = vpow.pop %v2578
    %v2580 = vadd.f32 %v2579, 1.0
    %v2581 = vrcp.pop %v2580
    %v2582 = vadd.f32 %v2568, %v1788
    %v2583 = vmul.f32 %v2575, %v2582
    %v2584 = vadd.f32 %v2461, %v2583
    %v2585 = vtanh.pop %v2584
    %v2586 = vsub.f32 1.0, %v2581
    %v2587 = vmul.f32 %v2586, %v2585
    %v2588 = vmul.f32 %v2581, %v2457
    %v2589 = vadd.f32 %v2587, %v2588
    %2590 = vst [vmem:[%s1311] sm:$0xff] %v2589
    %v2591 = vld [vmem:[%s1315] sm:$0xff]
    %v2592 = vld [vmem:[%s1315 + $0x8] sm:$0xff]
    %v2593 = vld [vmem:[%s1315 + $0x10] sm:$0xff]
    %v2594 = vld [vmem:[#allocation14] sm:$0xff]
    %v2595 = vld [vmem:[#allocation14 + $0x8] sm:$0xff]
    %v2596 = vld [vmem:[#allocation14 + $0x10] sm:$0xff]
    %v2597 = vld [vmem:[#allocation14 + $0x18] sm:$0xff]
    %v2598 = vld [vmem:[#allocation14 + $0x20] sm:$0xff]
    %v2599 = vld [vmem:[#allocation14 + $0x28] sm:$0xff]
    %v2600 = vld [vmem:[#allocation14 + $0x30] sm:$0xff]
    %v2601 = vld [vmem:[#allocation14 + $0x38] sm:$0xff]
    %v2602 = vld [vmem:[#allocation14 + $0x40] sm:$0xff]
    %v2603 = vld [vmem:[#allocation14 + $0x48] sm:$0xff]
    %v2604 = vld [vmem:[#allocation14 + $0x50] sm:$0xff]
    %v2605 = vld [vmem:[#allocation14 + $0x58] sm:$0xff]
    %v2606 = vld [vmem:[#allocation14 + $0x60] sm:$0xff]
    %v2607 = vld [vmem:[#allocation14 + $0x68] sm:$0xff]
    %v2608 = vld [vmem:[#allocation14 + $0x70] sm:$0xff]
    %v2609 = vld [vmem:[#allocation14 + $0x78] sm:$0xff]
    %v2610 = vld [vmem:[#allocation14 + $0x80] sm:$0xff]
    %v2611 = vld [vmem:[#allocation14 + $0x88] sm:$0xff]
    %v2612 = vld [vmem:[#allocation14 + $0x90] sm:$0xff]
    %v2613 = vld [vmem:[#allocation14 + $0x98] sm:$0xff]
    %v2614 = vld [vmem:[#allocation14 + $0xa0] sm:$0xff]
    %v2615 = vld [vmem:[#allocation14 + $0xa8] sm:$0xff]
    %v2616 = vld [vmem:[#allocation14 + $0xb0] sm:$0xff]
    %v2617 = vld [vmem:[#allocation14 + $0xb8] sm:$0xff]
    %v2618 = vld [vmem:[#allocation14 + $0xc0] sm:$0xff]
    %v2619 = vld [vmem:[#allocation14 + $0xc8] sm:$0xff]
    %v2620 = vld [vmem:[#allocation14 + $0xd0] sm:$0xff]
    %v2621 = vld [vmem:[#allocation14 + $0xd8] sm:$0xff]
    %v2622 = vld [vmem:[#allocation14 + $0xe0] sm:$0xff]
    %v2623 = vld [vmem:[#allocation14 + $0xe8] sm:$0xff]
    %v2624 = vld [vmem:[#allocation14 + $0xf0] sm:$0xff]
    %v2625 = vld [vmem:[#allocation14 + $0xf8] sm:$0xff]
    %v2626 = vld [vmem:[#allocation14 + $0x100] sm:$0xff]
    %v2627 = vld [vmem:[#allocation14 + $0x108] sm:$0xff]
    %v2628 = vld [vmem:[#allocation14 + $0x110] sm:$0xff]
    %v2629 = vld [vmem:[#allocation14 + $0x118] sm:$0xff]
    %v2630 = vld [vmem:[#allocation14 + $0x120] sm:$0xff]
    %v2631 = vld [vmem:[#allocation14 + $0x128] sm:$0xff]
    %v2632 = vld [vmem:[#allocation14 + $0x130] sm:$0xff]
    %v2633 = vld [vmem:[#allocation14 + $0x138] sm:$0xff]
    %v2634 = vld [vmem:[#allocation14 + $0x140] sm:$0xff]
    %v2635 = vld [vmem:[#allocation14 + $0x148] sm:$0xff]
    %v2636 = vld [vmem:[#allocation14 + $0x150] sm:$0xff]
    %v2637 = vld [vmem:[#allocation14 + $0x158] sm:$0xff]
    %v2638 = vld [vmem:[#allocation14 + $0x160] sm:$0xff]
    %v2639 = vld [vmem:[#allocation14 + $0x168] sm:$0xff]
    %v2640 = vld [vmem:[#allocation14 + $0x170] sm:$0xff]
    %v2641 = vld [vmem:[#allocation14 + $0x178] sm:$0xff]
    %2642 = vmatpush.msra.mxu0 %v2639
    %2643 = vmatpush.msra.mxu0 %v2636
    %2644 = vmatpush.msra.mxu0 %v2633
    %2645 = vmatpush.msra.mxu0 %v2630
    %2646 = vmatpush.msra.mxu0 %v2627
    %2647 = vmatpush.msra.mxu0 %v2624
    %2648 = vmatpush.msra.mxu0 %v2621
    %2649 = vmatpush.msra.mxu0 %v2618
    %2650 = vmatpush.msra.mxu0 %v2615
    %2651 = vmatpush.msra.mxu0 %v2612
    %2652 = vmatpush.msra.mxu0 %v2609
    %2653 = vmatpush.msra.mxu0 %v2606
    %2654 = vmatpush.msra.mxu0 %v2603
    %2655 = vmatpush.msra.mxu0 %v2600
    %2656 = vmatpush.msra.mxu0 %v2597
    %2657 = vmatpush.msra.mxu0 %v2594
    %2658 = vmatmul.f32.gmra.mxu0 %v2589
    %v2659 = vpop.f32.mrf.mxu0
    %v2660 = vadd.f32 0.0, %v2659
    %2661 = vdwg.mxu0
    %2662 = vmatpush.msra.mxu0 %v2640
    %2663 = vmatpush.msra.mxu0 %v2637
    %2664 = vmatpush.msra.mxu0 %v2634
    %2665 = vmatpush.msra.mxu0 %v2631
    %2666 = vmatpush.msra.mxu0 %v2628
    %2667 = vmatpush.msra.mxu0 %v2625
    %2668 = vmatpush.msra.mxu0 %v2622
    %2669 = vmatpush.msra.mxu0 %v2619
    %2670 = vmatpush.msra.mxu0 %v2616
    %2671 = vmatpush.msra.mxu0 %v2613
    %2672 = vmatpush.msra.mxu0 %v2610
    %2673 = vmatpush.msra.mxu0 %v2607
    %2674 = vmatpush.msra.mxu0 %v2604
    %2675 = vmatpush.msra.mxu0 %v2601
    %2676 = vmatpush.msra.mxu0 %v2598
    %2677 = vmatpush.msra.mxu0 %v2595
    %2678 = vmatmul.f32.gmra.mxu0 %v2589
    %v2679 = vpop.f32.mrf.mxu0
    %v2680 = vadd.f32 0.0, %v2679
    %2681 = vdwg.mxu0
    %2682 = vmatpush.msra.mxu0 %v2641
    %2683 = vmatpush.msra.mxu0 %v2638
    %2684 = vmatpush.msra.mxu0 %v2635
    %2685 = vmatpush.msra.mxu0 %v2632
    %2686 = vmatpush.msra.mxu0 %v2629
    %2687 = vmatpush.msra.mxu0 %v2626
    %2688 = vmatpush.msra.mxu0 %v2623
    %2689 = vmatpush.msra.mxu0 %v2620
    %2690 = vmatpush.msra.mxu0 %v2617
    %2691 = vmatpush.msra.mxu0 %v2614
    %2692 = vmatpush.msra.mxu0 %v2611
    %2693 = vmatpush.msra.mxu0 %v2608
    %2694 = vmatpush.msra.mxu0 %v2605
    %2695 = vmatpush.msra.mxu0 %v2602
    %2696 = vmatpush.msra.mxu0 %v2599
    %2697 = vmatpush.msra.mxu0 %v2596
    %2698 = vmatmul.f32.gmra.mxu0 %v2589
    %v2699 = vpop.f32.mrf.mxu0
    %v2700 = vadd.f32 0.0, %v2699
    %2701 = vdwg.mxu0
    %v2702 = vadd.f32 %v2591, %v2660
    %v2703 = vsub.f32 0.0, %v2702
    %v2704 = vmul.f32 %v2703, 1.442695
    %v2705 = vpow.pop %v2704
    %v2706 = vadd.f32 %v2705, 1.0
    %v2707 = vrcp.pop %v2706
    %v2708 = vadd.f32 %v2592, %v2680
    %v2709 = vsub.f32 0.0, %v2708
    %v2710 = vmul.f32 %v2709, 1.442695
    %v2711 = vpow.pop %v2710
    %v2712 = vadd.f32 %v2711, 1.0
    %v2713 = vrcp.pop %v2712
    %v2714 = vadd.f32 %v2700, %v1788
    %v2715 = vmul.f32 %v2707, %v2714
    %v2716 = vadd.f32 %v2593, %v2715
    %v2717 = vtanh.pop %v2716
    %v2718 = vsub.f32 1.0, %v2713
    %v2719 = vmul.f32 %v2718, %v2717
    %v2720 = vmul.f32 %v2713, %v2589
    %v2721 = vadd.f32 %v2719, %v2720
    %2722 = vst [vmem:[%s1447] sm:$0xff] %v2721
    %s2723 = scalar_lea.vmem [#allocation16], 8
    %2724 = vst [vmem:[%s2723] sm:$0xff] %v2721
    // Predicated region
    $region70: #{tpu_custom_call.1} parent=1 // pred_check
      _
    $region71: #{tpu_custom_call.1} parent=1 // pred_check_branch
      %2726 = sbr.rel (0) target = $region73
    $region72: #{tpu_custom_call.1} parent=1 // pred_region
      %2728 = vsyncadd [#allocation5], 0
      %s2729 = sshll.u32 [#allocation15], 4
      %s2730 = int_to_ptr.vmem [resolvable:$true] %s2729
      %s2731 = sshll.u32 %s10, 4
      %s2732 = int_to_ptr.hbm [resolvable:$true] %s2731
      %2737 = dma.vmem_to_hbm [thread:$0]  %s2730, 1024, %s2732, [#allocation5], 128, 128, 8
    $region73: #{tpu_custom_call.1} parent=1 // pred_fallthru
      _
    // Predicated region
    $region74: #{tpu_custom_call.1} parent=1 // pred_check
      _
    $region75: #{tpu_custom_call.1} parent=1 // pred_check_branch
      %2739 = sbr.rel (0) target = $region77
    $region76: #{tpu_custom_call.1} parent=1 // pred_region
      %2741 = vsyncadd [#allocation17], 0
      %s2742 = sshll.u32 [#allocation16], 4
      %s2743 = int_to_ptr.vmem [resolvable:$true] %s2742
      %s2744 = sshll.u32 %s11, 4
      %s2745 = int_to_ptr.hbm [resolvable:$true] %s2744
      %2750 = dma.vmem_to_hbm [thread:$0]  %s2743, 256, %s2745, [#allocation17], 128, 128, 8
    $region77: #{tpu_custom_call.1} parent=1 // pred_fallthru
      _
    // Predicated region
    $region78: #{tpu_custom_call.1} parent=1 // pred_check
      _
    $region79: #{tpu_custom_call.1} parent=1 // pred_check_branch
      %2752 = sbr.rel (0) target = $region81
    $region80: #{tpu_custom_call.1} parent=1 // pred_region
      %2754 = dma.done [#allocation5], 1024
    $region81: #{tpu_custom_call.1} parent=1 // pred_fallthru
      _
    // Predicated region
    $region82: #{tpu_custom_call.1} parent=1 // pred_check
      _
    $region83: #{tpu_custom_call.1} parent=1 // pred_check_branch
      %2756 = sbr.rel (0) target = $region85
    $region84: #{tpu_custom_call.1} parent=1 // pred_region
      %2758 = dma.done [#allocation17], 256
    $region85: #{tpu_custom_call.1} parent=1 // pred_fallthru
      _
    %2759 = vsyncpa [#allocation4], 1
    %2760 = vsyncpa [#allocation7], 1
    %2761 = vsyncpa [#allocation10], 1
    %2762 = vsyncpa [#allocation13], 1
    %2763 = vsyncpa [#allocation5], 1
    %2764 = vsyncpa [#allocation17], 1

</llo_original>
